<compile_context>
chip_gen: v7x
topology: tpu7x:2x2x1
jax: 0.10.0
libtpu: 0.0.40
codegen_flags: <defaults>
</compile_context>

<pallas_src>
import functools

import jax
import jax.numpy as jnp
from jax import lax
from jax.experimental import pallas as pl
from jax.experimental.pallas import tpu as pltpu


def _round_up(x, m):
    return ((x + m - 1) // m) * m


# ---------------------------------------------------------------------------
# Kernel
# ---------------------------------------------------------------------------
def _resnet_block_kernel(x_ref, w1_ref, t1_ref, w2_ref, t2_ref, w3_ref, t3_ref,
                         o_ref, pad_ref, *, H, W, Cin, Cm, Cout, compute_dtype):
    HW = H * W
    cd = compute_dtype
    f32 = jnp.float32

    # ---- conv 1x1 (in -> mid) + folded BN shift + ReLU ----
    x0 = x_ref[0].reshape(HW, Cin).astype(cd)
    h1 = jnp.dot(x0, w1_ref[...], preferred_element_type=f32)
    h1 = jnp.maximum(h1 + t1_ref[...], 0.0)                  # (HW, Cm) f32

    # ---- zero only the 1-wide border of the shared padded scratch ----
    # (interior is fully overwritten below; done every step so correctness
    #  does not depend on how the grid is sharded across cores)
    zrow = jnp.zeros((1, W + 2, Cm), f32)
    zcol = jnp.zeros((H + 2, 1, Cm), f32)
    pad_ref[0:1, :, :] = zrow
    pad_ref[H + 1:H + 2, :, :] = zrow
    pad_ref[:, 0:1, :] = zcol
    pad_ref[:, W + 1:W + 2, :] = zcol

    def conv3x3(w_ref):
        # in-register im2col: K = 9*Cm, one MXU matmul per conv
        cols = jnp.concatenate(
            [pad_ref[ky:ky + H, kx:kx + W, :].reshape(HW, Cm).astype(cd)
             for ky in range(3) for kx in range(3)], axis=1)  # (HW, 9*Cm)
        return jnp.dot(cols, w_ref[...], preferred_element_type=f32)

    # ---- conv 3x3 (mid -> mid), padding=1, + shift + ReLU ----
    pad_ref[1:H + 1, 1:W + 1, :] = h1.reshape(H, W, Cm)
    h2 = jnp.maximum(conv3x3(w2_ref) + t2_ref[...], 0.0)      # (HW, Cm) f32

    # ---- conv 3x3 (mid -> out), padding=1, + shift (reuse the same scratch) --
    pad_ref[1:H + 1, 1:W + 1, :] = h2.reshape(H, W, Cm)
    res = conv3x3(w3_ref) + t3_ref[...]                       # (HW, Cout) f32

    # ---- residual add: re-read the input block (no long live range on x) ----
    o_ref[0] = x_ref[0] + res.reshape(H, W, Cout)


# ---------------------------------------------------------------------------
# Wrapper
# ---------------------------------------------------------------------------
def resnet_block_nodownsampling(x_nchw, prepared, compute_dtype=jnp.float32):
    """x_nchw: (N, Cin, H, W) float32.  `prepared` comes from prepare_params."""
    w1, t1, w2r, t2, w3r, t3 = prepared
    N, Cin, H, W = x_nchw.shape
    Cm = w1.shape[1]                       # mid channel, padded to mult of 128
    Cout = w3r.shape[-1]
    assert Cout == Cin, "residual add requires out_channel == in_channel"

    # TODO(synk): if the surrounding model keeps activations in NHWC, hoist
    #             these two transposes (full HBM round trips) out of the block.
    x_nhwc = jnp.transpose(x_nchw, (0, 2, 3, 1))

    kernel = functools.partial(_resnet_block_kernel, H=H, W=W, Cin=Cin,
                               Cm=Cm, Cout=Cout, compute_dtype=compute_dtype)

    wbytes = jnp.dtype(compute_dtype).itemsize
    f32b = 4
    footprint = (
        2 * H * W * (Cin + Cout) * f32b                          # dbl-buffered in/out
        + 2 * (Cin * Cm + 9 * Cm * Cm + 9 * Cm * Cout) * wbytes  # weights
        + 2 * (2 * Cm + Cout) * f32b                             # shifts
        + (H + 2) * (W + 2) * Cm * f32b                          # padded scratch
        + 2 * H * W * 9 * Cm * max(wbytes, f32b))                # im2col live value
    vmem_limit = int(min(64 * 2**20, max(2 * footprint, 16 * 2**20)))

    full = lambda n: (0, 0)

    out_nhwc = pl.pallas_call(
        kernel,
        out_shape=jax.ShapeDtypeStruct((N, H, W, Cout), jnp.float32),
        grid_spec=pltpu.PrefetchScalarGridSpec(
            num_scalar_prefetch=0,
            grid=(N,),
            in_specs=[
                pl.BlockSpec((1, H, W, Cin), lambda n: (n, 0, 0, 0)),
                pl.BlockSpec((Cin, Cm), full),
                pl.BlockSpec((1, Cm), full),
                pl.BlockSpec((9 * Cm, Cm), full),
                pl.BlockSpec((1, Cm), full),
                pl.BlockSpec((9 * Cm, Cout), full),
                pl.BlockSpec((1, Cout), full),
            ],
            out_specs=pl.BlockSpec((1, H, W, Cout), lambda n: (n, 0, 0, 0)),
            scratch_shapes=[pltpu.VMEM((H + 2, W + 2, Cm), jnp.float32)],
        ),
        compiler_params=pltpu.CompilerParams(
            dimension_semantics=("parallel",),
            vmem_limit_bytes=vmem_limit),
    )(x_nhwc, w1, t1, w2r, t2, w3r, t3)

    return jnp.transpose(out_nhwc, (0, 3, 1, 2))


# ---------------------------------------------------------------------------
# Host-side parameter preparation: fold eval-mode BN, pad mid channel,
# reshape 3x3 weights for the im2col matmul, cast MXU operands.
# ---------------------------------------------------------------------------
def prepare_params(raw, compute_dtype=jnp.float32, eps=1e-5):
    w1, b1, w2, b2, w3, b3, bn1, bn2, bn3 = raw

    def fold(bias, stats):
        gamma, beta, mean, var = stats
        scale = gamma / jnp.sqrt(var + eps)
        shift = beta + (bias - mean) * scale
        return scale, shift

    s1, t1 = fold(b1, bn1)
    s2, t2 = fold(b2, bn2)
    s3, t3 = fold(b3, bn3)

    Cin, Cm = w1.shape
    Cout = w3.shape[-1]
    Cmp = _round_up(Cm, 128)

    w1f = w1 * s1[None, :]                      # fold BN scale into weights
    w2f = w2 * s2[None, None, None, :]
    w3f = w3 * s3[None, None, None, :]

    w1p = jnp.zeros((Cin, Cmp), jnp.float32).at[:, :Cm].set(w1f)
    w2p = jnp.zeros((3, 3, Cmp, Cmp), jnp.float32).at[:, :, :Cm, :Cm].set(w2f)
    w3p = jnp.zeros((3, 3, Cmp, Cout), jnp.float32).at[:, :, :Cm, :].set(w3f)

    t1p = jnp.zeros((1, Cmp), jnp.float32).at[0, :Cm].set(t1)
    t2p = jnp.zeros((1, Cmp), jnp.float32).at[0, :Cm].set(t2)
    t3p = t3[None, :].astype(jnp.float32)

    cd = compute_dtype
    return (w1p.astype(cd), t1p,
            w2p.reshape(9 * Cmp, Cmp).astype(cd), t2p,
            w3p.reshape(9 * Cmp, Cout).astype(cd), t3p)


def make_raw_params(key, in_channel, mid_channel, out_channel):
    ks = jax.random.split(key, 12)
    f32 = jnp.float32

    w1 = 0.1 * jax.random.normal(ks[0], (in_channel, mid_channel), f32)
    b1 = 0.1 * jax.random.normal(ks[1], (mid_channel,), f32)
    w2 = 0.1 * jax.random.normal(ks[2], (3, 3, mid_channel, mid_channel), f32)
    b2 = 0.1 * jax.random.normal(ks[3], (mid_channel,), f32)
    w3 = 0.1 * jax.random.normal(ks[4], (3, 3, mid_channel, out_channel), f32)
    b3 = 0.1 * jax.random.normal(ks[5], (out_channel,), f32)

    def bn(kg, kb, km, kv, c):
        gamma = 1.0 + 0.1 * jax.random.normal(kg, (c,), f32)
        beta = 0.1 * jax.random.normal(kb, (c,), f32)
        mean = 0.1 * jax.random.normal(km, (c,), f32)
        var = jax.random.uniform(kv, (c,), f32, 0.5, 1.5)
        return gamma, beta, mean, var

    bn1 = bn(ks[6], ks[7], ks[8], ks[9], mid_channel)
    bn2 = bn(ks[10], ks[11], ks[0], ks[1], mid_channel)
    bn3 = bn(ks[2], ks[3], ks[4], ks[5], out_channel)

    return (w1, b1, w2, b2, w3, b3, bn1, bn2, bn3)


# ---------------------------------------------------------------------------
# Pure-JAX reference (eval-mode BN) for correctness checking
# ---------------------------------------------------------------------------
def reference_forward(x_nchw, raw, eps=1e-5):
    w1, b1, w2, b2, w3, b3, bn1, bn2, bn3 = raw
    x = jnp.transpose(x_nchw, (0, 2, 3, 1))  # NHWC
    dn = ('NHWC', 'HWIO', 'NHWC')

    def conv(x, w, b, pad):
        y = lax.conv_general_dilated(x, w, (1, 1), pad, dimension_numbers=dn)
        return y + b

    def bn_apply(y, stats):
        gamma, beta, mean, var = stats
        return (y - mean) / jnp.sqrt(var + eps) * gamma + beta

    h = bn_apply(conv(x, w1[None, None], b1, 'VALID'), bn1)
    h = jnp.maximum(h, 0.0)
    h = bn_apply(conv(h, w2, b2, 'SAME'), bn2)
    h = jnp.maximum(h, 0.0)
    h = bn_apply(conv(h, w3, b3, 'SAME'), bn3)
    out = x + h
    return jnp.transpose(out, (0, 3, 1, 2))


if __name__ == "__main__":
    N, Cin, Cmid, Cout, H, W = 2, 8, 8, 8, 16, 16
    key = jax.random.PRNGKey(0)
    k_x, k_p = jax.random.split(key)

    x = jax.random.normal(k_x, (N, Cin, H, W), jnp.float32)
    raw = make_raw_params(k_p, Cin, Cmid, Cout)
    ref = reference_forward(x, raw)

    # f32 MXU path (exact check against the reference)
    prep32 = prepare_params(raw, jnp.float32)
    out32 = jax.block_until_ready(
        resnet_block_nodownsampling(x, prep32, jnp.float32))
    assert out32.shape == (N, Cout, H, W)
    assert jnp.allclose(out32, ref, rtol=1e-4, atol=1e-4), (
        float(jnp.max(jnp.abs(out32 - ref))))

    # bf16 MXU operands with f32 accumulation (v6e/v7x perf path)
    prep16 = prepare_params(raw, jnp.bfloat16)
    out16 = jax.block_until_ready(
        resnet_block_nodownsampling(x, prep16, jnp.bfloat16))
    assert jnp.allclose(out16, ref, rtol=5e-2, atol=5e-2), (
        float(jnp.max(jnp.abs(out16 - ref))))

    print("KERNEL_OK")
</pallas_src>

<mosaic_0001>
module attributes {stable_mosaic.version = 11 : i64} {
  func.func @_resnet_block_kernel(%arg0: i32, %arg1: memref<1x16x16x8xf32, #tpu.memory_space<vmem>>, %arg2: memref<8x128xf32, #tpu.memory_space<vmem>>, %arg3: memref<1x128xf32, #tpu.memory_space<vmem>>, %arg4: memref<1152x128xf32, #tpu.memory_space<vmem>>, %arg5: memref<1x128xf32, #tpu.memory_space<vmem>>, %arg6: memref<1152x8xf32, #tpu.memory_space<vmem>>, %arg7: memref<1x8xf32, #tpu.memory_space<vmem>>, %arg8: memref<1x16x16x8xf32, #tpu.memory_space<vmem>>, %arg9: memref<18x18x128xf32, #tpu.memory_space<vmem>>) attributes {dimension_semantics = [#tpu.dimension_semantics<parallel>], iteration_bounds = array<i64: 2>, scalar_prefetch = 0 : i64, scratch_operands = 1 : i64, tpu.core_type = #tpu.core_type<tc>, window_params = [{transform_indices = @transform_0, window_bounds = array<i64: 1, 16, 16, 8>}, {pipeline_mode = #tpu.pipeline_mode<synchronous>, transform_indices = @transform_1, window_bounds = array<i64: 8, 128>}, {pipeline_mode = #tpu.pipeline_mode<synchronous>, transform_indices = @transform_2, window_bounds = array<i64: 1, 128>}, {pipeline_mode = #tpu.pipeline_mode<synchronous>, transform_indices = @transform_3, window_bounds = array<i64: 1152, 128>}, {pipeline_mode = #tpu.pipeline_mode<synchronous>, transform_indices = @transform_4, window_bounds = array<i64: 1, 128>}, {pipeline_mode = #tpu.pipeline_mode<synchronous>, transform_indices = @transform_5, window_bounds = array<i64: 1152, 8>}, {pipeline_mode = #tpu.pipeline_mode<synchronous>, transform_indices = @transform_6, window_bounds = array<i64: 1, 8>}, {transform_indices = @transform_7, window_bounds = array<i64: 1, 16, 16, 8>}]} {
    %c0 = arith.constant 0 : index
    %c0_0 = arith.constant 0 : index
    %c0_1 = arith.constant 0 : index
    %c0_2 = arith.constant 0 : index
    %0 = vector.load %arg1[%c0, %c0_0, %c0_1, %c0_2] : memref<1x16x16x8xf32, #tpu.memory_space<vmem>>, vector<1x16x16x8xf32>
    %1 = vector.shape_cast %0 : vector<1x16x16x8xf32> to vector<16x16x8xf32>
    %2 = vector.shape_cast %1 : vector<16x16x8xf32> to vector<256x8xf32>
    %c0_3 = arith.constant 0 : index
    %c0_4 = arith.constant 0 : index
    %3 = vector.load %arg2[%c0_3, %c0_4] : memref<8x128xf32, #tpu.memory_space<vmem>>, vector<8x128xf32>
    %cst = arith.constant dense<0.000000e+00> : vector<256x128xf32>
    %4 = tpu.matmul %2, %3, %cst {dimension_numbers = #tpu.dot_dimension_numbers<[1], [0], [0], [1], [0, 0, 1, 1], [], []>} : vector<256x8xf32>, vector<8x128xf32>, vector<256x128xf32> -> vector<256x128xf32>
    %c0_5 = arith.constant 0 : index
    %c0_6 = arith.constant 0 : index
    %5 = vector.load %arg3[%c0_5, %c0_6] : memref<1x128xf32, #tpu.memory_space<vmem>>, vector<1x128xf32>
    %6 = vector.broadcast %5 : vector<1x128xf32> to vector<256x128xf32>
    %7 = arith.addf %4, %6 : vector<256x128xf32>
    %cst_7 = arith.constant 0.000000e+00 : f32
    %8 = vector.broadcast %cst_7 : f32 to vector<256x128xf32>
    %9 = arith.maximumf %7, %8 : vector<256x128xf32>
    %cst_8 = arith.constant 0.000000e+00 : f32
    %10 = vector.broadcast %cst_8 : f32 to vector<1x18x128xf32>
    %cst_9 = arith.constant 0.000000e+00 : f32
    %11 = vector.broadcast %cst_9 : f32 to vector<18x1x128xf32>
    %c0_10 = arith.constant 0 : index
    %c0_11 = arith.constant 0 : index
    %c0_12 = arith.constant 0 : index
    %12 = vector.load %arg9[%c0_10, %c0_11, %c0_12] : memref<18x18x128xf32, #tpu.memory_space<vmem>>, vector<1x18x128xf32>
    tpu.vector_store %arg9[%c0_10, %c0_11, %c0_12], %10 {strides = array<i32>} : memref<18x18x128xf32, #tpu.memory_space<vmem>>, vector<1x18x128xf32>,
    %c17 = arith.constant 17 : index
    %c0_13 = arith.constant 0 : index
    %c0_14 = arith.constant 0 : index
    %13 = vector.load %arg9[%c17, %c0_13, %c0_14] : memref<18x18x128xf32, #tpu.memory_space<vmem>>, vector<1x18x128xf32>
    tpu.vector_store %arg9[%c17, %c0_13, %c0_14], %10 {strides = array<i32>} : memref<18x18x128xf32, #tpu.memory_space<vmem>>, vector<1x18x128xf32>,
    %c0_15 = arith.constant 0 : index
    %c0_16 = arith.constant 0 : index
    %c0_17 = arith.constant 0 : index
    %14 = vector.load %arg9[%c0_15, %c0_16, %c0_17] : memref<18x18x128xf32, #tpu.memory_space<vmem>>, vector<18x1x128xf32>
    tpu.vector_store %arg9[%c0_15, %c0_16, %c0_17], %11 {strides = array<i32>} : memref<18x18x128xf32, #tpu.memory_space<vmem>>, vector<18x1x128xf32>,
    %c0_18 = arith.constant 0 : index
    %c17_19 = arith.constant 17 : index
    %c0_20 = arith.constant 0 : index
    %15 = vector.load %arg9[%c0_18, %c17_19, %c0_20] : memref<18x18x128xf32, #tpu.memory_space<vmem>>, vector<18x1x128xf32>
    tpu.vector_store %arg9[%c0_18, %c17_19, %c0_20], %11 {strides = array<i32>} : memref<18x18x128xf32, #tpu.memory_space<vmem>>, vector<18x1x128xf32>,
    %16 = vector.shape_cast %9 : vector<256x128xf32> to vector<16x16x128xf32>
    %c1 = arith.constant 1 : index
    %c1_21 = arith.constant 1 : index
    %c0_22 = arith.constant 0 : index
    %17 = vector.load %arg9[%c1, %c1_21, %c0_22] : memref<18x18x128xf32, #tpu.memory_space<vmem>>, vector<16x16x128xf32>
    tpu.vector_store %arg9[%c1, %c1_21, %c0_22], %16 {strides = array<i32>} : memref<18x18x128xf32, #tpu.memory_space<vmem>>, vector<16x16x128xf32>,
    %c0_23 = arith.constant 0 : index
    %c0_24 = arith.constant 0 : index
    %c0_25 = arith.constant 0 : index
    %18 = vector.load %arg9[%c0_23, %c0_24, %c0_25] : memref<18x18x128xf32, #tpu.memory_space<vmem>>, vector<16x16x128xf32>
    %19 = vector.shape_cast %18 : vector<16x16x128xf32> to vector<256x128xf32>
    %c0_26 = arith.constant 0 : index
    %c1_27 = arith.constant 1 : index
    %c0_28 = arith.constant 0 : index
    %20 = vector.load %arg9[%c0_26, %c1_27, %c0_28] : memref<18x18x128xf32, #tpu.memory_space<vmem>>, vector<16x16x128xf32>
    %21 = vector.shape_cast %20 : vector<16x16x128xf32> to vector<256x128xf32>
    %c0_29 = arith.constant 0 : index
    %c2 = arith.constant 2 : index
    %c0_30 = arith.constant 0 : index
    %22 = vector.load %arg9[%c0_29, %c2, %c0_30] : memref<18x18x128xf32, #tpu.memory_space<vmem>>, vector<16x16x128xf32>
    %23 = vector.shape_cast %22 : vector<16x16x128xf32> to vector<256x128xf32>
    %c1_31 = arith.constant 1 : index
    %c0_32 = arith.constant 0 : index
    %c0_33 = arith.constant 0 : index
    %24 = vector.load %arg9[%c1_31, %c0_32, %c0_33] : memref<18x18x128xf32, #tpu.memory_space<vmem>>, vector<16x16x128xf32>
    %25 = vector.shape_cast %24 : vector<16x16x128xf32> to vector<256x128xf32>
    %c1_34 = arith.constant 1 : index
    %c1_35 = arith.constant 1 : index
    %c0_36 = arith.constant 0 : index
    %26 = vector.load %arg9[%c1_34, %c1_35, %c0_36] : memref<18x18x128xf32, #tpu.memory_space<vmem>>, vector<16x16x128xf32>
    %27 = vector.shape_cast %26 : vector<16x16x128xf32> to vector<256x128xf32>
    %c1_37 = arith.constant 1 : index
    %c2_38 = arith.constant 2 : index
    %c0_39 = arith.constant 0 : index
    %28 = vector.load %arg9[%c1_37, %c2_38, %c0_39] : memref<18x18x128xf32, #tpu.memory_space<vmem>>, vector<16x16x128xf32>
    %29 = vector.shape_cast %28 : vector<16x16x128xf32> to vector<256x128xf32>
    %c2_40 = arith.constant 2 : index
    %c0_41 = arith.constant 0 : index
    %c0_42 = arith.constant 0 : index
    %30 = vector.load %arg9[%c2_40, %c0_41, %c0_42] : memref<18x18x128xf32, #tpu.memory_space<vmem>>, vector<16x16x128xf32>
    %31 = vector.shape_cast %30 : vector<16x16x128xf32> to vector<256x128xf32>
    %c2_43 = arith.constant 2 : index
    %c1_44 = arith.constant 1 : index
    %c0_45 = arith.constant 0 : index
    %32 = vector.load %arg9[%c2_43, %c1_44, %c0_45] : memref<18x18x128xf32, #tpu.memory_space<vmem>>, vector<16x16x128xf32>
    %33 = vector.shape_cast %32 : vector<16x16x128xf32> to vector<256x128xf32>
    %c2_46 = arith.constant 2 : index
    %c2_47 = arith.constant 2 : index
    %c0_48 = arith.constant 0 : index
    %34 = vector.load %arg9[%c2_46, %c2_47, %c0_48] : memref<18x18x128xf32, #tpu.memory_space<vmem>>, vector<16x16x128xf32>
    %35 = vector.shape_cast %34 : vector<16x16x128xf32> to vector<256x128xf32>
    %36 = tpu.concatenate %19, %21, %23, %25, %27, %29, %31, %33, %35 in 1 : vector<256x128xf32>, vector<256x128xf32>, vector<256x128xf32>, vector<256x128xf32>, vector<256x128xf32>, vector<256x128xf32>, vector<256x128xf32>, vector<256x128xf32>, vector<256x128xf32> -> vector<256x1152xf32>
    %c0_49 = arith.constant 0 : index
    %c0_50 = arith.constant 0 : index
    %37 = vector.load %arg4[%c0_49, %c0_50] : memref<1152x128xf32, #tpu.memory_space<vmem>>, vector<1152x128xf32>
    %cst_51 = arith.constant dense<0.000000e+00> : vector<256x128xf32>
    %38 = tpu.matmul %36, %37, %cst_51 {dimension_numbers = #tpu.dot_dimension_numbers<[1], [0], [0], [1], [0, 0, 1, 1], [], []>} : vector<256x1152xf32>, vector<1152x128xf32>, vector<256x128xf32> -> vector<256x128xf32>
    %c0_52 = arith.constant 0 : index
    %c0_53 = arith.constant 0 : index
    %39 = vector.load %arg5[%c0_52, %c0_53] : memref<1x128xf32, #tpu.memory_space<vmem>>, vector<1x128xf32>
    %40 = vector.broadcast %39 : vector<1x128xf32> to vector<256x128xf32>
    %41 = arith.addf %38, %40 : vector<256x128xf32>
    %cst_54 = arith.constant 0.000000e+00 : f32
    %42 = vector.broadcast %cst_54 : f32 to vector<256x128xf32>
    %43 = arith.maximumf %41, %42 : vector<256x128xf32>
    %44 = vector.shape_cast %43 : vector<256x128xf32> to vector<16x16x128xf32>
    %c1_55 = arith.constant 1 : index
    %c1_56 = arith.constant 1 : index
    %c0_57 = arith.constant 0 : index
    %45 = vector.load %arg9[%c1_55, %c1_56, %c0_57] : memref<18x18x128xf32, #tpu.memory_space<vmem>>, vector<16x16x128xf32>
    tpu.vector_store %arg9[%c1_55, %c1_56, %c0_57], %44 {strides = array<i32>} : memref<18x18x128xf32, #tpu.memory_space<vmem>>, vector<16x16x128xf32>,
    %c0_58 = arith.constant 0 : index
    %c0_59 = arith.constant 0 : index
    %c0_60 = arith.constant 0 : index
    %46 = vector.load %arg9[%c0_58, %c0_59, %c0_60] : memref<18x18x128xf32, #tpu.memory_space<vmem>>, vector<16x16x128xf32>
    %47 = vector.shape_cast %46 : vector<16x16x128xf32> to vector<256x128xf32>
    %c0_61 = arith.constant 0 : index
    %c1_62 = arith.constant 1 : index
    %c0_63 = arith.constant 0 : index
    %48 = vector.load %arg9[%c0_61, %c1_62, %c0_63] : memref<18x18x128xf32, #tpu.memory_space<vmem>>, vector<16x16x128xf32>
    %49 = vector.shape_cast %48 : vector<16x16x128xf32> to vector<256x128xf32>
    %c0_64 = arith.constant 0 : index
    %c2_65 = arith.constant 2 : index
    %c0_66 = arith.constant 0 : index
    %50 = vector.load %arg9[%c0_64, %c2_65, %c0_66] : memref<18x18x128xf32, #tpu.memory_space<vmem>>, vector<16x16x128xf32>
    %51 = vector.shape_cast %50 : vector<16x16x128xf32> to vector<256x128xf32>
    %c1_67 = arith.constant 1 : index
    %c0_68 = arith.constant 0 : index
    %c0_69 = arith.constant 0 : index
    %52 = vector.load %arg9[%c1_67, %c0_68, %c0_69] : memref<18x18x128xf32, #tpu.memory_space<vmem>>, vector<16x16x128xf32>
    %53 = vector.shape_cast %52 : vector<16x16x128xf32> to vector<256x128xf32>
    %c1_70 = arith.constant 1 : index
    %c1_71 = arith.constant 1 : index
    %c0_72 = arith.constant 0 : index
    %54 = vector.load %arg9[%c1_70, %c1_71, %c0_72] : memref<18x18x128xf32, #tpu.memory_space<vmem>>, vector<16x16x128xf32>
    %55 = vector.shape_cast %54 : vector<16x16x128xf32> to vector<256x128xf32>
    %c1_73 = arith.constant 1 : index
    %c2_74 = arith.constant 2 : index
    %c0_75 = arith.constant 0 : index
    %56 = vector.load %arg9[%c1_73, %c2_74, %c0_75] : memref<18x18x128xf32, #tpu.memory_space<vmem>>, vector<16x16x128xf32>
    %57 = vector.shape_cast %56 : vector<16x16x128xf32> to vector<256x128xf32>
    %c2_76 = arith.constant 2 : index
    %c0_77 = arith.constant 0 : index
    %c0_78 = arith.constant 0 : index
    %58 = vector.load %arg9[%c2_76, %c0_77, %c0_78] : memref<18x18x128xf32, #tpu.memory_space<vmem>>, vector<16x16x128xf32>
    %59 = vector.shape_cast %58 : vector<16x16x128xf32> to vector<256x128xf32>
    %c2_79 = arith.constant 2 : index
    %c1_80 = arith.constant 1 : index
    %c0_81 = arith.constant 0 : index
    %60 = vector.load %arg9[%c2_79, %c1_80, %c0_81] : memref<18x18x128xf32, #tpu.memory_space<vmem>>, vector<16x16x128xf32>
    %61 = vector.shape_cast %60 : vector<16x16x128xf32> to vector<256x128xf32>
    %c2_82 = arith.constant 2 : index
    %c2_83 = arith.constant 2 : index
    %c0_84 = arith.constant 0 : index
    %62 = vector.load %arg9[%c2_82, %c2_83, %c0_84] : memref<18x18x128xf32, #tpu.memory_space<vmem>>, vector<16x16x128xf32>
    %63 = vector.shape_cast %62 : vector<16x16x128xf32> to vector<256x128xf32>
    %64 = tpu.concatenate %47, %49, %51, %53, %55, %57, %59, %61, %63 in 1 : vector<256x128xf32>, vector<256x128xf32>, vector<256x128xf32>, vector<256x128xf32>, vector<256x128xf32>, vector<256x128xf32>, vector<256x128xf32>, vector<256x128xf32>, vector<256x128xf32> -> vector<256x1152xf32>
    %c0_85 = arith.constant 0 : index
    %c0_86 = arith.constant 0 : index
    %65 = vector.load %arg6[%c0_85, %c0_86] : memref<1152x8xf32, #tpu.memory_space<vmem>>, vector<1152x8xf32>
    %cst_87 = arith.constant dense<0.000000e+00> : vector<256x8xf32>
    %66 = tpu.matmul %64, %65, %cst_87 {dimension_numbers = #tpu.dot_dimension_numbers<[1], [0], [0], [1], [0, 0, 1, 1], [], []>} : vector<256x1152xf32>, vector<1152x8xf32>, vector<256x8xf32> -> vector<256x8xf32>
    %c0_88 = arith.constant 0 : index
    %c0_89 = arith.constant 0 : index
    %67 = vector.load %arg7[%c0_88, %c0_89] : memref<1x8xf32, #tpu.memory_space<vmem>>, vector<1x8xf32>
    %68 = vector.broadcast %67 : vector<1x8xf32> to vector<256x8xf32>
    %69 = arith.addf %66, %68 : vector<256x8xf32>
    %c0_90 = arith.constant 0 : index
    %c0_91 = arith.constant 0 : index
    %c0_92 = arith.constant 0 : index
    %c0_93 = arith.constant 0 : index
    %70 = vector.load %arg1[%c0_90, %c0_91, %c0_92, %c0_93] : memref<1x16x16x8xf32, #tpu.memory_space<vmem>>, vector<1x16x16x8xf32>
    %71 = vector.shape_cast %70 : vector<1x16x16x8xf32> to vector<16x16x8xf32>
    %72 = vector.shape_cast %69 : vector<256x8xf32> to vector<16x16x8xf32>
    %73 = arith.addf %71, %72 : vector<16x16x8xf32>
    %c0_94 = arith.constant 0 : index
    %c0_95 = arith.constant 0 : index
    %c0_96 = arith.constant 0 : index
    %c0_97 = arith.constant 0 : index
    %74 = vector.load %arg8[%c0_94, %c0_95, %c0_96, %c0_97] : memref<1x16x16x8xf32, #tpu.memory_space<vmem>>, vector<1x16x16x8xf32>
    %75 = vector.shape_cast %74 : vector<1x16x16x8xf32> to vector<16x16x8xf32>
    %76 = vector.shape_cast %73 : vector<16x16x8xf32> to vector<1x16x16x8xf32>
    tpu.vector_store %arg8[%c0_94, %c0_95, %c0_96, %c0_97], %76 {strides = array<i32>} : memref<1x16x16x8xf32, #tpu.memory_space<vmem>>, vector<1x16x16x8xf32>,
    return
  }
  func.func @transform_0(%arg0: i32) -> (i32, i32, i32, i32) {
    %c0_i32 = arith.constant 0 : i32
    %c0_i32_0 = arith.constant 0 : i32
    %c0_i32_1 = arith.constant 0 : i32
    %c0_i32_2 = arith.constant 0 : i32
    return %arg0, %c0_i32, %c0_i32_0, %c0_i32_1 : i32, i32, i32, i32
  }
  func.func @transform_1(%arg0: i32) -> (i32, i32) {
    %c0_i32 = arith.constant 0 : i32
    %c0_i32_0 = arith.constant 0 : i32
    %c0_i32_1 = arith.constant 0 : i32
    return %c0_i32, %c0_i32_0 : i32, i32
  }
  func.func @transform_2(%arg0: i32) -> (i32, i32) {
    %c0_i32 = arith.constant 0 : i32
    %c0_i32_0 = arith.constant 0 : i32
    %c0_i32_1 = arith.constant 0 : i32
    return %c0_i32, %c0_i32_0 : i32, i32
  }
  func.func @transform_3(%arg0: i32) -> (i32, i32) {
    %c0_i32 = arith.constant 0 : i32
    %c0_i32_0 = arith.constant 0 : i32
    %c0_i32_1 = arith.constant 0 : i32
    return %c0_i32, %c0_i32_0 : i32, i32
  }
  func.func @transform_4(%arg0: i32) -> (i32, i32) {
    %c0_i32 = arith.constant 0 : i32
    %c0_i32_0 = arith.constant 0 : i32
    %c0_i32_1 = arith.constant 0 : i32
    return %c0_i32, %c0_i32_0 : i32, i32
  }
  func.func @transform_5(%arg0: i32) -> (i32, i32) {
    %c0_i32 = arith.constant 0 : i32
    %c0_i32_0 = arith.constant 0 : i32
    %c0_i32_1 = arith.constant 0 : i32
    return %c0_i32, %c0_i32_0 : i32, i32
  }
  func.func @transform_6(%arg0: i32) -> (i32, i32) {
    %c0_i32 = arith.constant 0 : i32
    %c0_i32_0 = arith.constant 0 : i32
    %c0_i32_1 = arith.constant 0 : i32
    return %c0_i32, %c0_i32_0 : i32, i32
  }
  func.func @transform_7(%arg0: i32) -> (i32, i32, i32, i32) {
    %c0_i32 = arith.constant 0 : i32
    %c0_i32_0 = arith.constant 0 : i32
    %c0_i32_1 = arith.constant 0 : i32
    %c0_i32_2 = arith.constant 0 : i32
    return %arg0, %c0_i32, %c0_i32_0, %c0_i32_1 : i32, i32, i32, i32
  }
}

</mosaic_0001>

<llo_original>
// kernel: tpu_custom_call.1
$region0: #{tpu_custom_call.1}
  #allocation0 [shape = 'u32[]', space=smem, size = 0x4, offset = 0x4, fixed_abs, tag = 'smem constant byte address 0x4 - core index']
  #allocation1 [shape = 'u32[144,128]{1,0:T(1,128)}', space=vmem, size = 0x12000, scoped, tag = 'internal scratch']
  #allocation2 [shape = 'f32[18,18,128]{2,1,0:T(8,128)}', space=vmem, size = 0x36000, scoped, tag = 'scratch operand']
  %s0 = inlined_call_operand.vmem [shape: f32[2,16,16,8], index: 0, kind: input, shape index: {}]
  %s1 = inlined_call_operand.vmem [shape: f32[8,128], index: 1, kind: input, shape index: {}]
  %s2 = inlined_call_operand.vmem [shape: f32[1,128], index: 2, kind: input, shape index: {}]
  %s3 = inlined_call_operand.vmem [shape: f32[1152,128], index: 3, kind: input, shape index: {}]
  %s4 = inlined_call_operand.vmem [shape: f32[1,128], index: 4, kind: input, shape index: {}]
  %s5 = inlined_call_operand.vmem [shape: f32[1152,8], index: 5, kind: input, shape index: {}]
  %s6 = inlined_call_operand.vmem [shape: f32[1,8], index: 6, kind: input, shape index: {}]
  %s7 = inlined_call_operand.vmem [shape: f32[2,16,16,8], index: 7, kind: output, shape index: {}]
  %s8 = sld [smem:[#allocation0]]
  $region61: #{tpu_custom_call.1} parent=0
    _
  %s10 = ssub.s32 1, %s8
  %s11 = scalar_select 0, %s10, %s8
  loop: start=0, step=1, limit=4
  $region2: #{tpu_custom_call.1} parent=0 // loop_pre_header
    _
  $region3: #{tpu_custom_call.1} parent=0 // loop_header
    %s13 = sphi 0, %s17
    %p14 = scmp.ge.s32.totalorder %s13, 4
    %s23 = sphi 0, %s25
    %s26 = sphi 0, %s23
    %s27 = sphi 0, %s26
    %s43 = sphi 0, %s27
    %s47 = sphi 0, %s47
    %s49 = sphi 0, %s47
    %s50 = sphi 0, %s49
    %s64 = sphi 0, %s50
    %s68 = sphi 0, %s68
    %s70 = sphi 0, %s68
    %s71 = sphi 0, %s70
    %s85 = sphi 0, %s71
    %s89 = sphi 0, %s89
    %s91 = sphi 0, %s89
    %s92 = sphi 0, %s91
    %s106 = sphi 0, %s92
    %s110 = sphi 0, %s110
    %s112 = sphi 0, %s110
    %s113 = sphi 0, %s112
    %s127 = sphi 0, %s113
    %s131 = sphi 0, %s131
    %s133 = sphi 0, %s131
    %s134 = sphi 0, %s133
    %s148 = sphi 0, %s134
    %s152 = sphi 0, %s152
    %s154 = sphi 0, %s152
    %s155 = sphi 0, %s154
    %s169 = sphi 0, %s155
    %s175 = sphi 0, %s177
    %s178 = sphi 0, %s175
    %s179 = sphi 0, %s178
    %s195 = sphi 0, %s179
  $region4: #{tpu_custom_call.1} parent=0 // loop_header_branch
    %16 = sbr.rel (%p14) target = $region8
  $region5: #{tpu_custom_call.1} parent=0 // loop_body
    %s18 = ssub.s32 %s13, 1
    %s19 = ssub.s32 %s13, 2
    %s20 = sadd.s32 %s13, 1
    %s21 = ssub.s32 %s13, %s20
    %p22 = scmp.eq.s32.totalorder %s21, 0
    %s24 = sadd.s32 %s23, 1
    %s25 = scalar_select %p22, %s23, %s24
    %p28 = pneg %p22
    %p29 = scmp.eq.s32.totalorder %s13, 1
    %p30 = por %p28, %p29
    %p31 = scmp.ne.s32.totalorder %s23, %s26
    %p32 = scmp.eq.s32.totalorder %s13, 0
    %p33 = por %p31, %p32
    %p34 = scmp.ne.s32.totalorder %s23, %s26
    %p35 = scmp.eq.s32.totalorder %s18, 1
    %p36 = por %p34, %p35
    %p37 = scmp.ne.s32.totalorder %s26, %s27
    %p38 = scmp.eq.s32.totalorder %s18, 0
    %p39 = por %p37, %p38
    %p40 = scmp.ne.s32.totalorder %s26, %s27
    %p41 = scmp.eq.s32.totalorder %s19, 1
    %p42 = por %p40, %p41
    %p44 = scmp.ne.s32.totalorder %s27, %s43
    %p45 = scmp.eq.s32.totalorder %s19, 0
    %p46 = por %p44, %p45
    %s48 = sadd.s32 %s47, 1
    %p51 = scmp.eq.s32.totalorder %s13, 1
    %p52 = scmp.ne.s32.totalorder %s47, %s49
    %p53 = scmp.eq.s32.totalorder %s13, 0
    %p54 = por %p52, %p53
    %p55 = scmp.ne.s32.totalorder %s47, %s49
    %p56 = scmp.eq.s32.totalorder %s18, 1
    %p57 = por %p55, %p56
    %p58 = scmp.ne.s32.totalorder %s49, %s50
    %p59 = scmp.eq.s32.totalorder %s18, 0
    %p60 = por %p58, %p59
    %p61 = scmp.ne.s32.totalorder %s49, %s50
    %p62 = scmp.eq.s32.totalorder %s19, 1
    %p63 = por %p61, %p62
    %p65 = scmp.ne.s32.totalorder %s50, %s64
    %p66 = scmp.eq.s32.totalorder %s19, 0
    %p67 = por %p65, %p66
    %s69 = sadd.s32 %s68, 1
    %p72 = scmp.eq.s32.totalorder %s13, 1
    %p73 = scmp.ne.s32.totalorder %s68, %s70
    %p74 = scmp.eq.s32.totalorder %s13, 0
    %p75 = por %p73, %p74
    %p76 = scmp.ne.s32.totalorder %s68, %s70
    %p77 = scmp.eq.s32.totalorder %s18, 1
    %p78 = por %p76, %p77
    %p79 = scmp.ne.s32.totalorder %s70, %s71
    %p80 = scmp.eq.s32.totalorder %s18, 0
    %p81 = por %p79, %p80
    %p82 = scmp.ne.s32.totalorder %s70, %s71
    %p83 = scmp.eq.s32.totalorder %s19, 1
    %p84 = por %p82, %p83
    %p86 = scmp.ne.s32.totalorder %s71, %s85
    %p87 = scmp.eq.s32.totalorder %s19, 0
    %p88 = por %p86, %p87
    %s90 = sadd.s32 %s89, 1
    %p93 = scmp.eq.s32.totalorder %s13, 1
    %p94 = scmp.ne.s32.totalorder %s89, %s91
    %p95 = scmp.eq.s32.totalorder %s13, 0
    %p96 = por %p94, %p95
    %p97 = scmp.ne.s32.totalorder %s89, %s91
    %p98 = scmp.eq.s32.totalorder %s18, 1
    %p99 = por %p97, %p98
    %p100 = scmp.ne.s32.totalorder %s91, %s92
    %p101 = scmp.eq.s32.totalorder %s18, 0
    %p102 = por %p100, %p101
    %p103 = scmp.ne.s32.totalorder %s91, %s92
    %p104 = scmp.eq.s32.totalorder %s19, 1
    %p105 = por %p103, %p104
    %p107 = scmp.ne.s32.totalorder %s92, %s106
    %p108 = scmp.eq.s32.totalorder %s19, 0
    %p109 = por %p107, %p108
    %s111 = sadd.s32 %s110, 1
    %p114 = scmp.eq.s32.totalorder %s13, 1
    %p115 = scmp.ne.s32.totalorder %s110, %s112
    %p116 = scmp.eq.s32.totalorder %s13, 0
    %p117 = por %p115, %p116
    %p118 = scmp.ne.s32.totalorder %s110, %s112
    %p119 = scmp.eq.s32.totalorder %s18, 1
    %p120 = por %p118, %p119
    %p121 = scmp.ne.s32.totalorder %s112, %s113
    %p122 = scmp.eq.s32.totalorder %s18, 0
    %p123 = por %p121, %p122
    %p124 = scmp.ne.s32.totalorder %s112, %s113
    %p125 = scmp.eq.s32.totalorder %s19, 1
    %p126 = por %p124, %p125
    %p128 = scmp.ne.s32.totalorder %s113, %s127
    %p129 = scmp.eq.s32.totalorder %s19, 0
    %p130 = por %p128, %p129
    %s132 = sadd.s32 %s131, 1
    %p135 = scmp.eq.s32.totalorder %s13, 1
    %p136 = scmp.ne.s32.totalorder %s131, %s133
    %p137 = scmp.eq.s32.totalorder %s13, 0
    %p138 = por %p136, %p137
    %p139 = scmp.ne.s32.totalorder %s131, %s133
    %p140 = scmp.eq.s32.totalorder %s18, 1
    %p141 = por %p139, %p140
    %p142 = scmp.ne.s32.totalorder %s133, %s134
    %p143 = scmp.eq.s32.totalorder %s18, 0
    %p144 = por %p142, %p143
    %p145 = scmp.ne.s32.totalorder %s133, %s134
    %p146 = scmp.eq.s32.totalorder %s19, 1
    %p147 = por %p145, %p146
    %p149 = scmp.ne.s32.totalorder %s134, %s148
    %p150 = scmp.eq.s32.totalorder %s19, 0
    %p151 = por %p149, %p150
    %s153 = sadd.s32 %s152, 1
    %p156 = scmp.eq.s32.totalorder %s13, 1
    %p157 = scmp.ne.s32.totalorder %s152, %s154
    %p158 = scmp.eq.s32.totalorder %s13, 0
    %p159 = por %p157, %p158
    %p160 = scmp.ne.s32.totalorder %s152, %s154
    %p161 = scmp.eq.s32.totalorder %s18, 1
    %p162 = por %p160, %p161
    %p163 = scmp.ne.s32.totalorder %s154, %s155
    %p164 = scmp.eq.s32.totalorder %s18, 0
    %p165 = por %p163, %p164
    %p166 = scmp.ne.s32.totalorder %s154, %s155
    %p167 = scmp.eq.s32.totalorder %s19, 1
    %p168 = por %p166, %p167
    %p170 = scmp.ne.s32.totalorder %s155, %s169
    %p171 = scmp.eq.s32.totalorder %s19, 0
    %p172 = por %p170, %p171
    %s173 = ssub.s32 %s13, %s20
    %p174 = scmp.eq.s32.totalorder %s173, 0
    %s176 = sadd.s32 %s175, 1
    %s177 = scalar_select %p174, %s175, %s176
    %p180 = pneg %p174
    %p181 = scmp.eq.s32.totalorder %s13, 1
    %p182 = por %p180, %p181
    %p183 = scmp.ne.s32.totalorder %s175, %s178
    %p184 = scmp.eq.s32.totalorder %s13, 0
    %p185 = por %p183, %p184
    %p186 = scmp.ne.s32.totalorder %s175, %s178
    %p187 = scmp.eq.s32.totalorder %s18, 1
    %p188 = por %p186, %p187
    %p189 = scmp.ne.s32.totalorder %s178, %s179
    %p190 = scmp.eq.s32.totalorder %s18, 0
    %p191 = por %p189, %p190
    %p192 = scmp.ne.s32.totalorder %s178, %s179
    %p193 = scmp.eq.s32.totalorder %s19, 1
    %p194 = por %p192, %p193
    %p196 = scmp.ne.s32.totalorder %s179, %s195
    %p197 = scmp.eq.s32.totalorder %s19, 0
    %p198 = por %p196, %p197
    %p199 = scmp.le.s32.totalorder 1, %s13
    %p200 = scmp.lt.s32.totalorder %s13, 3
    %p201 = pnand %p199, %p200
    %p202 = pneg %p201
    // Predicated region
    $region9: #{tpu_custom_call.1} parent=5 // pred_check
      _
    $region10: #{tpu_custom_call.1} parent=5 // pred_check_branch
      %204 = sbr.rel (%p201) target = $region12
    $region11: #{tpu_custom_call.1} parent=5 // pred_region
      %s205 = ssub.s32 %s13, 1
      // Predicated region
      $region13: #{tpu_custom_call.1} parent=11 // pred_check
        %p206 = pneg %p60
      $region14: #{tpu_custom_call.1} parent=11 // pred_check_branch
        %208 = sbr.rel (%p206) target = $region16
      $region15: #{tpu_custom_call.1} parent=11 // pred_region
        _
      $region16: #{tpu_custom_call.1} parent=11 // pred_fallthru
        _
      // Predicated region
      $region17: #{tpu_custom_call.1} parent=11 // pred_check
        %p209 = pneg %p81
      $region18: #{tpu_custom_call.1} parent=11 // pred_check_branch
        %211 = sbr.rel (%p209) target = $region20
      $region19: #{tpu_custom_call.1} parent=11 // pred_region
        _
      $region20: #{tpu_custom_call.1} parent=11 // pred_fallthru
        _
      // Predicated region
      $region21: #{tpu_custom_call.1} parent=11 // pred_check
        %p212 = pneg %p102
      $region22: #{tpu_custom_call.1} parent=11 // pred_check_branch
        %214 = sbr.rel (%p212) target = $region24
      $region23: #{tpu_custom_call.1} parent=11 // pred_region
        _
      $region24: #{tpu_custom_call.1} parent=11 // pred_fallthru
        _
      // Predicated region
      $region25: #{tpu_custom_call.1} parent=11 // pred_check
        %p215 = pneg %p123
      $region26: #{tpu_custom_call.1} parent=11 // pred_check_branch
        %217 = sbr.rel (%p215) target = $region28
      $region27: #{tpu_custom_call.1} parent=11 // pred_region
        _
      $region28: #{tpu_custom_call.1} parent=11 // pred_fallthru
        _
      // Predicated region
      $region29: #{tpu_custom_call.1} parent=11 // pred_check
        %p218 = pneg %p144
      $region30: #{tpu_custom_call.1} parent=11 // pred_check_branch
        %220 = sbr.rel (%p218) target = $region32
      $region31: #{tpu_custom_call.1} parent=11 // pred_region
        _
      $region32: #{tpu_custom_call.1} parent=11 // pred_fallthru
        _
      // Predicated region
      $region33: #{tpu_custom_call.1} parent=11 // pred_check
        %p221 = pneg %p165
      $region34: #{tpu_custom_call.1} parent=11 // pred_check_branch
        %223 = sbr.rel (%p221) target = $region36
      $region35: #{tpu_custom_call.1} parent=11 // pred_region
        _
      $region36: #{tpu_custom_call.1} parent=11 // pred_fallthru
        _
    $region12: #{tpu_custom_call.1} parent=5 // pred_fallthru
      _
    %p224 = scmp.lt.s32.totalorder %s13, 2
    // Predicated region
    $region37: #{tpu_custom_call.1} parent=5 // pred_check
      %p225 = pneg %p224
    $region38: #{tpu_custom_call.1} parent=5 // pred_check_branch
      %227 = sbr.rel (%p225) target = $region40
    $region39: #{tpu_custom_call.1} parent=5 // pred_region
      // Predicated region
      $region41: #{tpu_custom_call.1} parent=39 // pred_check
        %p228 = pneg %p33
      $region42: #{tpu_custom_call.1} parent=39 // pred_check_branch
        %230 = sbr.rel (%p228) target = $region44
      $region43: #{tpu_custom_call.1} parent=39 // pred_region
        %p231 = scmp.lt.s32.totalorder %s13, 1
        %s232 = scalar_select %p231, %s13, 1
        %s233 = smul.addr %s232, 32
        %s234 = smul.addr %s233, 8
        %s235 = scalar_lea.vmem %s0, %s234
      $region44: #{tpu_custom_call.1} parent=39 // pred_fallthru
        _
    $region40: #{tpu_custom_call.1} parent=5 // pred_fallthru
      _
    %p236 = scmp.le.s32.totalorder 1, %s13
    %p237 = scmp.lt.s32.totalorder %s13, 3
    %p238 = pnand %p236, %p237
    %p239 = pneg %p238
    // Predicated region
    $region45: #{tpu_custom_call.1} parent=5 // pred_check
      _
    $region46: #{tpu_custom_call.1} parent=5 // pred_check_branch
      %241 = sbr.rel (%p238) target = $region48
    $region47: #{tpu_custom_call.1} parent=5 // pred_region
      %s242 = ssub.s32 %s13, 1
      %p243 = scmp.lt.s32.totalorder %s18, 1
      %s244 = scalar_select %p243, %s18, 1
      %s245 = smul.addr %s244, 32
      %s246 = smul.addr %s245, 8
      %s247 = scalar_lea.vmem %s0, %s246
      %p248 = pneg %p39
      %p249 = pneg %p36
      %p250 = pneg %p60
      %p251 = pneg %p57
      %p252 = pneg %p81
      %p253 = pneg %p78
      %p254 = pneg %p102
      %p255 = pneg %p99
      %p256 = pneg %p123
      %p257 = pneg %p120
      %p258 = pneg %p144
      %p259 = pneg %p141
      %p260 = pneg %p165
      %p261 = pneg %p162
      %p262 = pneg %p191
      %p263 = pneg %p188
      %p264 = scmp.lt.s32.totalorder %s18, 1
      %s265 = scalar_select %p264, %s18, 1
      %s266 = smul.addr %s265, 32
      %s267 = smul.addr %s266, 8
      %s268 = scalar_lea.vmem %s7, %s267
      %p269 = scmp.lt.s32.totalorder %s18, 1
      %s270 = scalar_select %p269, %s18, 1
      %s271 = smul.addr %s270, 32
      %s272 = smul.addr %s271, 8
      %s273 = scalar_lea.vmem %s0, %s272
      %p274 = scmp.lt.s32.totalorder %s18, 1
      %s275 = scalar_select %p274, %s18, 1
      %s276 = smul.addr %s275, 32
      %s277 = smul.addr %s276, 8
      %s278 = scalar_lea.vmem %s7, %s277
      %v279 = vld [vmem:[%s273] sm:$0xff]
      %v280 = vld [vmem:[%s273 + $0x8] sm:$0xff]
      %v281 = vld [vmem:[%s273 + $0x10] sm:$0xff]
      %v282 = vld [vmem:[%s273 + $0x18] sm:$0xff]
      %v283 = vld [vmem:[%s273 + $0x20] sm:$0xff]
      %v284 = vld [vmem:[%s273 + $0x28] sm:$0xff]
      %v285 = vld [vmem:[%s273 + $0x30] sm:$0xff]
      %v286 = vld [vmem:[%s273 + $0x38] sm:$0xff]
      %v287 = vld [vmem:[%s273 + $0x40] sm:$0xff]
      %v288 = vld [vmem:[%s273 + $0x48] sm:$0xff]
      %v289 = vld [vmem:[%s273 + $0x50] sm:$0xff]
      %v290 = vld [vmem:[%s273 + $0x58] sm:$0xff]
      %v291 = vld [vmem:[%s273 + $0x60] sm:$0xff]
      %v292 = vld [vmem:[%s273 + $0x68] sm:$0xff]
      %v293 = vld [vmem:[%s273 + $0x70] sm:$0xff]
      %v294 = vld [vmem:[%s273 + $0x78] sm:$0xff]
      %v295 = vld [vmem:[%s273 + $0x80] sm:$0xff]
      %v296 = vld [vmem:[%s273 + $0x88] sm:$0xff]
      %v297 = vld [vmem:[%s273 + $0x90] sm:$0xff]
      %v298 = vld [vmem:[%s273 + $0x98] sm:$0xff]
      %v299 = vld [vmem:[%s273 + $0xa0] sm:$0xff]
      %v300 = vld [vmem:[%s273 + $0xa8] sm:$0xff]
      %v301 = vld [vmem:[%s273 + $0xb0] sm:$0xff]
      %v302 = vld [vmem:[%s273 + $0xb8] sm:$0xff]
      %v303 = vld [vmem:[%s273 + $0xc0] sm:$0xff]
      %v304 = vld [vmem:[%s273 + $0xc8] sm:$0xff]
      %v305 = vld [vmem:[%s273 + $0xd0] sm:$0xff]
      %v306 = vld [vmem:[%s273 + $0xd8] sm:$0xff]
      %v307 = vld [vmem:[%s273 + $0xe0] sm:$0xff]
      %v308 = vld [vmem:[%s273 + $0xe8] sm:$0xff]
      %v309 = vld [vmem:[%s273 + $0xf0] sm:$0xff]
      %v310 = vld [vmem:[%s273 + $0xf8] sm:$0xff]
      %v311 = vld [vmem:[%s1] sm:$0xff]
      %v312 = vld [vmem:[%s2] sm:$0x1]
      %v314 = vlaneseq
      %v315 = vshrl.u32 %v314, 7
      %v316 = vsub.s32 0, %v315
      %v317 = vrot.slane %v312, %v316
      %vm319 = vcmask 64512
      %v321 = vsel %vm319, %v279, 0
      %v324 = vsel %vm319, %v280, 0
      %v327 = vsel %vm319, %v281, 0
      %v330 = vsel %vm319, %v282, 0
      %v333 = vsel %vm319, %v283, 0
      %v336 = vsel %vm319, %v284, 0
      %v339 = vsel %vm319, %v285, 0
      %v342 = vsel %vm319, %v286, 0
      %v345 = vsel %vm319, %v287, 0
      %v348 = vsel %vm319, %v288, 0
      %v351 = vsel %vm319, %v289, 0
      %v354 = vsel %vm319, %v290, 0
      %v357 = vsel %vm319, %v291, 0
      %v360 = vsel %vm319, %v292, 0
      %v363 = vsel %vm319, %v293, 0
      %v366 = vsel %vm319, %v294, 0
      %v369 = vsel %vm319, %v295, 0
      %v372 = vsel %vm319, %v296, 0
      %v375 = vsel %vm319, %v297, 0
      %v378 = vsel %vm319, %v298, 0
      %v381 = vsel %vm319, %v299, 0
      %v384 = vsel %vm319, %v300, 0
      %v387 = vsel %vm319, %v301, 0
      %v390 = vsel %vm319, %v302, 0
      %v393 = vsel %vm319, %v303, 0
      %v396 = vsel %vm319, %v304, 0
      %v399 = vsel %vm319, %v305, 0
      %v402 = vsel %vm319, %v306, 0
      %v405 = vsel %vm319, %v307, 0
      %v408 = vsel %vm319, %v308, 0
      %v411 = vsel %vm319, %v309, 0
      %v414 = vsel %vm319, %v310, 0
      %416 = vmatprep.subr.mxu0 0.0
      %417 = vmatpush1.msra.mxu0 %v311
      %418 = vmatprep.subr.mxu0 0.0
      %419 = vmatpush1.msra.mxu0 0.0
      %420 = vmatprep.subr.mxu0 0.0
      %421 = vmatpush1.msra.mxu0 0.0
      %422 = vmatprep.subr.mxu0 0.0
      %423 = vmatpush1.msra.mxu0 0.0
      %424 = vmatprep.subr.mxu0 0.0
      %425 = vmatpush1.msra.mxu0 0.0
      %426 = vmatprep.subr.mxu0 0.0
      %427 = vmatpush1.msra.mxu0 0.0
      %428 = vmatprep.subr.mxu0 0.0
      %429 = vmatpush1.msra.mxu0 0.0
      %430 = vmatprep.subr.mxu0 0.0
      %431 = vmatpush1.msra.mxu0 0.0
      %432 = vmatprep.subr.mxu0 0.0
      %433 = vmatpush1.msra.mxu0 0.0
      %434 = vmatprep.subr.mxu0 0.0
      %435 = vmatpush1.msra.mxu0 0.0
      %436 = vmatprep.subr.mxu0 0.0
      %437 = vmatpush1.msra.mxu0 0.0
      %438 = vmatprep.subr.mxu0 0.0
      %439 = vmatpush1.msra.mxu0 0.0
      %440 = vmatprep.subr.mxu0 0.0
      %441 = vmatpush1.msra.mxu0 0.0
      %442 = vmatprep.subr.mxu0 0.0
      %443 = vmatpush1.msra.mxu0 0.0
      %444 = vmatprep.subr.mxu0 0.0
      %445 = vmatpush1.msra.mxu0 0.0
      %446 = vmatprep.subr.mxu0 0.0
      %447 = vmatpush1.msra.mxu0 0.0
      %448 = vmatprep.subr.mxu0 0.0
      %449 = vmatpush1.msra.mxu0 0.0
      %450 = vmatprep.subr.mxu0 0.0
      %451 = vmatpush1.msra.mxu0 0.0
      %452 = vmatprep.subr.mxu0 0.0
      %453 = vmatpush1.msra.mxu0 0.0
      %454 = vmatprep.subr.mxu0 0.0
      %455 = vmatpush1.msra.mxu0 0.0
      %456 = vmatprep.subr.mxu0 0.0
      %457 = vmatpush1.msra.mxu0 0.0
      %458 = vmatprep.subr.mxu0 0.0
      %459 = vmatpush1.msra.mxu0 0.0
      %460 = vmatprep.subr.mxu0 0.0
      %461 = vmatpush1.msra.mxu0 0.0
      %462 = vmatprep.subr.mxu0 0.0
      %463 = vmatpush1.msra.mxu0 0.0
      %464 = vmatprep.subr.mxu0 0.0
      %465 = vmatpush1.msra.mxu0 0.0
      %466 = vmatprep.subr.mxu0 0.0
      %467 = vmatpush1.msra.mxu0 0.0
      %468 = vmatprep.subr.mxu0 0.0
      %469 = vmatpush1.msra.mxu0 0.0
      %470 = vmatprep.subr.mxu0 0.0
      %471 = vmatpush1.msra.mxu0 0.0
      %472 = vmatprep.subr.mxu0 0.0
      %473 = vmatpush1.msra.mxu0 0.0
      %474 = vmatprep.subr.mxu0 0.0
      %475 = vmatpush1.msra.mxu0 0.0
      %476 = vmatprep.subr.mxu0 0.0
      %477 = vmatpush1.msra.mxu0 0.0
      %478 = vmatprep.subr.mxu0 0.0
      %479 = vmatpush1.msra.mxu0 0.0
      %480 = vmatprep.mubr.f32.mxu0 0.0
      %481 = vmatmul.mubr.f32.gmra.mrb[0].mxu0 %v321
      %v482 = vpop.f32.mrb[0].mxu0
      %v483 = vadd.f32 %v317, %v482
      %v484 = vpop.f32.mrb[0].mxu0
      %485 = vmatprep.mubr.f32.mxu0 0.0
      %486 = vmatmul.mubr.f32.gmra.mrb[0].mxu0 %v324
      %v487 = vpop.f32.mrb[0].mxu0
      %v488 = vadd.f32 %v317, %v487
      %v489 = vpop.f32.mrb[0].mxu0
      %490 = vmatprep.mubr.f32.mxu0 0.0
      %491 = vmatmul.mubr.f32.gmra.mrb[0].mxu0 %v327
      %v492 = vpop.f32.mrb[0].mxu0
      %v493 = vadd.f32 %v317, %v492
      %v494 = vpop.f32.mrb[0].mxu0
      %495 = vmatprep.mubr.f32.mxu0 0.0
      %496 = vmatmul.mubr.f32.gmra.mrb[0].mxu0 %v330
      %v497 = vpop.f32.mrb[0].mxu0
      %v498 = vadd.f32 %v317, %v497
      %v499 = vpop.f32.mrb[0].mxu0
      %500 = vmatprep.mubr.f32.mxu0 0.0
      %501 = vmatmul.mubr.f32.gmra.mrb[0].mxu0 %v333
      %v502 = vpop.f32.mrb[0].mxu0
      %v503 = vadd.f32 %v317, %v502
      %v504 = vpop.f32.mrb[0].mxu0
      %505 = vmatprep.mubr.f32.mxu0 0.0
      %506 = vmatmul.mubr.f32.gmra.mrb[0].mxu0 %v336
      %v507 = vpop.f32.mrb[0].mxu0
      %v508 = vadd.f32 %v317, %v507
      %v509 = vpop.f32.mrb[0].mxu0
      %510 = vmatprep.mubr.f32.mxu0 0.0
      %511 = vmatmul.mubr.f32.gmra.mrb[0].mxu0 %v339
      %v512 = vpop.f32.mrb[0].mxu0
      %v513 = vadd.f32 %v317, %v512
      %v514 = vpop.f32.mrb[0].mxu0
      %515 = vmatprep.mubr.f32.mxu0 0.0
      %516 = vmatmul.mubr.f32.gmra.mrb[0].mxu0 %v342
      %v517 = vpop.f32.mrb[0].mxu0
      %v518 = vadd.f32 %v317, %v517
      %v519 = vpop.f32.mrb[0].mxu0
      %520 = vmatprep.mubr.f32.mxu0 0.0
      %521 = vmatmul.mubr.f32.gmra.mrb[0].mxu0 %v345
      %v522 = vpop.f32.mrb[0].mxu0
      %v523 = vadd.f32 %v317, %v522
      %v524 = vpop.f32.mrb[0].mxu0
      %525 = vmatprep.mubr.f32.mxu0 0.0
      %526 = vmatmul.mubr.f32.gmra.mrb[0].mxu0 %v348
      %v527 = vpop.f32.mrb[0].mxu0
      %v528 = vadd.f32 %v317, %v527
      %v529 = vpop.f32.mrb[0].mxu0
      %530 = vmatprep.mubr.f32.mxu0 0.0
      %531 = vmatmul.mubr.f32.gmra.mrb[0].mxu0 %v351
      %v532 = vpop.f32.mrb[0].mxu0
      %v533 = vadd.f32 %v317, %v532
      %v534 = vpop.f32.mrb[0].mxu0
      %535 = vmatprep.mubr.f32.mxu0 0.0
      %536 = vmatmul.mubr.f32.gmra.mrb[0].mxu0 %v354
      %v537 = vpop.f32.mrb[0].mxu0
      %v538 = vadd.f32 %v317, %v537
      %v539 = vpop.f32.mrb[0].mxu0
      %540 = vmatprep.mubr.f32.mxu0 0.0
      %541 = vmatmul.mubr.f32.gmra.mrb[0].mxu0 %v357
      %v542 = vpop.f32.mrb[0].mxu0
      %v543 = vadd.f32 %v317, %v542
      %v544 = vpop.f32.mrb[0].mxu0
      %545 = vmatprep.mubr.f32.mxu0 0.0
      %546 = vmatmul.mubr.f32.gmra.mrb[0].mxu0 %v360
      %v547 = vpop.f32.mrb[0].mxu0
      %v548 = vadd.f32 %v317, %v547
      %v549 = vpop.f32.mrb[0].mxu0
      %550 = vmatprep.mubr.f32.mxu0 0.0
      %551 = vmatmul.mubr.f32.gmra.mrb[0].mxu0 %v363
      %v552 = vpop.f32.mrb[0].mxu0
      %v553 = vadd.f32 %v317, %v552
      %v554 = vpop.f32.mrb[0].mxu0
      %555 = vmatprep.mubr.f32.mxu0 0.0
      %556 = vmatmul.mubr.f32.gmra.mrb[0].mxu0 %v366
      %v557 = vpop.f32.mrb[0].mxu0
      %v558 = vadd.f32 %v317, %v557
      %v559 = vpop.f32.mrb[0].mxu0
      %560 = vmatprep.mubr.f32.mxu0 0.0
      %561 = vmatmul.mubr.f32.gmra.mrb[0].mxu0 %v369
      %v562 = vpop.f32.mrb[0].mxu0
      %v563 = vadd.f32 %v317, %v562
      %v564 = vpop.f32.mrb[0].mxu0
      %565 = vmatprep.mubr.f32.mxu0 0.0
      %566 = vmatmul.mubr.f32.gmra.mrb[0].mxu0 %v372
      %v567 = vpop.f32.mrb[0].mxu0
      %v568 = vadd.f32 %v317, %v567
      %v569 = vpop.f32.mrb[0].mxu0
      %570 = vmatprep.mubr.f32.mxu0 0.0
      %571 = vmatmul.mubr.f32.gmra.mrb[0].mxu0 %v375
      %v572 = vpop.f32.mrb[0].mxu0
      %v573 = vadd.f32 %v317, %v572
      %v574 = vpop.f32.mrb[0].mxu0
      %575 = vmatprep.mubr.f32.mxu0 0.0
      %576 = vmatmul.mubr.f32.gmra.mrb[0].mxu0 %v378
      %v577 = vpop.f32.mrb[0].mxu0
      %v578 = vadd.f32 %v317, %v577
      %v579 = vpop.f32.mrb[0].mxu0
      %580 = vmatprep.mubr.f32.mxu0 0.0
      %581 = vmatmul.mubr.f32.gmra.mrb[0].mxu0 %v381
      %v582 = vpop.f32.mrb[0].mxu0
      %v583 = vadd.f32 %v317, %v582
      %v584 = vpop.f32.mrb[0].mxu0
      %585 = vmatprep.mubr.f32.mxu0 0.0
      %586 = vmatmul.mubr.f32.gmra.mrb[0].mxu0 %v384
      %v587 = vpop.f32.mrb[0].mxu0
      %v588 = vadd.f32 %v317, %v587
      %v589 = vpop.f32.mrb[0].mxu0
      %590 = vmatprep.mubr.f32.mxu0 0.0
      %591 = vmatmul.mubr.f32.gmra.mrb[0].mxu0 %v387
      %v592 = vpop.f32.mrb[0].mxu0
      %v593 = vadd.f32 %v317, %v592
      %v594 = vpop.f32.mrb[0].mxu0
      %595 = vmatprep.mubr.f32.mxu0 0.0
      %596 = vmatmul.mubr.f32.gmra.mrb[0].mxu0 %v390
      %v597 = vpop.f32.mrb[0].mxu0
      %v598 = vadd.f32 %v317, %v597
      %v599 = vpop.f32.mrb[0].mxu0
      %600 = vmatprep.mubr.f32.mxu0 0.0
      %601 = vmatmul.mubr.f32.gmra.mrb[0].mxu0 %v393
      %v602 = vpop.f32.mrb[0].mxu0
      %v603 = vadd.f32 %v317, %v602
      %v604 = vpop.f32.mrb[0].mxu0
      %605 = vmatprep.mubr.f32.mxu0 0.0
      %606 = vmatmul.mubr.f32.gmra.mrb[0].mxu0 %v396
      %v607 = vpop.f32.mrb[0].mxu0
      %v608 = vadd.f32 %v317, %v607
      %v609 = vpop.f32.mrb[0].mxu0
      %610 = vmatprep.mubr.f32.mxu0 0.0
      %611 = vmatmul.mubr.f32.gmra.mrb[0].mxu0 %v399
      %v612 = vpop.f32.mrb[0].mxu0
      %v613 = vadd.f32 %v317, %v612
      %v614 = vpop.f32.mrb[0].mxu0
      %615 = vmatprep.mubr.f32.mxu0 0.0
      %616 = vmatmul.mubr.f32.gmra.mrb[0].mxu0 %v402
      %v617 = vpop.f32.mrb[0].mxu0
      %v618 = vadd.f32 %v317, %v617
      %v619 = vpop.f32.mrb[0].mxu0
      %620 = vmatprep.mubr.f32.mxu0 0.0
      %621 = vmatmul.mubr.f32.gmra.mrb[0].mxu0 %v405
      %v622 = vpop.f32.mrb[0].mxu0
      %v623 = vadd.f32 %v317, %v622
      %v624 = vpop.f32.mrb[0].mxu0
      %625 = vmatprep.mubr.f32.mxu0 0.0
      %626 = vmatmul.mubr.f32.gmra.mrb[0].mxu0 %v408
      %v627 = vpop.f32.mrb[0].mxu0
      %v628 = vadd.f32 %v317, %v627
      %v629 = vpop.f32.mrb[0].mxu0
      %630 = vmatprep.mubr.f32.mxu0 0.0
      %631 = vmatmul.mubr.f32.gmra.mrb[0].mxu0 %v411
      %v632 = vpop.f32.mrb[0].mxu0
      %v633 = vadd.f32 %v317, %v632
      %v634 = vpop.f32.mrb[0].mxu0
      %635 = vmatprep.mubr.f32.mxu0 0.0
      %636 = vmatmul.mubr.f32.gmra.mrb[0].mxu0 %v414
      %v637 = vpop.f32.mrb[0].mxu0
      %v638 = vadd.f32 %v317, %v637
      %v639 = vpop.f32.mrb[0].mxu0
      %640 = vdwg.mxu0
      %v641 = vmax.f32 %v483, 0.0
      %v642 = vmax.f32 %v488, 0.0
      %v643 = vmax.f32 %v493, 0.0
      %v644 = vmax.f32 %v498, 0.0
      %v645 = vmax.f32 %v503, 0.0
      %v646 = vmax.f32 %v508, 0.0
      %v647 = vmax.f32 %v513, 0.0
      %v648 = vmax.f32 %v518, 0.0
      %v649 = vmax.f32 %v523, 0.0
      %v650 = vmax.f32 %v528, 0.0
      %v651 = vmax.f32 %v533, 0.0
      %v652 = vmax.f32 %v538, 0.0
      %v653 = vmax.f32 %v543, 0.0
      %v654 = vmax.f32 %v548, 0.0
      %v655 = vmax.f32 %v553, 0.0
      %v656 = vmax.f32 %v558, 0.0
      %v657 = vmax.f32 %v563, 0.0
      %v658 = vmax.f32 %v568, 0.0
      %v659 = vmax.f32 %v573, 0.0
      %v660 = vmax.f32 %v578, 0.0
      %v661 = vmax.f32 %v583, 0.0
      %v662 = vmax.f32 %v588, 0.0
      %v663 = vmax.f32 %v593, 0.0
      %v664 = vmax.f32 %v598, 0.0
      %v665 = vmax.f32 %v603, 0.0
      %v666 = vmax.f32 %v608, 0.0
      %v667 = vmax.f32 %v613, 0.0
      %v668 = vmax.f32 %v618, 0.0
      %v669 = vmax.f32 %v623, 0.0
      %v670 = vmax.f32 %v628, 0.0
      %v671 = vmax.f32 %v633, 0.0
      %v672 = vmax.f32 %v638, 0.0
      %673 = vst [vmem:[#allocation2] sm:$0xff] 0.0
      %674 = vst [vmem:[#allocation2 + $0x8] sm:$0xff] 0.0
      %675 = vst [vmem:[#allocation2 + $0x10] sm:$0x3] 0.0
      %s676 = scalar_lea.vmem [#allocation2], 408
      %677 = vst [vmem:[%s676] sm:$0xff] 0.0
      %678 = vst [vmem:[%s676 + $0x8] sm:$0xff] 0.0
      %679 = vst [vmem:[%s676 + $0x10] sm:$0x3] 0.0
      %680 = vst [vmem:[#allocation2] sm:$0x1] 0.0
      %681 = vst [vmem:[#allocation2 + $0x18] sm:$0x1] 0.0
      %682 = vst [vmem:[#allocation2 + $0x30] sm:$0x1] 0.0
      %683 = vst [vmem:[#allocation2 + $0x48] sm:$0x1] 0.0
      %684 = vst [vmem:[#allocation2 + $0x60] sm:$0x1] 0.0
      %685 = vst [vmem:[#allocation2 + $0x78] sm:$0x1] 0.0
      %686 = vst [vmem:[#allocation2 + $0x90] sm:$0x1] 0.0
      %687 = vst [vmem:[#allocation2 + $0xa8] sm:$0x1] 0.0
      %688 = vst [vmem:[#allocation2 + $0xc0] sm:$0x1] 0.0
      %689 = vst [vmem:[#allocation2 + $0xd8] sm:$0x1] 0.0
      %690 = vst [vmem:[#allocation2 + $0xf0] sm:$0x1] 0.0
      %691 = vst [vmem:[#allocation2 + $0x108] sm:$0x1] 0.0
      %692 = vst [vmem:[#allocation2 + $0x120] sm:$0x1] 0.0
      %693 = vst [vmem:[#allocation2 + $0x138] sm:$0x1] 0.0
      %694 = vst [vmem:[#allocation2 + $0x150] sm:$0x1] 0.0
      %695 = vst [vmem:[#allocation2 + $0x168] sm:$0x1] 0.0
      %696 = vst [vmem:[#allocation2 + $0x180] sm:$0x1] 0.0
      %697 = vst [vmem:[#allocation2 + $0x198] sm:$0x1] 0.0
      %698 = vst [vmem:[#allocation2 + $0x11] sm:$0x1] 0.0
      %699 = vst [vmem:[#allocation2 + $0x29] sm:$0x1] 0.0
      %700 = vst [vmem:[#allocation2 + $0x41] sm:$0x1] 0.0
      %701 = vst [vmem:[#allocation2 + $0x59] sm:$0x1] 0.0
      %702 = vst [vmem:[#allocation2 + $0x71] sm:$0x1] 0.0
      %703 = vst [vmem:[#allocation2 + $0x89] sm:$0x1] 0.0
      %704 = vst [vmem:[#allocation2 + $0xa1] sm:$0x1] 0.0
      %705 = vst [vmem:[#allocation2 + $0xb9] sm:$0x1] 0.0
      %706 = vst [vmem:[#allocation2 + $0xd1] sm:$0x1] 0.0
      %707 = vst [vmem:[#allocation2 + $0xe9] sm:$0x1] 0.0
      %708 = vst [vmem:[#allocation2 + $0x101] sm:$0x1] 0.0
      %709 = vst [vmem:[#allocation2 + $0x119] sm:$0x1] 0.0
      %710 = vst [vmem:[#allocation2 + $0x131] sm:$0x1] 0.0
      %711 = vst [vmem:[#allocation2 + $0x149] sm:$0x1] 0.0
      %712 = vst [vmem:[#allocation2 + $0x161] sm:$0x1] 0.0
      %713 = vst [vmem:[#allocation2 + $0x179] sm:$0x1] 0.0
      %714 = vst [vmem:[#allocation2 + $0x191] sm:$0x1] 0.0
      %715 = vst [vmem:[#allocation2 + $0x1a9] sm:$0x1] 0.0
      %s716 = scalar_lea.vmem [#allocation2], 24
      %717 = vst [vmem:[%s716 + $0x1] sm:$0xff] %v641
      %718 = vst [vmem:[%s716 + $0x9] sm:$0xff] %v642
      %719 = vst [vmem:[%s716 + $0x19] sm:$0xff] %v643
      %720 = vst [vmem:[%s716 + $0x21] sm:$0xff] %v644
      %721 = vst [vmem:[%s716 + $0x31] sm:$0xff] %v645
      %722 = vst [vmem:[%s716 + $0x39] sm:$0xff] %v646
      %723 = vst [vmem:[%s716 + $0x49] sm:$0xff] %v647
      %724 = vst [vmem:[%s716 + $0x51] sm:$0xff] %v648
      %725 = vst [vmem:[%s716 + $0x61] sm:$0xff] %v649
      %726 = vst [vmem:[%s716 + $0x69] sm:$0xff] %v650
      %727 = vst [vmem:[%s716 + $0x79] sm:$0xff] %v651
      %728 = vst [vmem:[%s716 + $0x81] sm:$0xff] %v652
      %729 = vst [vmem:[%s716 + $0x91] sm:$0xff] %v653
      %730 = vst [vmem:[%s716 + $0x99] sm:$0xff] %v654
      %731 = vst [vmem:[%s716 + $0xa9] sm:$0xff] %v655
      %732 = vst [vmem:[%s716 + $0xb1] sm:$0xff] %v656
      %733 = vst [vmem:[%s716 + $0xc1] sm:$0xff] %v657
      %734 = vst [vmem:[%s716 + $0xc9] sm:$0xff] %v658
      %735 = vst [vmem:[%s716 + $0xd9] sm:$0xff] %v659
      %736 = vst [vmem:[%s716 + $0xe1] sm:$0xff] %v660
      %737 = vst [vmem:[%s716 + $0xf1] sm:$0xff] %v661
      %738 = vst [vmem:[%s716 + $0xf9] sm:$0xff] %v662
      %739 = vst [vmem:[%s716 + $0x109] sm:$0xff] %v663
      %740 = vst [vmem:[%s716 + $0x111] sm:$0xff] %v664
      %741 = vst [vmem:[%s716 + $0x121] sm:$0xff] %v665
      %742 = vst [vmem:[%s716 + $0x129] sm:$0xff] %v666
      %743 = vst [vmem:[%s716 + $0x139] sm:$0xff] %v667
      %744 = vst [vmem:[%s716 + $0x141] sm:$0xff] %v668
      %745 = vst [vmem:[%s716 + $0x151] sm:$0xff] %v669
      %746 = vst [vmem:[%s716 + $0x159] sm:$0xff] %v670
      %747 = vst [vmem:[%s716 + $0x169] sm:$0xff] %v671
      %748 = vst [vmem:[%s716 + $0x171] sm:$0xff] %v672
      %v749 = vld [vmem:[#allocation2] sm:$0xff]
      %v750 = vld [vmem:[#allocation2 + $0x8] sm:$0xff]
      %v751 = vld [vmem:[#allocation2 + $0x18] sm:$0xff]
      %v752 = vld [vmem:[#allocation2 + $0x20] sm:$0xff]
      %v753 = vld [vmem:[#allocation2 + $0x30] sm:$0xff]
      %v754 = vld [vmem:[#allocation2 + $0x38] sm:$0xff]
      %v755 = vld [vmem:[#allocation2 + $0x48] sm:$0xff]
      %v756 = vld [vmem:[#allocation2 + $0x50] sm:$0xff]
      %v757 = vld [vmem:[#allocation2 + $0x60] sm:$0xff]
      %v758 = vld [vmem:[#allocation2 + $0x68] sm:$0xff]
      %v759 = vld [vmem:[#allocation2 + $0x78] sm:$0xff]
      %v760 = vld [vmem:[#allocation2 + $0x80] sm:$0xff]
      %v761 = vld [vmem:[#allocation2 + $0x90] sm:$0xff]
      %v762 = vld [vmem:[#allocation2 + $0x98] sm:$0xff]
      %v763 = vld [vmem:[#allocation2 + $0xa8] sm:$0xff]
      %v764 = vld [vmem:[#allocation2 + $0xb0] sm:$0xff]
      %v765 = vld [vmem:[#allocation2 + $0xc0] sm:$0xff]
      %v766 = vld [vmem:[#allocation2 + $0xc8] sm:$0xff]
      %v767 = vld [vmem:[#allocation2 + $0xd8] sm:$0xff]
      %v768 = vld [vmem:[#allocation2 + $0xe0] sm:$0xff]
      %v769 = vld [vmem:[#allocation2 + $0xf0] sm:$0xff]
      %v770 = vld [vmem:[#allocation2 + $0xf8] sm:$0xff]
      %v771 = vld [vmem:[#allocation2 + $0x108] sm:$0xff]
      %v772 = vld [vmem:[#allocation2 + $0x110] sm:$0xff]
      %v773 = vld [vmem:[#allocation2 + $0x120] sm:$0xff]
      %v774 = vld [vmem:[#allocation2 + $0x128] sm:$0xff]
      %v775 = vld [vmem:[#allocation2 + $0x138] sm:$0xff]
      %v776 = vld [vmem:[#allocation2 + $0x140] sm:$0xff]
      %v777 = vld [vmem:[#allocation2 + $0x150] sm:$0xff]
      %v778 = vld [vmem:[#allocation2 + $0x158] sm:$0xff]
      %v779 = vld [vmem:[#allocation2 + $0x168] sm:$0xff]
      %v780 = vld [vmem:[#allocation2 + $0x170] sm:$0xff]
      %v781 = vld [vmem:[#allocation2 + $0x1] sm:$0xff]
      %v782 = vld [vmem:[#allocation2 + $0x9] sm:$0xff]
      %v783 = vld [vmem:[#allocation2 + $0x19] sm:$0xff]
      %v784 = vld [vmem:[#allocation2 + $0x21] sm:$0xff]
      %v785 = vld [vmem:[#allocation2 + $0x31] sm:$0xff]
      %v786 = vld [vmem:[#allocation2 + $0x39] sm:$0xff]
      %v787 = vld [vmem:[#allocation2 + $0x49] sm:$0xff]
      %v788 = vld [vmem:[#allocation2 + $0x51] sm:$0xff]
      %v789 = vld [vmem:[#allocation2 + $0x61] sm:$0xff]
      %v790 = vld [vmem:[#allocation2 + $0x69] sm:$0xff]
      %v791 = vld [vmem:[#allocation2 + $0x79] sm:$0xff]
      %v792 = vld [vmem:[#allocation2 + $0x81] sm:$0xff]
      %v793 = vld [vmem:[#allocation2 + $0x91] sm:$0xff]
      %v794 = vld [vmem:[#allocation2 + $0x99] sm:$0xff]
      %v795 = vld [vmem:[#allocation2 + $0xa9] sm:$0xff]
      %v796 = vld [vmem:[#allocation2 + $0xb1] sm:$0xff]
      %v797 = vld [vmem:[#allocation2 + $0xc1] sm:$0xff]
      %v798 = vld [vmem:[#allocation2 + $0xc9] sm:$0xff]
      %v799 = vld [vmem:[#allocation2 + $0xd9] sm:$0xff]
      %v800 = vld [vmem:[#allocation2 + $0xe1] sm:$0xff]
      %v801 = vld [vmem:[#allocation2 + $0xf1] sm:$0xff]
      %v802 = vld [vmem:[#allocation2 + $0xf9] sm:$0xff]
      %v803 = vld [vmem:[#allocation2 + $0x109] sm:$0xff]
      %v804 = vld [vmem:[#allocation2 + $0x111] sm:$0xff]
      %v805 = vld [vmem:[#allocation2 + $0x121] sm:$0xff]
      %v806 = vld [vmem:[#allocation2 + $0x129] sm:$0xff]
      %v807 = vld [vmem:[#allocation2 + $0x139] sm:$0xff]
      %v808 = vld [vmem:[#allocation2 + $0x141] sm:$0xff]
      %v809 = vld [vmem:[#allocation2 + $0x151] sm:$0xff]
      %v810 = vld [vmem:[#allocation2 + $0x159] sm:$0xff]
      %v811 = vld [vmem:[#allocation2 + $0x169] sm:$0xff]
      %v812 = vld [vmem:[#allocation2 + $0x171] sm:$0xff]
      %v813 = vld [vmem:[#allocation2 + $0x2] sm:$0xff]
      %v814 = vld [vmem:[#allocation2 + $0xa] sm:$0xff]
      %v815 = vld [vmem:[#allocation2 + $0x1a] sm:$0xff]
      %v816 = vld [vmem:[#allocation2 + $0x22] sm:$0xff]
      %v817 = vld [vmem:[#allocation2 + $0x32] sm:$0xff]
      %v818 = vld [vmem:[#allocation2 + $0x3a] sm:$0xff]
      %v819 = vld [vmem:[#allocation2 + $0x4a] sm:$0xff]
      %v820 = vld [vmem:[#allocation2 + $0x52] sm:$0xff]
      %v821 = vld [vmem:[#allocation2 + $0x62] sm:$0xff]
      %v822 = vld [vmem:[#allocation2 + $0x6a] sm:$0xff]
      %v823 = vld [vmem:[#allocation2 + $0x7a] sm:$0xff]
      %v824 = vld [vmem:[#allocation2 + $0x82] sm:$0xff]
      %v825 = vld [vmem:[#allocation2 + $0x92] sm:$0xff]
      %v826 = vld [vmem:[#allocation2 + $0x9a] sm:$0xff]
      %v827 = vld [vmem:[#allocation2 + $0xaa] sm:$0xff]
      %v828 = vld [vmem:[#allocation2 + $0xb2] sm:$0xff]
      %v829 = vld [vmem:[#allocation2 + $0xc2] sm:$0xff]
      %v830 = vld [vmem:[#allocation2 + $0xca] sm:$0xff]
      %v831 = vld [vmem:[#allocation2 + $0xda] sm:$0xff]
      %v832 = vld [vmem:[#allocation2 + $0xe2] sm:$0xff]
      %v833 = vld [vmem:[#allocation2 + $0xf2] sm:$0xff]
      %v834 = vld [vmem:[#allocation2 + $0xfa] sm:$0xff]
      %v835 = vld [vmem:[#allocation2 + $0x10a] sm:$0xff]
      %v836 = vld [vmem:[#allocation2 + $0x112] sm:$0xff]
      %v837 = vld [vmem:[#allocation2 + $0x122] sm:$0xff]
      %v838 = vld [vmem:[#allocation2 + $0x12a] sm:$0xff]
      %v839 = vld [vmem:[#allocation2 + $0x13a] sm:$0xff]
      %v840 = vld [vmem:[#allocation2 + $0x142] sm:$0xff]
      %v841 = vld [vmem:[#allocation2 + $0x152] sm:$0xff]
      %v842 = vld [vmem:[#allocation2 + $0x15a] sm:$0xff]
      %v843 = vld [vmem:[#allocation2 + $0x16a] sm:$0xff]
      %v844 = vld [vmem:[#allocation2 + $0x172] sm:$0xff]
      %v845 = vld [vmem:[%s716] sm:$0xff]
      %v846 = vld [vmem:[%s716 + $0x8] sm:$0xff]
      %v847 = vld [vmem:[%s716 + $0x18] sm:$0xff]
      %v848 = vld [vmem:[%s716 + $0x20] sm:$0xff]
      %v849 = vld [vmem:[%s716 + $0x30] sm:$0xff]
      %v850 = vld [vmem:[%s716 + $0x38] sm:$0xff]
      %v851 = vld [vmem:[%s716 + $0x48] sm:$0xff]
      %v852 = vld [vmem:[%s716 + $0x50] sm:$0xff]
      %v853 = vld [vmem:[%s716 + $0x60] sm:$0xff]
      %v854 = vld [vmem:[%s716 + $0x68] sm:$0xff]
      %v855 = vld [vmem:[%s716 + $0x78] sm:$0xff]
      %v856 = vld [vmem:[%s716 + $0x80] sm:$0xff]
      %v857 = vld [vmem:[%s716 + $0x90] sm:$0xff]
      %v858 = vld [vmem:[%s716 + $0x98] sm:$0xff]
      %v859 = vld [vmem:[%s716 + $0xa8] sm:$0xff]
      %v860 = vld [vmem:[%s716 + $0xb0] sm:$0xff]
      %v861 = vld [vmem:[%s716 + $0xc0] sm:$0xff]
      %v862 = vld [vmem:[%s716 + $0xc8] sm:$0xff]
      %v863 = vld [vmem:[%s716 + $0xd8] sm:$0xff]
      %v864 = vld [vmem:[%s716 + $0xe0] sm:$0xff]
      %v865 = vld [vmem:[%s716 + $0xf0] sm:$0xff]
      %v866 = vld [vmem:[%s716 + $0xf8] sm:$0xff]
      %v867 = vld [vmem:[%s716 + $0x108] sm:$0xff]
      %v868 = vld [vmem:[%s716 + $0x110] sm:$0xff]
      %v869 = vld [vmem:[%s716 + $0x120] sm:$0xff]
      %v870 = vld [vmem:[%s716 + $0x128] sm:$0xff]
      %v871 = vld [vmem:[%s716 + $0x138] sm:$0xff]
      %v872 = vld [vmem:[%s716 + $0x140] sm:$0xff]
      %v873 = vld [vmem:[%s716 + $0x150] sm:$0xff]
      %v874 = vld [vmem:[%s716 + $0x158] sm:$0xff]
      %v875 = vld [vmem:[%s716 + $0x168] sm:$0xff]
      %v876 = vld [vmem:[%s716 + $0x170] sm:$0xff]
      %v877 = vld [vmem:[%s716 + $0x1] sm:$0xff]
      %v878 = vld [vmem:[%s716 + $0x9] sm:$0xff]
      %v879 = vld [vmem:[%s716 + $0x19] sm:$0xff]
      %v880 = vld [vmem:[%s716 + $0x21] sm:$0xff]
      %v881 = vld [vmem:[%s716 + $0x31] sm:$0xff]
      %v882 = vld [vmem:[%s716 + $0x39] sm:$0xff]
      %v883 = vld [vmem:[%s716 + $0x49] sm:$0xff]
      %v884 = vld [vmem:[%s716 + $0x51] sm:$0xff]
      %v885 = vld [vmem:[%s716 + $0x61] sm:$0xff]
      %v886 = vld [vmem:[%s716 + $0x69] sm:$0xff]
      %v887 = vld [vmem:[%s716 + $0x79] sm:$0xff]
      %v888 = vld [vmem:[%s716 + $0x81] sm:$0xff]
      %v889 = vld [vmem:[%s716 + $0x91] sm:$0xff]
      %v890 = vld [vmem:[%s716 + $0x99] sm:$0xff]
      %v891 = vld [vmem:[%s716 + $0xa9] sm:$0xff]
      %v892 = vld [vmem:[%s716 + $0xb1] sm:$0xff]
      %v893 = vld [vmem:[%s716 + $0xc1] sm:$0xff]
      %v894 = vld [vmem:[%s716 + $0xc9] sm:$0xff]
      %v895 = vld [vmem:[%s716 + $0xd9] sm:$0xff]
      %v896 = vld [vmem:[%s716 + $0xe1] sm:$0xff]
      %v897 = vld [vmem:[%s716 + $0xf1] sm:$0xff]
      %v898 = vld [vmem:[%s716 + $0xf9] sm:$0xff]
      %v899 = vld [vmem:[%s716 + $0x109] sm:$0xff]
      %v900 = vld [vmem:[%s716 + $0x111] sm:$0xff]
      %v901 = vld [vmem:[%s716 + $0x121] sm:$0xff]
      %v902 = vld [vmem:[%s716 + $0x129] sm:$0xff]
      %v903 = vld [vmem:[%s716 + $0x139] sm:$0xff]
      %v904 = vld [vmem:[%s716 + $0x141] sm:$0xff]
      %v905 = vld [vmem:[%s716 + $0x151] sm:$0xff]
      %v906 = vld [vmem:[%s716 + $0x159] sm:$0xff]
      %v907 = vld [vmem:[%s716 + $0x169] sm:$0xff]
      %v908 = vld [vmem:[%s716 + $0x171] sm:$0xff]
      %v909 = vld [vmem:[%s716 + $0x2] sm:$0xff]
      %v910 = vld [vmem:[%s716 + $0xa] sm:$0xff]
      %v911 = vld [vmem:[%s716 + $0x1a] sm:$0xff]
      %v912 = vld [vmem:[%s716 + $0x22] sm:$0xff]
      %v913 = vld [vmem:[%s716 + $0x32] sm:$0xff]
      %v914 = vld [vmem:[%s716 + $0x3a] sm:$0xff]
      %v915 = vld [vmem:[%s716 + $0x4a] sm:$0xff]
      %v916 = vld [vmem:[%s716 + $0x52] sm:$0xff]
      %v917 = vld [vmem:[%s716 + $0x62] sm:$0xff]
      %v918 = vld [vmem:[%s716 + $0x6a] sm:$0xff]
      %v919 = vld [vmem:[%s716 + $0x7a] sm:$0xff]
      %v920 = vld [vmem:[%s716 + $0x82] sm:$0xff]
      %v921 = vld [vmem:[%s716 + $0x92] sm:$0xff]
      %v922 = vld [vmem:[%s716 + $0x9a] sm:$0xff]
      %v923 = vld [vmem:[%s716 + $0xaa] sm:$0xff]
      %v924 = vld [vmem:[%s716 + $0xb2] sm:$0xff]
      %v925 = vld [vmem:[%s716 + $0xc2] sm:$0xff]
      %v926 = vld [vmem:[%s716 + $0xca] sm:$0xff]
      %v927 = vld [vmem:[%s716 + $0xda] sm:$0xff]
      %v928 = vld [vmem:[%s716 + $0xe2] sm:$0xff]
      %v929 = vld [vmem:[%s716 + $0xf2] sm:$0xff]
      %v930 = vld [vmem:[%s716 + $0xfa] sm:$0xff]
      %v931 = vld [vmem:[%s716 + $0x10a] sm:$0xff]
      %v932 = vld [vmem:[%s716 + $0x112] sm:$0xff]
      %v933 = vld [vmem:[%s716 + $0x122] sm:$0xff]
      %v934 = vld [vmem:[%s716 + $0x12a] sm:$0xff]
      %v935 = vld [vmem:[%s716 + $0x13a] sm:$0xff]
      %v936 = vld [vmem:[%s716 + $0x142] sm:$0xff]
      %v937 = vld [vmem:[%s716 + $0x152] sm:$0xff]
      %v938 = vld [vmem:[%s716 + $0x15a] sm:$0xff]
      %v939 = vld [vmem:[%s716 + $0x16a] sm:$0xff]
      %v940 = vld [vmem:[%s716 + $0x172] sm:$0xff]
      %s941 = scalar_lea.vmem [#allocation2], 48
      %v942 = vld [vmem:[%s941] sm:$0xff]
      %v943 = vld [vmem:[%s941 + $0x8] sm:$0xff]
      %v944 = vld [vmem:[%s941 + $0x18] sm:$0xff]
      %v945 = vld [vmem:[%s941 + $0x20] sm:$0xff]
      %v946 = vld [vmem:[%s941 + $0x30] sm:$0xff]
      %v947 = vld [vmem:[%s941 + $0x38] sm:$0xff]
      %v948 = vld [vmem:[%s941 + $0x48] sm:$0xff]
      %v949 = vld [vmem:[%s941 + $0x50] sm:$0xff]
      %v950 = vld [vmem:[%s941 + $0x60] sm:$0xff]
      %v951 = vld [vmem:[%s941 + $0x68] sm:$0xff]
      %v952 = vld [vmem:[%s941 + $0x78] sm:$0xff]
      %v953 = vld [vmem:[%s941 + $0x80] sm:$0xff]
      %v954 = vld [vmem:[%s941 + $0x90] sm:$0xff]
      %v955 = vld [vmem:[%s941 + $0x98] sm:$0xff]
      %v956 = vld [vmem:[%s941 + $0xa8] sm:$0xff]
      %v957 = vld [vmem:[%s941 + $0xb0] sm:$0xff]
      %v958 = vld [vmem:[%s941 + $0xc0] sm:$0xff]
      %v959 = vld [vmem:[%s941 + $0xc8] sm:$0xff]
      %v960 = vld [vmem:[%s941 + $0xd8] sm:$0xff]
      %v961 = vld [vmem:[%s941 + $0xe0] sm:$0xff]
      %v962 = vld [vmem:[%s941 + $0xf0] sm:$0xff]
      %v963 = vld [vmem:[%s941 + $0xf8] sm:$0xff]
      %v964 = vld [vmem:[%s941 + $0x108] sm:$0xff]
      %v965 = vld [vmem:[%s941 + $0x110] sm:$0xff]
      %v966 = vld [vmem:[%s941 + $0x120] sm:$0xff]
      %v967 = vld [vmem:[%s941 + $0x128] sm:$0xff]
      %v968 = vld [vmem:[%s941 + $0x138] sm:$0xff]
      %v969 = vld [vmem:[%s941 + $0x140] sm:$0xff]
      %v970 = vld [vmem:[%s941 + $0x150] sm:$0xff]
      %v971 = vld [vmem:[%s941 + $0x158] sm:$0xff]
      %v972 = vld [vmem:[%s941 + $0x168] sm:$0xff]
      %v973 = vld [vmem:[%s941 + $0x170] sm:$0xff]
      %v974 = vld [vmem:[%s941 + $0x1] sm:$0xff]
      %v975 = vld [vmem:[%s941 + $0x9] sm:$0xff]
      %v976 = vld [vmem:[%s941 + $0x19] sm:$0xff]
      %v977 = vld [vmem:[%s941 + $0x21] sm:$0xff]
      %v978 = vld [vmem:[%s941 + $0x31] sm:$0xff]
      %v979 = vld [vmem:[%s941 + $0x39] sm:$0xff]
      %v980 = vld [vmem:[%s941 + $0x49] sm:$0xff]
      %v981 = vld [vmem:[%s941 + $0x51] sm:$0xff]
      %v982 = vld [vmem:[%s941 + $0x61] sm:$0xff]
      %v983 = vld [vmem:[%s941 + $0x69] sm:$0xff]
      %v984 = vld [vmem:[%s941 + $0x79] sm:$0xff]
      %v985 = vld [vmem:[%s941 + $0x81] sm:$0xff]
      %v986 = vld [vmem:[%s941 + $0x91] sm:$0xff]
      %v987 = vld [vmem:[%s941 + $0x99] sm:$0xff]
      %v988 = vld [vmem:[%s941 + $0xa9] sm:$0xff]
      %v989 = vld [vmem:[%s941 + $0xb1] sm:$0xff]
      %v990 = vld [vmem:[%s941 + $0xc1] sm:$0xff]
      %v991 = vld [vmem:[%s941 + $0xc9] sm:$0xff]
      %v992 = vld [vmem:[%s941 + $0xd9] sm:$0xff]
      %v993 = vld [vmem:[%s941 + $0xe1] sm:$0xff]
      %v994 = vld [vmem:[%s941 + $0xf1] sm:$0xff]
      %v995 = vld [vmem:[%s941 + $0xf9] sm:$0xff]
      %v996 = vld [vmem:[%s941 + $0x109] sm:$0xff]
      %v997 = vld [vmem:[%s941 + $0x111] sm:$0xff]
      %v998 = vld [vmem:[%s941 + $0x121] sm:$0xff]
      %v999 = vld [vmem:[%s941 + $0x129] sm:$0xff]
      %v1000 = vld [vmem:[%s941 + $0x139] sm:$0xff]
      %v1001 = vld [vmem:[%s941 + $0x141] sm:$0xff]
      %v1002 = vld [vmem:[%s941 + $0x151] sm:$0xff]
      %v1003 = vld [vmem:[%s941 + $0x159] sm:$0xff]
      %v1004 = vld [vmem:[%s941 + $0x169] sm:$0xff]
      %v1005 = vld [vmem:[%s941 + $0x171] sm:$0xff]
      %v1006 = vld [vmem:[%s941 + $0x2] sm:$0xff]
      %v1007 = vld [vmem:[%s941 + $0xa] sm:$0xff]
      %v1008 = vld [vmem:[%s941 + $0x1a] sm:$0xff]
      %v1009 = vld [vmem:[%s941 + $0x22] sm:$0xff]
      %v1010 = vld [vmem:[%s941 + $0x32] sm:$0xff]
      %v1011 = vld [vmem:[%s941 + $0x3a] sm:$0xff]
      %v1012 = vld [vmem:[%s941 + $0x4a] sm:$0xff]
      %v1013 = vld [vmem:[%s941 + $0x52] sm:$0xff]
      %v1014 = vld [vmem:[%s941 + $0x62] sm:$0xff]
      %v1015 = vld [vmem:[%s941 + $0x6a] sm:$0xff]
      %v1016 = vld [vmem:[%s941 + $0x7a] sm:$0xff]
      %v1017 = vld [vmem:[%s941 + $0x82] sm:$0xff]
      %v1018 = vld [vmem:[%s941 + $0x92] sm:$0xff]
      %v1019 = vld [vmem:[%s941 + $0x9a] sm:$0xff]
      %v1020 = vld [vmem:[%s941 + $0xaa] sm:$0xff]
      %v1021 = vld [vmem:[%s941 + $0xb2] sm:$0xff]
      %v1022 = vld [vmem:[%s941 + $0xc2] sm:$0xff]
      %v1023 = vld [vmem:[%s941 + $0xca] sm:$0xff]
      %v1024 = vld [vmem:[%s941 + $0xda] sm:$0xff]
      %v1025 = vld [vmem:[%s941 + $0xe2] sm:$0xff]
      %v1026 = vld [vmem:[%s941 + $0xf2] sm:$0xff]
      %v1027 = vld [vmem:[%s941 + $0xfa] sm:$0xff]
      %v1028 = vld [vmem:[%s941 + $0x10a] sm:$0xff]
      %v1029 = vld [vmem:[%s941 + $0x112] sm:$0xff]
      %v1030 = vld [vmem:[%s941 + $0x122] sm:$0xff]
      %v1031 = vld [vmem:[%s941 + $0x12a] sm:$0xff]
      %v1032 = vld [vmem:[%s941 + $0x13a] sm:$0xff]
      %v1033 = vld [vmem:[%s941 + $0x142] sm:$0xff]
      %v1034 = vld [vmem:[%s941 + $0x152] sm:$0xff]
      %v1035 = vld [vmem:[%s941 + $0x15a] sm:$0xff]
      %v1036 = vld [vmem:[%s941 + $0x16a] sm:$0xff]
      %v1037 = vld [vmem:[%s941 + $0x172] sm:$0xff]
      %v1038 = vld [vmem:[%s3] sm:$0xff]
      %v1039 = vld [vmem:[%s3 + $0x8] sm:$0xff]
      %v1040 = vld [vmem:[%s3 + $0x10] sm:$0xff]
      %v1041 = vld [vmem:[%s3 + $0x18] sm:$0xff]
      %v1042 = vld [vmem:[%s3 + $0x20] sm:$0xff]
      %v1043 = vld [vmem:[%s3 + $0x28] sm:$0xff]
      %v1044 = vld [vmem:[%s3 + $0x30] sm:$0xff]
      %v1045 = vld [vmem:[%s3 + $0x38] sm:$0xff]
      %v1046 = vld [vmem:[%s3 + $0x40] sm:$0xff]
      %v1047 = vld [vmem:[%s3 + $0x48] sm:$0xff]
      %v1048 = vld [vmem:[%s3 + $0x50] sm:$0xff]
      %v1049 = vld [vmem:[%s3 + $0x58] sm:$0xff]
      %v1050 = vld [vmem:[%s3 + $0x60] sm:$0xff]
      %v1051 = vld [vmem:[%s3 + $0x68] sm:$0xff]
      %v1052 = vld [vmem:[%s3 + $0x70] sm:$0xff]
      %v1053 = vld [vmem:[%s3 + $0x78] sm:$0xff]
      %v1054 = vld [vmem:[%s3 + $0x80] sm:$0xff]
      %v1055 = vld [vmem:[%s3 + $0x88] sm:$0xff]
      %v1056 = vld [vmem:[%s3 + $0x90] sm:$0xff]
      %v1057 = vld [vmem:[%s3 + $0x98] sm:$0xff]
      %v1058 = vld [vmem:[%s3 + $0xa0] sm:$0xff]
      %v1059 = vld [vmem:[%s3 + $0xa8] sm:$0xff]
      %v1060 = vld [vmem:[%s3 + $0xb0] sm:$0xff]
      %v1061 = vld [vmem:[%s3 + $0xb8] sm:$0xff]
      %v1062 = vld [vmem:[%s3 + $0xc0] sm:$0xff]
      %v1063 = vld [vmem:[%s3 + $0xc8] sm:$0xff]
      %v1064 = vld [vmem:[%s3 + $0xd0] sm:$0xff]
      %v1065 = vld [vmem:[%s3 + $0xd8] sm:$0xff]
      %v1066 = vld [vmem:[%s3 + $0xe0] sm:$0xff]
      %v1067 = vld [vmem:[%s3 + $0xe8] sm:$0xff]
      %v1068 = vld [vmem:[%s3 + $0xf0] sm:$0xff]
      %v1069 = vld [vmem:[%s3 + $0xf8] sm:$0xff]
      %v1070 = vld [vmem:[%s3 + $0x100] sm:$0xff]
      %v1071 = vld [vmem:[%s3 + $0x108] sm:$0xff]
      %v1072 = vld [vmem:[%s3 + $0x110] sm:$0xff]
      %v1073 = vld [vmem:[%s3 + $0x118] sm:$0xff]
      %v1074 = vld [vmem:[%s3 + $0x120] sm:$0xff]
      %v1075 = vld [vmem:[%s3 + $0x128] sm:$0xff]
      %v1076 = vld [vmem:[%s3 + $0x130] sm:$0xff]
      %v1077 = vld [vmem:[%s3 + $0x138] sm:$0xff]
      %v1078 = vld [vmem:[%s3 + $0x140] sm:$0xff]
      %v1079 = vld [vmem:[%s3 + $0x148] sm:$0xff]
      %v1080 = vld [vmem:[%s3 + $0x150] sm:$0xff]
      %v1081 = vld [vmem:[%s3 + $0x158] sm:$0xff]
      %v1082 = vld [vmem:[%s3 + $0x160] sm:$0xff]
      %v1083 = vld [vmem:[%s3 + $0x168] sm:$0xff]
      %v1084 = vld [vmem:[%s3 + $0x170] sm:$0xff]
      %v1085 = vld [vmem:[%s3 + $0x178] sm:$0xff]
      %v1086 = vld [vmem:[%s3 + $0x180] sm:$0xff]
      %v1087 = vld [vmem:[%s3 + $0x188] sm:$0xff]
      %v1088 = vld [vmem:[%s3 + $0x190] sm:$0xff]
      %v1089 = vld [vmem:[%s3 + $0x198] sm:$0xff]
      %v1090 = vld [vmem:[%s3 + $0x1a0] sm:$0xff]
      %v1091 = vld [vmem:[%s3 + $0x1a8] sm:$0xff]
      %v1092 = vld [vmem:[%s3 + $0x1b0] sm:$0xff]
      %v1093 = vld [vmem:[%s3 + $0x1b8] sm:$0xff]
      %v1094 = vld [vmem:[%s3 + $0x1c0] sm:$0xff]
      %v1095 = vld [vmem:[%s3 + $0x1c8] sm:$0xff]
      %v1096 = vld [vmem:[%s3 + $0x1d0] sm:$0xff]
      %v1097 = vld [vmem:[%s3 + $0x1d8] sm:$0xff]
      %v1098 = vld [vmem:[%s3 + $0x1e0] sm:$0xff]
      %v1099 = vld [vmem:[%s3 + $0x1e8] sm:$0xff]
      %v1100 = vld [vmem:[%s3 + $0x1f0] sm:$0xff]
      %v1101 = vld [vmem:[%s3 + $0x1f8] sm:$0xff]
      %v1102 = vld [vmem:[%s3 + $0x200] sm:$0xff]
      %v1103 = vld [vmem:[%s3 + $0x208] sm:$0xff]
      %v1104 = vld [vmem:[%s3 + $0x210] sm:$0xff]
      %v1105 = vld [vmem:[%s3 + $0x218] sm:$0xff]
      %v1106 = vld [vmem:[%s3 + $0x220] sm:$0xff]
      %v1107 = vld [vmem:[%s3 + $0x228] sm:$0xff]
      %v1108 = vld [vmem:[%s3 + $0x230] sm:$0xff]
      %v1109 = vld [vmem:[%s3 + $0x238] sm:$0xff]
      %v1110 = vld [vmem:[%s3 + $0x240] sm:$0xff]
      %v1111 = vld [vmem:[%s3 + $0x248] sm:$0xff]
      %v1112 = vld [vmem:[%s3 + $0x250] sm:$0xff]
      %v1113 = vld [vmem:[%s3 + $0x258] sm:$0xff]
      %v1114 = vld [vmem:[%s3 + $0x260] sm:$0xff]
      %v1115 = vld [vmem:[%s3 + $0x268] sm:$0xff]
      %v1116 = vld [vmem:[%s3 + $0x270] sm:$0xff]
      %v1117 = vld [vmem:[%s3 + $0x278] sm:$0xff]
      %v1118 = vld [vmem:[%s3 + $0x280] sm:$0xff]
      %v1119 = vld [vmem:[%s3 + $0x288] sm:$0xff]
      %v1120 = vld [vmem:[%s3 + $0x290] sm:$0xff]
      %v1121 = vld [vmem:[%s3 + $0x298] sm:$0xff]
      %v1122 = vld [vmem:[%s3 + $0x2a0] sm:$0xff]
      %v1123 = vld [vmem:[%s3 + $0x2a8] sm:$0xff]
      %v1124 = vld [vmem:[%s3 + $0x2b0] sm:$0xff]
      %v1125 = vld [vmem:[%s3 + $0x2b8] sm:$0xff]
      %v1126 = vld [vmem:[%s3 + $0x2c0] sm:$0xff]
      %v1127 = vld [vmem:[%s3 + $0x2c8] sm:$0xff]
      %v1128 = vld [vmem:[%s3 + $0x2d0] sm:$0xff]
      %v1129 = vld [vmem:[%s3 + $0x2d8] sm:$0xff]
      %v1130 = vld [vmem:[%s3 + $0x2e0] sm:$0xff]
      %v1131 = vld [vmem:[%s3 + $0x2e8] sm:$0xff]
      %v1132 = vld [vmem:[%s3 + $0x2f0] sm:$0xff]
      %v1133 = vld [vmem:[%s3 + $0x2f8] sm:$0xff]
      %v1134 = vld [vmem:[%s3 + $0x300] sm:$0xff]
      %v1135 = vld [vmem:[%s3 + $0x308] sm:$0xff]
      %v1136 = vld [vmem:[%s3 + $0x310] sm:$0xff]
      %v1137 = vld [vmem:[%s3 + $0x318] sm:$0xff]
      %v1138 = vld [vmem:[%s3 + $0x320] sm:$0xff]
      %v1139 = vld [vmem:[%s3 + $0x328] sm:$0xff]
      %v1140 = vld [vmem:[%s3 + $0x330] sm:$0xff]
      %v1141 = vld [vmem:[%s3 + $0x338] sm:$0xff]
      %v1142 = vld [vmem:[%s3 + $0x340] sm:$0xff]
      %v1143 = vld [vmem:[%s3 + $0x348] sm:$0xff]
      %v1144 = vld [vmem:[%s3 + $0x350] sm:$0xff]
      %v1145 = vld [vmem:[%s3 + $0x358] sm:$0xff]
      %v1146 = vld [vmem:[%s3 + $0x360] sm:$0xff]
      %v1147 = vld [vmem:[%s3 + $0x368] sm:$0xff]
      %v1148 = vld [vmem:[%s3 + $0x370] sm:$0xff]
      %v1149 = vld [vmem:[%s3 + $0x378] sm:$0xff]
      %v1150 = vld [vmem:[%s3 + $0x380] sm:$0xff]
      %v1151 = vld [vmem:[%s3 + $0x388] sm:$0xff]
      %v1152 = vld [vmem:[%s3 + $0x390] sm:$0xff]
      %v1153 = vld [vmem:[%s3 + $0x398] sm:$0xff]
      %v1154 = vld [vmem:[%s3 + $0x3a0] sm:$0xff]
      %v1155 = vld [vmem:[%s3 + $0x3a8] sm:$0xff]
      %v1156 = vld [vmem:[%s3 + $0x3b0] sm:$0xff]
      %v1157 = vld [vmem:[%s3 + $0x3b8] sm:$0xff]
      %v1158 = vld [vmem:[%s3 + $0x3c0] sm:$0xff]
      %v1159 = vld [vmem:[%s3 + $0x3c8] sm:$0xff]
      %v1160 = vld [vmem:[%s3 + $0x3d0] sm:$0xff]
      %v1161 = vld [vmem:[%s3 + $0x3d8] sm:$0xff]
      %v1162 = vld [vmem:[%s3 + $0x3e0] sm:$0xff]
      %v1163 = vld [vmem:[%s3 + $0x3e8] sm:$0xff]
      %v1164 = vld [vmem:[%s3 + $0x3f0] sm:$0xff]
      %v1165 = vld [vmem:[%s3 + $0x3f8] sm:$0xff]
      %v1166 = vld [vmem:[%s3 + $0x400] sm:$0xff]
      %v1167 = vld [vmem:[%s3 + $0x408] sm:$0xff]
      %v1168 = vld [vmem:[%s3 + $0x410] sm:$0xff]
      %v1169 = vld [vmem:[%s3 + $0x418] sm:$0xff]
      %v1170 = vld [vmem:[%s3 + $0x420] sm:$0xff]
      %v1171 = vld [vmem:[%s3 + $0x428] sm:$0xff]
      %v1172 = vld [vmem:[%s3 + $0x430] sm:$0xff]
      %v1173 = vld [vmem:[%s3 + $0x438] sm:$0xff]
      %v1174 = vld [vmem:[%s3 + $0x440] sm:$0xff]
      %v1175 = vld [vmem:[%s3 + $0x448] sm:$0xff]
      %v1176 = vld [vmem:[%s3 + $0x450] sm:$0xff]
      %v1177 = vld [vmem:[%s3 + $0x458] sm:$0xff]
      %v1178 = vld [vmem:[%s3 + $0x460] sm:$0xff]
      %v1179 = vld [vmem:[%s3 + $0x468] sm:$0xff]
      %v1180 = vld [vmem:[%s3 + $0x470] sm:$0xff]
      %v1181 = vld [vmem:[%s3 + $0x478] sm:$0xff]
      %v1182 = vld [vmem:[%s4] sm:$0x1]
      %v1184 = vlaneseq
      %v1185 = vshrl.u32 %v1184, 7
      %v1186 = vsub.s32 0, %v1185
      %v1187 = vrot.slane %v1182, %v1186
      %1189 = vmatprep.subr.mxu0 0.0
      %1190 = vmatpush1.msra.mxu0 %v1038
      %1191 = vmatprep.subr.mxu0 0.0
      %1192 = vmatpush1.msra.mxu0 %v1039
      %1193 = vmatprep.subr.mxu0 0.0
      %1194 = vmatpush1.msra.mxu0 %v1040
      %1195 = vmatprep.subr.mxu0 0.0
      %1196 = vmatpush1.msra.mxu0 %v1041
      %1197 = vmatprep.subr.mxu0 0.0
      %1198 = vmatpush1.msra.mxu0 %v1042
      %1199 = vmatprep.subr.mxu0 0.0
      %1200 = vmatpush1.msra.mxu0 %v1043
      %1201 = vmatprep.subr.mxu0 0.0
      %1202 = vmatpush1.msra.mxu0 %v1044
      %1203 = vmatprep.subr.mxu0 0.0
      %1204 = vmatpush1.msra.mxu0 %v1045
      %1205 = vmatprep.subr.mxu0 0.0
      %1206 = vmatpush1.msra.mxu0 %v1046
      %1207 = vmatprep.subr.mxu0 0.0
      %1208 = vmatpush1.msra.mxu0 %v1047
      %1209 = vmatprep.subr.mxu0 0.0
      %1210 = vmatpush1.msra.mxu0 %v1048
      %1211 = vmatprep.subr.mxu0 0.0
      %1212 = vmatpush1.msra.mxu0 %v1049
      %1213 = vmatprep.subr.mxu0 0.0
      %1214 = vmatpush1.msra.mxu0 %v1050
      %1215 = vmatprep.subr.mxu0 0.0
      %1216 = vmatpush1.msra.mxu0 %v1051
      %1217 = vmatprep.subr.mxu0 0.0
      %1218 = vmatpush1.msra.mxu0 %v1052
      %1219 = vmatprep.subr.mxu0 0.0
      %1220 = vmatpush1.msra.mxu0 %v1053
      %1221 = vmatprep.subr.mxu0 0.0
      %1222 = vmatpush1.msra.mxu0 %v1054
      %1223 = vmatprep.subr.mxu0 0.0
      %1224 = vmatpush1.msra.mxu0 %v1055
      %1225 = vmatprep.subr.mxu0 0.0
      %1226 = vmatpush1.msra.mxu0 %v1056
      %1227 = vmatprep.subr.mxu0 0.0
      %1228 = vmatpush1.msra.mxu0 %v1057
      %1229 = vmatprep.subr.mxu0 0.0
      %1230 = vmatpush1.msra.mxu0 %v1058
      %1231 = vmatprep.subr.mxu0 0.0
      %1232 = vmatpush1.msra.mxu0 %v1059
      %1233 = vmatprep.subr.mxu0 0.0
      %1234 = vmatpush1.msra.mxu0 %v1060
      %1235 = vmatprep.subr.mxu0 0.0
      %1236 = vmatpush1.msra.mxu0 %v1061
      %1237 = vmatprep.subr.mxu0 0.0
      %1238 = vmatpush1.msra.mxu0 %v1062
      %1239 = vmatprep.subr.mxu0 0.0
      %1240 = vmatpush1.msra.mxu0 %v1063
      %1241 = vmatprep.subr.mxu0 0.0
      %1242 = vmatpush1.msra.mxu0 %v1064
      %1243 = vmatprep.subr.mxu0 0.0
      %1244 = vmatpush1.msra.mxu0 %v1065
      %1245 = vmatprep.subr.mxu0 0.0
      %1246 = vmatpush1.msra.mxu0 %v1066
      %1247 = vmatprep.subr.mxu0 0.0
      %1248 = vmatpush1.msra.mxu0 %v1067
      %1249 = vmatprep.subr.mxu0 0.0
      %1250 = vmatpush1.msra.mxu0 %v1068
      %1251 = vmatprep.subr.mxu0 0.0
      %1252 = vmatpush1.msra.mxu0 %v1069
      %1253 = vmatprep.mubr.f32.mxu0 %v781
      %1254 = vmatmul.mubr.f32.gmra.mrb[0].mxu0 %v749
      %v1255 = vpop.f32.mrb[0].mxu0
      %v1256 = vadd.f32 %v1187, %v1255
      %v1257 = vpop.f32.mrb[0].mxu0
      %1258 = vmatprep.mubr.f32.mxu0 %v782
      %1259 = vmatmul.mubr.f32.gmra.mrb[0].mxu0 %v750
      %v1260 = vpop.f32.mrb[0].mxu0
      %v1261 = vadd.f32 %v1187, %v1260
      %v1262 = vpop.f32.mrb[0].mxu0
      %1263 = vmatprep.mubr.f32.mxu0 %v783
      %1264 = vmatmul.mubr.f32.gmra.mrb[0].mxu0 %v751
      %v1265 = vpop.f32.mrb[0].mxu0
      %v1266 = vadd.f32 %v1187, %v1265
      %v1267 = vpop.f32.mrb[0].mxu0
      %1268 = vmatprep.mubr.f32.mxu0 %v784
      %1269 = vmatmul.mubr.f32.gmra.mrb[0].mxu0 %v752
      %v1270 = vpop.f32.mrb[0].mxu0
      %v1271 = vadd.f32 %v1187, %v1270
      %v1272 = vpop.f32.mrb[0].mxu0
      %1273 = vmatprep.mubr.f32.mxu0 %v785
      %1274 = vmatmul.mubr.f32.gmra.mrb[0].mxu0 %v753
      %v1275 = vpop.f32.mrb[0].mxu0
      %v1276 = vadd.f32 %v1187, %v1275
      %v1277 = vpop.f32.mrb[0].mxu0
      %1278 = vmatprep.mubr.f32.mxu0 %v786
      %1279 = vmatmul.mubr.f32.gmra.mrb[0].mxu0 %v754
      %v1280 = vpop.f32.mrb[0].mxu0
      %v1281 = vadd.f32 %v1187, %v1280
      %v1282 = vpop.f32.mrb[0].mxu0
      %1283 = vmatprep.mubr.f32.mxu0 %v787
      %1284 = vmatmul.mubr.f32.gmra.mrb[0].mxu0 %v755
      %v1285 = vpop.f32.mrb[0].mxu0
      %v1286 = vadd.f32 %v1187, %v1285
      %v1287 = vpop.f32.mrb[0].mxu0
      %1288 = vmatprep.mubr.f32.mxu0 %v788
      %1289 = vmatmul.mubr.f32.gmra.mrb[0].mxu0 %v756
      %v1290 = vpop.f32.mrb[0].mxu0
      %v1291 = vadd.f32 %v1187, %v1290
      %v1292 = vpop.f32.mrb[0].mxu0
      %1293 = vmatprep.mubr.f32.mxu0 %v789
      %1294 = vmatmul.mubr.f32.gmra.mrb[0].mxu0 %v757
      %v1295 = vpop.f32.mrb[0].mxu0
      %v1296 = vadd.f32 %v1187, %v1295
      %v1297 = vpop.f32.mrb[0].mxu0
      %1298 = vmatprep.mubr.f32.mxu0 %v790
      %1299 = vmatmul.mubr.f32.gmra.mrb[0].mxu0 %v758
      %v1300 = vpop.f32.mrb[0].mxu0
      %v1301 = vadd.f32 %v1187, %v1300
      %v1302 = vpop.f32.mrb[0].mxu0
      %1303 = vmatprep.mubr.f32.mxu0 %v791
      %1304 = vmatmul.mubr.f32.gmra.mrb[0].mxu0 %v759
      %v1305 = vpop.f32.mrb[0].mxu0
      %v1306 = vadd.f32 %v1187, %v1305
      %v1307 = vpop.f32.mrb[0].mxu0
      %1308 = vmatprep.mubr.f32.mxu0 %v792
      %1309 = vmatmul.mubr.f32.gmra.mrb[0].mxu0 %v760
      %v1310 = vpop.f32.mrb[0].mxu0
      %v1311 = vadd.f32 %v1187, %v1310
      %v1312 = vpop.f32.mrb[0].mxu0
      %1313 = vmatprep.mubr.f32.mxu0 %v793
      %1314 = vmatmul.mubr.f32.gmra.mrb[0].mxu0 %v761
      %v1315 = vpop.f32.mrb[0].mxu0
      %v1316 = vadd.f32 %v1187, %v1315
      %v1317 = vpop.f32.mrb[0].mxu0
      %1318 = vmatprep.mubr.f32.mxu0 %v794
      %1319 = vmatmul.mubr.f32.gmra.mrb[0].mxu0 %v762
      %v1320 = vpop.f32.mrb[0].mxu0
      %v1321 = vadd.f32 %v1187, %v1320
      %v1322 = vpop.f32.mrb[0].mxu0
      %1323 = vmatprep.mubr.f32.mxu0 %v795
      %1324 = vmatmul.mubr.f32.gmra.mrb[0].mxu0 %v763
      %v1325 = vpop.f32.mrb[0].mxu0
      %v1326 = vadd.f32 %v1187, %v1325
      %v1327 = vpop.f32.mrb[0].mxu0
      %1328 = vmatprep.mubr.f32.mxu0 %v796
      %1329 = vmatmul.mubr.f32.gmra.mrb[0].mxu0 %v764
      %v1330 = vpop.f32.mrb[0].mxu0
      %v1331 = vadd.f32 %v1187, %v1330
      %v1332 = vpop.f32.mrb[0].mxu0
      %1333 = vmatprep.mubr.f32.mxu0 %v797
      %1334 = vmatmul.mubr.f32.gmra.mrb[0].mxu0 %v765
      %v1335 = vpop.f32.mrb[0].mxu0
      %v1336 = vadd.f32 %v1187, %v1335
      %v1337 = vpop.f32.mrb[0].mxu0
      %1338 = vmatprep.mubr.f32.mxu0 %v798
      %1339 = vmatmul.mubr.f32.gmra.mrb[0].mxu0 %v766
      %v1340 = vpop.f32.mrb[0].mxu0
      %v1341 = vadd.f32 %v1187, %v1340
      %v1342 = vpop.f32.mrb[0].mxu0
      %1343 = vmatprep.mubr.f32.mxu0 %v799
      %1344 = vmatmul.mubr.f32.gmra.mrb[0].mxu0 %v767
      %v1345 = vpop.f32.mrb[0].mxu0
      %v1346 = vadd.f32 %v1187, %v1345
      %v1347 = vpop.f32.mrb[0].mxu0
      %1348 = vmatprep.mubr.f32.mxu0 %v800
      %1349 = vmatmul.mubr.f32.gmra.mrb[0].mxu0 %v768
      %v1350 = vpop.f32.mrb[0].mxu0
      %v1351 = vadd.f32 %v1187, %v1350
      %v1352 = vpop.f32.mrb[0].mxu0
      %1353 = vmatprep.mubr.f32.mxu0 %v801
      %1354 = vmatmul.mubr.f32.gmra.mrb[0].mxu0 %v769
      %v1355 = vpop.f32.mrb[0].mxu0
      %v1356 = vadd.f32 %v1187, %v1355
      %v1357 = vpop.f32.mrb[0].mxu0
      %1358 = vmatprep.mubr.f32.mxu0 %v802
      %1359 = vmatmul.mubr.f32.gmra.mrb[0].mxu0 %v770
      %v1360 = vpop.f32.mrb[0].mxu0
      %v1361 = vadd.f32 %v1187, %v1360
      %v1362 = vpop.f32.mrb[0].mxu0
      %1363 = vmatprep.mubr.f32.mxu0 %v803
      %1364 = vmatmul.mubr.f32.gmra.mrb[0].mxu0 %v771
      %v1365 = vpop.f32.mrb[0].mxu0
      %v1366 = vadd.f32 %v1187, %v1365
      %v1367 = vpop.f32.mrb[0].mxu0
      %1368 = vmatprep.mubr.f32.mxu0 %v804
      %1369 = vmatmul.mubr.f32.gmra.mrb[0].mxu0 %v772
      %v1370 = vpop.f32.mrb[0].mxu0
      %v1371 = vadd.f32 %v1187, %v1370
      %v1372 = vpop.f32.mrb[0].mxu0
      %1373 = vmatprep.mubr.f32.mxu0 %v805
      %1374 = vmatmul.mubr.f32.gmra.mrb[0].mxu0 %v773
      %v1375 = vpop.f32.mrb[0].mxu0
      %v1376 = vadd.f32 %v1187, %v1375
      %v1377 = vpop.f32.mrb[0].mxu0
      %1378 = vmatprep.mubr.f32.mxu0 %v806
      %1379 = vmatmul.mubr.f32.gmra.mrb[0].mxu0 %v774
      %v1380 = vpop.f32.mrb[0].mxu0
      %v1381 = vadd.f32 %v1187, %v1380
      %v1382 = vpop.f32.mrb[0].mxu0
      %1383 = vmatprep.mubr.f32.mxu0 %v807
      %1384 = vmatmul.mubr.f32.gmra.mrb[0].mxu0 %v775
      %v1385 = vpop.f32.mrb[0].mxu0
      %v1386 = vadd.f32 %v1187, %v1385
      %v1387 = vpop.f32.mrb[0].mxu0
      %1388 = vmatprep.mubr.f32.mxu0 %v808
      %1389 = vmatmul.mubr.f32.gmra.mrb[0].mxu0 %v776
      %v1390 = vpop.f32.mrb[0].mxu0
      %v1391 = vadd.f32 %v1187, %v1390
      %v1392 = vpop.f32.mrb[0].mxu0
      %1393 = vmatprep.mubr.f32.mxu0 %v809
      %1394 = vmatmul.mubr.f32.gmra.mrb[0].mxu0 %v777
      %v1395 = vpop.f32.mrb[0].mxu0
      %v1396 = vadd.f32 %v1187, %v1395
      %v1397 = vpop.f32.mrb[0].mxu0
      %1398 = vmatprep.mubr.f32.mxu0 %v810
      %1399 = vmatmul.mubr.f32.gmra.mrb[0].mxu0 %v778
      %v1400 = vpop.f32.mrb[0].mxu0
      %v1401 = vadd.f32 %v1187, %v1400
      %v1402 = vpop.f32.mrb[0].mxu0
      %1403 = vmatprep.mubr.f32.mxu0 %v811
      %1404 = vmatmul.mubr.f32.gmra.mrb[0].mxu0 %v779
      %v1405 = vpop.f32.mrb[0].mxu0
      %v1406 = vadd.f32 %v1187, %v1405
      %v1407 = vpop.f32.mrb[0].mxu0
      %1408 = vmatprep.mubr.f32.mxu0 %v812
      %1409 = vmatmul.mubr.f32.gmra.mrb[0].mxu0 %v780
      %v1410 = vpop.f32.mrb[0].mxu0
      %v1411 = vadd.f32 %v1187, %v1410
      %v1412 = vpop.f32.mrb[0].mxu0
      %1413 = vdwg.mxu0
      %1414 = vmatprep.subr.mxu0 0.0
      %1415 = vmatpush1.msra.mxu0 %v1070
      %1416 = vmatprep.subr.mxu0 0.0
      %1417 = vmatpush1.msra.mxu0 %v1071
      %1418 = vmatprep.subr.mxu0 0.0
      %1419 = vmatpush1.msra.mxu0 %v1072
      %1420 = vmatprep.subr.mxu0 0.0
      %1421 = vmatpush1.msra.mxu0 %v1073
      %1422 = vmatprep.subr.mxu0 0.0
      %1423 = vmatpush1.msra.mxu0 %v1074
      %1424 = vmatprep.subr.mxu0 0.0
      %1425 = vmatpush1.msra.mxu0 %v1075
      %1426 = vmatprep.subr.mxu0 0.0
      %1427 = vmatpush1.msra.mxu0 %v1076
      %1428 = vmatprep.subr.mxu0 0.0
      %1429 = vmatpush1.msra.mxu0 %v1077
      %1430 = vmatprep.subr.mxu0 0.0
      %1431 = vmatpush1.msra.mxu0 %v1078
      %1432 = vmatprep.subr.mxu0 0.0
      %1433 = vmatpush1.msra.mxu0 %v1079
      %1434 = vmatprep.subr.mxu0 0.0
      %1435 = vmatpush1.msra.mxu0 %v1080
      %1436 = vmatprep.subr.mxu0 0.0
      %1437 = vmatpush1.msra.mxu0 %v1081
      %1438 = vmatprep.subr.mxu0 0.0
      %1439 = vmatpush1.msra.mxu0 %v1082
      %1440 = vmatprep.subr.mxu0 0.0
      %1441 = vmatpush1.msra.mxu0 %v1083
      %1442 = vmatprep.subr.mxu0 0.0
      %1443 = vmatpush1.msra.mxu0 %v1084
      %1444 = vmatprep.subr.mxu0 0.0
      %1445 = vmatpush1.msra.mxu0 %v1085
      %1446 = vmatprep.subr.mxu0 0.0
      %1447 = vmatpush1.msra.mxu0 %v1086
      %1448 = vmatprep.subr.mxu0 0.0
      %1449 = vmatpush1.msra.mxu0 %v1087
      %1450 = vmatprep.subr.mxu0 0.0
      %1451 = vmatpush1.msra.mxu0 %v1088
      %1452 = vmatprep.subr.mxu0 0.0
      %1453 = vmatpush1.msra.mxu0 %v1089
      %1454 = vmatprep.subr.mxu0 0.0
      %1455 = vmatpush1.msra.mxu0 %v1090
      %1456 = vmatprep.subr.mxu0 0.0
      %1457 = vmatpush1.msra.mxu0 %v1091
      %1458 = vmatprep.subr.mxu0 0.0
      %1459 = vmatpush1.msra.mxu0 %v1092
      %1460 = vmatprep.subr.mxu0 0.0
      %1461 = vmatpush1.msra.mxu0 %v1093
      %1462 = vmatprep.subr.mxu0 0.0
      %1463 = vmatpush1.msra.mxu0 %v1094
      %1464 = vmatprep.subr.mxu0 0.0
      %1465 = vmatpush1.msra.mxu0 %v1095
      %1466 = vmatprep.subr.mxu0 0.0
      %1467 = vmatpush1.msra.mxu0 %v1096
      %1468 = vmatprep.subr.mxu0 0.0
      %1469 = vmatpush1.msra.mxu0 %v1097
      %1470 = vmatprep.subr.mxu0 0.0
      %1471 = vmatpush1.msra.mxu0 %v1098
      %1472 = vmatprep.subr.mxu0 0.0
      %1473 = vmatpush1.msra.mxu0 %v1099
      %1474 = vmatprep.subr.mxu0 0.0
      %1475 = vmatpush1.msra.mxu0 %v1100
      %1476 = vmatprep.subr.mxu0 0.0
      %1477 = vmatpush1.msra.mxu0 %v1101
      %1478 = vmatprep.mubr.f32.mxu0 %v845
      %1479 = vmatmul.mubr.f32.gmra.mrb[0].mxu0 %v813
      %v1480 = vpop.f32.mrb[0].mxu0
      %v1481 = vadd.f32 %v1256, %v1480
      %v1482 = vpop.f32.mrb[0].mxu0
      %1483 = vmatprep.mubr.f32.mxu0 %v846
      %1484 = vmatmul.mubr.f32.gmra.mrb[0].mxu0 %v814
      %v1485 = vpop.f32.mrb[0].mxu0
      %v1486 = vadd.f32 %v1261, %v1485
      %v1487 = vpop.f32.mrb[0].mxu0
      %1488 = vmatprep.mubr.f32.mxu0 %v847
      %1489 = vmatmul.mubr.f32.gmra.mrb[0].mxu0 %v815
      %v1490 = vpop.f32.mrb[0].mxu0
      %v1491 = vadd.f32 %v1266, %v1490
      %v1492 = vpop.f32.mrb[0].mxu0
      %1493 = vmatprep.mubr.f32.mxu0 %v848
      %1494 = vmatmul.mubr.f32.gmra.mrb[0].mxu0 %v816
      %v1495 = vpop.f32.mrb[0].mxu0
      %v1496 = vadd.f32 %v1271, %v1495
      %v1497 = vpop.f32.mrb[0].mxu0
      %1498 = vmatprep.mubr.f32.mxu0 %v849
      %1499 = vmatmul.mubr.f32.gmra.mrb[0].mxu0 %v817
      %v1500 = vpop.f32.mrb[0].mxu0
      %v1501 = vadd.f32 %v1276, %v1500
      %v1502 = vpop.f32.mrb[0].mxu0
      %1503 = vmatprep.mubr.f32.mxu0 %v850
      %1504 = vmatmul.mubr.f32.gmra.mrb[0].mxu0 %v818
      %v1505 = vpop.f32.mrb[0].mxu0
      %v1506 = vadd.f32 %v1281, %v1505
      %v1507 = vpop.f32.mrb[0].mxu0
      %1508 = vmatprep.mubr.f32.mxu0 %v851
      %1509 = vmatmul.mubr.f32.gmra.mrb[0].mxu0 %v819
      %v1510 = vpop.f32.mrb[0].mxu0
      %v1511 = vadd.f32 %v1286, %v1510
      %v1512 = vpop.f32.mrb[0].mxu0
      %1513 = vmatprep.mubr.f32.mxu0 %v852
      %1514 = vmatmul.mubr.f32.gmra.mrb[0].mxu0 %v820
      %v1515 = vpop.f32.mrb[0].mxu0
      %v1516 = vadd.f32 %v1291, %v1515
      %v1517 = vpop.f32.mrb[0].mxu0
      %1518 = vmatprep.mubr.f32.mxu0 %v853
      %1519 = vmatmul.mubr.f32.gmra.mrb[0].mxu0 %v821
      %v1520 = vpop.f32.mrb[0].mxu0
      %v1521 = vadd.f32 %v1296, %v1520
      %v1522 = vpop.f32.mrb[0].mxu0
      %1523 = vmatprep.mubr.f32.mxu0 %v854
      %1524 = vmatmul.mubr.f32.gmra.mrb[0].mxu0 %v822
      %v1525 = vpop.f32.mrb[0].mxu0
      %v1526 = vadd.f32 %v1301, %v1525
      %v1527 = vpop.f32.mrb[0].mxu0
      %1528 = vmatprep.mubr.f32.mxu0 %v855
      %1529 = vmatmul.mubr.f32.gmra.mrb[0].mxu0 %v823
      %v1530 = vpop.f32.mrb[0].mxu0
      %v1531 = vadd.f32 %v1306, %v1530
      %v1532 = vpop.f32.mrb[0].mxu0
      %1533 = vmatprep.mubr.f32.mxu0 %v856
      %1534 = vmatmul.mubr.f32.gmra.mrb[0].mxu0 %v824
      %v1535 = vpop.f32.mrb[0].mxu0
      %v1536 = vadd.f32 %v1311, %v1535
      %v1537 = vpop.f32.mrb[0].mxu0
      %1538 = vmatprep.mubr.f32.mxu0 %v857
      %1539 = vmatmul.mubr.f32.gmra.mrb[0].mxu0 %v825
      %v1540 = vpop.f32.mrb[0].mxu0
      %v1541 = vadd.f32 %v1316, %v1540
      %v1542 = vpop.f32.mrb[0].mxu0
      %1543 = vmatprep.mubr.f32.mxu0 %v858
      %1544 = vmatmul.mubr.f32.gmra.mrb[0].mxu0 %v826
      %v1545 = vpop.f32.mrb[0].mxu0
      %v1546 = vadd.f32 %v1321, %v1545
      %v1547 = vpop.f32.mrb[0].mxu0
      %1548 = vmatprep.mubr.f32.mxu0 %v859
      %1549 = vmatmul.mubr.f32.gmra.mrb[0].mxu0 %v827
      %v1550 = vpop.f32.mrb[0].mxu0
      %v1551 = vadd.f32 %v1326, %v1550
      %v1552 = vpop.f32.mrb[0].mxu0
      %1553 = vmatprep.mubr.f32.mxu0 %v860
      %1554 = vmatmul.mubr.f32.gmra.mrb[0].mxu0 %v828
      %v1555 = vpop.f32.mrb[0].mxu0
      %v1556 = vadd.f32 %v1331, %v1555
      %v1557 = vpop.f32.mrb[0].mxu0
      %1558 = vmatprep.mubr.f32.mxu0 %v861
      %1559 = vmatmul.mubr.f32.gmra.mrb[0].mxu0 %v829
      %v1560 = vpop.f32.mrb[0].mxu0
      %v1561 = vadd.f32 %v1336, %v1560
      %v1562 = vpop.f32.mrb[0].mxu0
      %1563 = vmatprep.mubr.f32.mxu0 %v862
      %1564 = vmatmul.mubr.f32.gmra.mrb[0].mxu0 %v830
      %v1565 = vpop.f32.mrb[0].mxu0
      %v1566 = vadd.f32 %v1341, %v1565
      %v1567 = vpop.f32.mrb[0].mxu0
      %1568 = vmatprep.mubr.f32.mxu0 %v863
      %1569 = vmatmul.mubr.f32.gmra.mrb[0].mxu0 %v831
      %v1570 = vpop.f32.mrb[0].mxu0
      %v1571 = vadd.f32 %v1346, %v1570
      %v1572 = vpop.f32.mrb[0].mxu0
      %1573 = vmatprep.mubr.f32.mxu0 %v864
      %1574 = vmatmul.mubr.f32.gmra.mrb[0].mxu0 %v832
      %v1575 = vpop.f32.mrb[0].mxu0
      %v1576 = vadd.f32 %v1351, %v1575
      %v1577 = vpop.f32.mrb[0].mxu0
      %1578 = vmatprep.mubr.f32.mxu0 %v865
      %1579 = vmatmul.mubr.f32.gmra.mrb[0].mxu0 %v833
      %v1580 = vpop.f32.mrb[0].mxu0
      %v1581 = vadd.f32 %v1356, %v1580
      %v1582 = vpop.f32.mrb[0].mxu0
      %1583 = vmatprep.mubr.f32.mxu0 %v866
      %1584 = vmatmul.mubr.f32.gmra.mrb[0].mxu0 %v834
      %v1585 = vpop.f32.mrb[0].mxu0
      %v1586 = vadd.f32 %v1361, %v1585
      %v1587 = vpop.f32.mrb[0].mxu0
      %1588 = vmatprep.mubr.f32.mxu0 %v867
      %1589 = vmatmul.mubr.f32.gmra.mrb[0].mxu0 %v835
      %v1590 = vpop.f32.mrb[0].mxu0
      %v1591 = vadd.f32 %v1366, %v1590
      %v1592 = vpop.f32.mrb[0].mxu0
      %1593 = vmatprep.mubr.f32.mxu0 %v868
      %1594 = vmatmul.mubr.f32.gmra.mrb[0].mxu0 %v836
      %v1595 = vpop.f32.mrb[0].mxu0
      %v1596 = vadd.f32 %v1371, %v1595
      %v1597 = vpop.f32.mrb[0].mxu0
      %1598 = vmatprep.mubr.f32.mxu0 %v869
      %1599 = vmatmul.mubr.f32.gmra.mrb[0].mxu0 %v837
      %v1600 = vpop.f32.mrb[0].mxu0
      %v1601 = vadd.f32 %v1376, %v1600
      %v1602 = vpop.f32.mrb[0].mxu0
      %1603 = vmatprep.mubr.f32.mxu0 %v870
      %1604 = vmatmul.mubr.f32.gmra.mrb[0].mxu0 %v838
      %v1605 = vpop.f32.mrb[0].mxu0
      %v1606 = vadd.f32 %v1381, %v1605
      %v1607 = vpop.f32.mrb[0].mxu0
      %1608 = vmatprep.mubr.f32.mxu0 %v871
      %1609 = vmatmul.mubr.f32.gmra.mrb[0].mxu0 %v839
      %v1610 = vpop.f32.mrb[0].mxu0
      %v1611 = vadd.f32 %v1386, %v1610
      %v1612 = vpop.f32.mrb[0].mxu0
      %1613 = vmatprep.mubr.f32.mxu0 %v872
      %1614 = vmatmul.mubr.f32.gmra.mrb[0].mxu0 %v840
      %v1615 = vpop.f32.mrb[0].mxu0
      %v1616 = vadd.f32 %v1391, %v1615
      %v1617 = vpop.f32.mrb[0].mxu0
      %1618 = vmatprep.mubr.f32.mxu0 %v873
      %1619 = vmatmul.mubr.f32.gmra.mrb[0].mxu0 %v841
      %v1620 = vpop.f32.mrb[0].mxu0
      %v1621 = vadd.f32 %v1396, %v1620
      %v1622 = vpop.f32.mrb[0].mxu0
      %1623 = vmatprep.mubr.f32.mxu0 %v874
      %1624 = vmatmul.mubr.f32.gmra.mrb[0].mxu0 %v842
      %v1625 = vpop.f32.mrb[0].mxu0
      %v1626 = vadd.f32 %v1401, %v1625
      %v1627 = vpop.f32.mrb[0].mxu0
      %1628 = vmatprep.mubr.f32.mxu0 %v875
      %1629 = vmatmul.mubr.f32.gmra.mrb[0].mxu0 %v843
      %v1630 = vpop.f32.mrb[0].mxu0
      %v1631 = vadd.f32 %v1406, %v1630
      %v1632 = vpop.f32.mrb[0].mxu0
      %1633 = vmatprep.mubr.f32.mxu0 %v876
      %1634 = vmatmul.mubr.f32.gmra.mrb[0].mxu0 %v844
      %v1635 = vpop.f32.mrb[0].mxu0
      %v1636 = vadd.f32 %v1411, %v1635
      %v1637 = vpop.f32.mrb[0].mxu0
      %1638 = vdwg.mxu0
      %1639 = vmatprep.subr.mxu0 0.0
      %1640 = vmatpush1.msra.mxu0 %v1102
      %1641 = vmatprep.subr.mxu0 0.0
      %1642 = vmatpush1.msra.mxu0 %v1103
      %1643 = vmatprep.subr.mxu0 0.0
      %1644 = vmatpush1.msra.mxu0 %v1104
      %1645 = vmatprep.subr.mxu0 0.0
      %1646 = vmatpush1.msra.mxu0 %v1105
      %1647 = vmatprep.subr.mxu0 0.0
      %1648 = vmatpush1.msra.mxu0 %v1106
      %1649 = vmatprep.subr.mxu0 0.0
      %1650 = vmatpush1.msra.mxu0 %v1107
      %1651 = vmatprep.subr.mxu0 0.0
      %1652 = vmatpush1.msra.mxu0 %v1108
      %1653 = vmatprep.subr.mxu0 0.0
      %1654 = vmatpush1.msra.mxu0 %v1109
      %1655 = vmatprep.subr.mxu0 0.0
      %1656 = vmatpush1.msra.mxu0 %v1110
      %1657 = vmatprep.subr.mxu0 0.0
      %1658 = vmatpush1.msra.mxu0 %v1111
      %1659 = vmatprep.subr.mxu0 0.0
      %1660 = vmatpush1.msra.mxu0 %v1112
      %1661 = vmatprep.subr.mxu0 0.0
      %1662 = vmatpush1.msra.mxu0 %v1113
      %1663 = vmatprep.subr.mxu0 0.0
      %1664 = vmatpush1.msra.mxu0 %v1114
      %1665 = vmatprep.subr.mxu0 0.0
      %1666 = vmatpush1.msra.mxu0 %v1115
      %1667 = vmatprep.subr.mxu0 0.0
      %1668 = vmatpush1.msra.mxu0 %v1116
      %1669 = vmatprep.subr.mxu0 0.0
      %1670 = vmatpush1.msra.mxu0 %v1117
      %1671 = vmatprep.subr.mxu0 0.0
      %1672 = vmatpush1.msra.mxu0 %v1118
      %1673 = vmatprep.subr.mxu0 0.0
      %1674 = vmatpush1.msra.mxu0 %v1119
      %1675 = vmatprep.subr.mxu0 0.0
      %1676 = vmatpush1.msra.mxu0 %v1120
      %1677 = vmatprep.subr.mxu0 0.0
      %1678 = vmatpush1.msra.mxu0 %v1121
      %1679 = vmatprep.subr.mxu0 0.0
      %1680 = vmatpush1.msra.mxu0 %v1122
      %1681 = vmatprep.subr.mxu0 0.0
      %1682 = vmatpush1.msra.mxu0 %v1123
      %1683 = vmatprep.subr.mxu0 0.0
      %1684 = vmatpush1.msra.mxu0 %v1124
      %1685 = vmatprep.subr.mxu0 0.0
      %1686 = vmatpush1.msra.mxu0 %v1125
      %1687 = vmatprep.subr.mxu0 0.0
      %1688 = vmatpush1.msra.mxu0 %v1126
      %1689 = vmatprep.subr.mxu0 0.0
      %1690 = vmatpush1.msra.mxu0 %v1127
      %1691 = vmatprep.subr.mxu0 0.0
      %1692 = vmatpush1.msra.mxu0 %v1128
      %1693 = vmatprep.subr.mxu0 0.0
      %1694 = vmatpush1.msra.mxu0 %v1129
      %1695 = vmatprep.subr.mxu0 0.0
      %1696 = vmatpush1.msra.mxu0 %v1130
      %1697 = vmatprep.subr.mxu0 0.0
      %1698 = vmatpush1.msra.mxu0 %v1131
      %1699 = vmatprep.subr.mxu0 0.0
      %1700 = vmatpush1.msra.mxu0 %v1132
      %1701 = vmatprep.subr.mxu0 0.0
      %1702 = vmatpush1.msra.mxu0 %v1133
      %1703 = vmatprep.mubr.f32.mxu0 %v909
      %1704 = vmatmul.mubr.f32.gmra.mrb[0].mxu0 %v877
      %v1705 = vpop.f32.mrb[0].mxu0
      %v1706 = vadd.f32 %v1481, %v1705
      %v1707 = vpop.f32.mrb[0].mxu0
      %1708 = vmatprep.mubr.f32.mxu0 %v910
      %1709 = vmatmul.mubr.f32.gmra.mrb[0].mxu0 %v878
      %v1710 = vpop.f32.mrb[0].mxu0
      %v1711 = vadd.f32 %v1486, %v1710
      %v1712 = vpop.f32.mrb[0].mxu0
      %1713 = vmatprep.mubr.f32.mxu0 %v911
      %1714 = vmatmul.mubr.f32.gmra.mrb[0].mxu0 %v879
      %v1715 = vpop.f32.mrb[0].mxu0
      %v1716 = vadd.f32 %v1491, %v1715
      %v1717 = vpop.f32.mrb[0].mxu0
      %1718 = vmatprep.mubr.f32.mxu0 %v912
      %1719 = vmatmul.mubr.f32.gmra.mrb[0].mxu0 %v880
      %v1720 = vpop.f32.mrb[0].mxu0
      %v1721 = vadd.f32 %v1496, %v1720
      %v1722 = vpop.f32.mrb[0].mxu0
      %1723 = vmatprep.mubr.f32.mxu0 %v913
      %1724 = vmatmul.mubr.f32.gmra.mrb[0].mxu0 %v881
      %v1725 = vpop.f32.mrb[0].mxu0
      %v1726 = vadd.f32 %v1501, %v1725
      %v1727 = vpop.f32.mrb[0].mxu0
      %1728 = vmatprep.mubr.f32.mxu0 %v914
      %1729 = vmatmul.mubr.f32.gmra.mrb[0].mxu0 %v882
      %v1730 = vpop.f32.mrb[0].mxu0
      %v1731 = vadd.f32 %v1506, %v1730
      %v1732 = vpop.f32.mrb[0].mxu0
      %1733 = vmatprep.mubr.f32.mxu0 %v915
      %1734 = vmatmul.mubr.f32.gmra.mrb[0].mxu0 %v883
      %v1735 = vpop.f32.mrb[0].mxu0
      %v1736 = vadd.f32 %v1511, %v1735
      %v1737 = vpop.f32.mrb[0].mxu0
      %1738 = vmatprep.mubr.f32.mxu0 %v916
      %1739 = vmatmul.mubr.f32.gmra.mrb[0].mxu0 %v884
      %v1740 = vpop.f32.mrb[0].mxu0
      %v1741 = vadd.f32 %v1516, %v1740
      %v1742 = vpop.f32.mrb[0].mxu0
      %1743 = vmatprep.mubr.f32.mxu0 %v917
      %1744 = vmatmul.mubr.f32.gmra.mrb[0].mxu0 %v885
      %v1745 = vpop.f32.mrb[0].mxu0
      %v1746 = vadd.f32 %v1521, %v1745
      %v1747 = vpop.f32.mrb[0].mxu0
      %1748 = vmatprep.mubr.f32.mxu0 %v918
      %1749 = vmatmul.mubr.f32.gmra.mrb[0].mxu0 %v886
      %v1750 = vpop.f32.mrb[0].mxu0
      %v1751 = vadd.f32 %v1526, %v1750
      %v1752 = vpop.f32.mrb[0].mxu0
      %1753 = vmatprep.mubr.f32.mxu0 %v919
      %1754 = vmatmul.mubr.f32.gmra.mrb[0].mxu0 %v887
      %v1755 = vpop.f32.mrb[0].mxu0
      %v1756 = vadd.f32 %v1531, %v1755
      %v1757 = vpop.f32.mrb[0].mxu0
      %1758 = vmatprep.mubr.f32.mxu0 %v920
      %1759 = vmatmul.mubr.f32.gmra.mrb[0].mxu0 %v888
      %v1760 = vpop.f32.mrb[0].mxu0
      %v1761 = vadd.f32 %v1536, %v1760
      %v1762 = vpop.f32.mrb[0].mxu0
      %1763 = vmatprep.mubr.f32.mxu0 %v921
      %1764 = vmatmul.mubr.f32.gmra.mrb[0].mxu0 %v889
      %v1765 = vpop.f32.mrb[0].mxu0
      %v1766 = vadd.f32 %v1541, %v1765
      %v1767 = vpop.f32.mrb[0].mxu0
      %1768 = vmatprep.mubr.f32.mxu0 %v922
      %1769 = vmatmul.mubr.f32.gmra.mrb[0].mxu0 %v890
      %v1770 = vpop.f32.mrb[0].mxu0
      %v1771 = vadd.f32 %v1546, %v1770
      %v1772 = vpop.f32.mrb[0].mxu0
      %1773 = vmatprep.mubr.f32.mxu0 %v923
      %1774 = vmatmul.mubr.f32.gmra.mrb[0].mxu0 %v891
      %v1775 = vpop.f32.mrb[0].mxu0
      %v1776 = vadd.f32 %v1551, %v1775
      %v1777 = vpop.f32.mrb[0].mxu0
      %1778 = vmatprep.mubr.f32.mxu0 %v924
      %1779 = vmatmul.mubr.f32.gmra.mrb[0].mxu0 %v892
      %v1780 = vpop.f32.mrb[0].mxu0
      %v1781 = vadd.f32 %v1556, %v1780
      %v1782 = vpop.f32.mrb[0].mxu0
      %1783 = vmatprep.mubr.f32.mxu0 %v925
      %1784 = vmatmul.mubr.f32.gmra.mrb[0].mxu0 %v893
      %v1785 = vpop.f32.mrb[0].mxu0
      %v1786 = vadd.f32 %v1561, %v1785
      %v1787 = vpop.f32.mrb[0].mxu0
      %1788 = vmatprep.mubr.f32.mxu0 %v926
      %1789 = vmatmul.mubr.f32.gmra.mrb[0].mxu0 %v894
      %v1790 = vpop.f32.mrb[0].mxu0
      %v1791 = vadd.f32 %v1566, %v1790
      %v1792 = vpop.f32.mrb[0].mxu0
      %1793 = vmatprep.mubr.f32.mxu0 %v927
      %1794 = vmatmul.mubr.f32.gmra.mrb[0].mxu0 %v895
      %v1795 = vpop.f32.mrb[0].mxu0
      %v1796 = vadd.f32 %v1571, %v1795
      %v1797 = vpop.f32.mrb[0].mxu0
      %1798 = vmatprep.mubr.f32.mxu0 %v928
      %1799 = vmatmul.mubr.f32.gmra.mrb[0].mxu0 %v896
      %v1800 = vpop.f32.mrb[0].mxu0
      %v1801 = vadd.f32 %v1576, %v1800
      %v1802 = vpop.f32.mrb[0].mxu0
      %1803 = vmatprep.mubr.f32.mxu0 %v929
      %1804 = vmatmul.mubr.f32.gmra.mrb[0].mxu0 %v897
      %v1805 = vpop.f32.mrb[0].mxu0
      %v1806 = vadd.f32 %v1581, %v1805
      %v1807 = vpop.f32.mrb[0].mxu0
      %1808 = vmatprep.mubr.f32.mxu0 %v930
      %1809 = vmatmul.mubr.f32.gmra.mrb[0].mxu0 %v898
      %v1810 = vpop.f32.mrb[0].mxu0
      %v1811 = vadd.f32 %v1586, %v1810
      %v1812 = vpop.f32.mrb[0].mxu0
      %1813 = vmatprep.mubr.f32.mxu0 %v931
      %1814 = vmatmul.mubr.f32.gmra.mrb[0].mxu0 %v899
      %v1815 = vpop.f32.mrb[0].mxu0
      %v1816 = vadd.f32 %v1591, %v1815
      %v1817 = vpop.f32.mrb[0].mxu0
      %1818 = vmatprep.mubr.f32.mxu0 %v932
      %1819 = vmatmul.mubr.f32.gmra.mrb[0].mxu0 %v900
      %v1820 = vpop.f32.mrb[0].mxu0
      %v1821 = vadd.f32 %v1596, %v1820
      %v1822 = vpop.f32.mrb[0].mxu0
      %1823 = vmatprep.mubr.f32.mxu0 %v933
      %1824 = vmatmul.mubr.f32.gmra.mrb[0].mxu0 %v901
      %v1825 = vpop.f32.mrb[0].mxu0
      %v1826 = vadd.f32 %v1601, %v1825
      %v1827 = vpop.f32.mrb[0].mxu0
      %1828 = vmatprep.mubr.f32.mxu0 %v934
      %1829 = vmatmul.mubr.f32.gmra.mrb[0].mxu0 %v902
      %v1830 = vpop.f32.mrb[0].mxu0
      %v1831 = vadd.f32 %v1606, %v1830
      %v1832 = vpop.f32.mrb[0].mxu0
      %1833 = vmatprep.mubr.f32.mxu0 %v935
      %1834 = vmatmul.mubr.f32.gmra.mrb[0].mxu0 %v903
      %v1835 = vpop.f32.mrb[0].mxu0
      %v1836 = vadd.f32 %v1611, %v1835
      %v1837 = vpop.f32.mrb[0].mxu0
      %1838 = vmatprep.mubr.f32.mxu0 %v936
      %1839 = vmatmul.mubr.f32.gmra.mrb[0].mxu0 %v904
      %v1840 = vpop.f32.mrb[0].mxu0
      %v1841 = vadd.f32 %v1616, %v1840
      %v1842 = vpop.f32.mrb[0].mxu0
      %1843 = vmatprep.mubr.f32.mxu0 %v937
      %1844 = vmatmul.mubr.f32.gmra.mrb[0].mxu0 %v905
      %v1845 = vpop.f32.mrb[0].mxu0
      %v1846 = vadd.f32 %v1621, %v1845
      %v1847 = vpop.f32.mrb[0].mxu0
      %1848 = vmatprep.mubr.f32.mxu0 %v938
      %1849 = vmatmul.mubr.f32.gmra.mrb[0].mxu0 %v906
      %v1850 = vpop.f32.mrb[0].mxu0
      %v1851 = vadd.f32 %v1626, %v1850
      %v1852 = vpop.f32.mrb[0].mxu0
      %1853 = vmatprep.mubr.f32.mxu0 %v939
      %1854 = vmatmul.mubr.f32.gmra.mrb[0].mxu0 %v907
      %v1855 = vpop.f32.mrb[0].mxu0
      %v1856 = vadd.f32 %v1631, %v1855
      %v1857 = vpop.f32.mrb[0].mxu0
      %1858 = vmatprep.mubr.f32.mxu0 %v940
      %1859 = vmatmul.mubr.f32.gmra.mrb[0].mxu0 %v908
      %v1860 = vpop.f32.mrb[0].mxu0
      %v1861 = vadd.f32 %v1636, %v1860
      %v1862 = vpop.f32.mrb[0].mxu0
      %1863 = vdwg.mxu0
      %1864 = vmatprep.subr.mxu0 0.0
      %1865 = vmatpush1.msra.mxu0 %v1134
      %1866 = vmatprep.subr.mxu0 0.0
      %1867 = vmatpush1.msra.mxu0 %v1135
      %1868 = vmatprep.subr.mxu0 0.0
      %1869 = vmatpush1.msra.mxu0 %v1136
      %1870 = vmatprep.subr.mxu0 0.0
      %1871 = vmatpush1.msra.mxu0 %v1137
      %1872 = vmatprep.subr.mxu0 0.0
      %1873 = vmatpush1.msra.mxu0 %v1138
      %1874 = vmatprep.subr.mxu0 0.0
      %1875 = vmatpush1.msra.mxu0 %v1139
      %1876 = vmatprep.subr.mxu0 0.0
      %1877 = vmatpush1.msra.mxu0 %v1140
      %1878 = vmatprep.subr.mxu0 0.0
      %1879 = vmatpush1.msra.mxu0 %v1141
      %1880 = vmatprep.subr.mxu0 0.0
      %1881 = vmatpush1.msra.mxu0 %v1142
      %1882 = vmatprep.subr.mxu0 0.0
      %1883 = vmatpush1.msra.mxu0 %v1143
      %1884 = vmatprep.subr.mxu0 0.0
      %1885 = vmatpush1.msra.mxu0 %v1144
      %1886 = vmatprep.subr.mxu0 0.0
      %1887 = vmatpush1.msra.mxu0 %v1145
      %1888 = vmatprep.subr.mxu0 0.0
      %1889 = vmatpush1.msra.mxu0 %v1146
      %1890 = vmatprep.subr.mxu0 0.0
      %1891 = vmatpush1.msra.mxu0 %v1147
      %1892 = vmatprep.subr.mxu0 0.0
      %1893 = vmatpush1.msra.mxu0 %v1148
      %1894 = vmatprep.subr.mxu0 0.0
      %1895 = vmatpush1.msra.mxu0 %v1149
      %1896 = vmatprep.subr.mxu0 0.0
      %1897 = vmatpush1.msra.mxu0 %v1150
      %1898 = vmatprep.subr.mxu0 0.0
      %1899 = vmatpush1.msra.mxu0 %v1151
      %1900 = vmatprep.subr.mxu0 0.0
      %1901 = vmatpush1.msra.mxu0 %v1152
      %1902 = vmatprep.subr.mxu0 0.0
      %1903 = vmatpush1.msra.mxu0 %v1153
      %1904 = vmatprep.subr.mxu0 0.0
      %1905 = vmatpush1.msra.mxu0 %v1154
      %1906 = vmatprep.subr.mxu0 0.0
      %1907 = vmatpush1.msra.mxu0 %v1155
      %1908 = vmatprep.subr.mxu0 0.0
      %1909 = vmatpush1.msra.mxu0 %v1156
      %1910 = vmatprep.subr.mxu0 0.0
      %1911 = vmatpush1.msra.mxu0 %v1157
      %1912 = vmatprep.subr.mxu0 0.0
      %1913 = vmatpush1.msra.mxu0 %v1158
      %1914 = vmatprep.subr.mxu0 0.0
      %1915 = vmatpush1.msra.mxu0 %v1159
      %1916 = vmatprep.subr.mxu0 0.0
      %1917 = vmatpush1.msra.mxu0 %v1160
      %1918 = vmatprep.subr.mxu0 0.0
      %1919 = vmatpush1.msra.mxu0 %v1161
      %1920 = vmatprep.subr.mxu0 0.0
      %1921 = vmatpush1.msra.mxu0 %v1162
      %1922 = vmatprep.subr.mxu0 0.0
      %1923 = vmatpush1.msra.mxu0 %v1163
      %1924 = vmatprep.subr.mxu0 0.0
      %1925 = vmatpush1.msra.mxu0 %v1164
      %1926 = vmatprep.subr.mxu0 0.0
      %1927 = vmatpush1.msra.mxu0 %v1165
      %1928 = vmatprep.mubr.f32.mxu0 %v974
      %1929 = vmatmul.mubr.f32.gmra.mrb[0].mxu0 %v942
      %v1930 = vpop.f32.mrb[0].mxu0
      %v1931 = vadd.f32 %v1706, %v1930
      %v1932 = vpop.f32.mrb[0].mxu0
      %1933 = vmatprep.mubr.f32.mxu0 %v975
      %1934 = vmatmul.mubr.f32.gmra.mrb[0].mxu0 %v943
      %v1935 = vpop.f32.mrb[0].mxu0
      %v1936 = vadd.f32 %v1711, %v1935
      %v1937 = vpop.f32.mrb[0].mxu0
      %1938 = vmatprep.mubr.f32.mxu0 %v976
      %1939 = vmatmul.mubr.f32.gmra.mrb[0].mxu0 %v944
      %v1940 = vpop.f32.mrb[0].mxu0
      %v1941 = vadd.f32 %v1716, %v1940
      %v1942 = vpop.f32.mrb[0].mxu0
      %1943 = vmatprep.mubr.f32.mxu0 %v977
      %1944 = vmatmul.mubr.f32.gmra.mrb[0].mxu0 %v945
      %v1945 = vpop.f32.mrb[0].mxu0
      %v1946 = vadd.f32 %v1721, %v1945
      %v1947 = vpop.f32.mrb[0].mxu0
      %1948 = vmatprep.mubr.f32.mxu0 %v978
      %1949 = vmatmul.mubr.f32.gmra.mrb[0].mxu0 %v946
      %v1950 = vpop.f32.mrb[0].mxu0
      %v1951 = vadd.f32 %v1726, %v1950
      %v1952 = vpop.f32.mrb[0].mxu0
      %1953 = vmatprep.mubr.f32.mxu0 %v979
      %1954 = vmatmul.mubr.f32.gmra.mrb[0].mxu0 %v947
      %v1955 = vpop.f32.mrb[0].mxu0
      %v1956 = vadd.f32 %v1731, %v1955
      %v1957 = vpop.f32.mrb[0].mxu0
      %1958 = vmatprep.mubr.f32.mxu0 %v980
      %1959 = vmatmul.mubr.f32.gmra.mrb[0].mxu0 %v948
      %v1960 = vpop.f32.mrb[0].mxu0
      %v1961 = vadd.f32 %v1736, %v1960
      %v1962 = vpop.f32.mrb[0].mxu0
      %1963 = vmatprep.mubr.f32.mxu0 %v981
      %1964 = vmatmul.mubr.f32.gmra.mrb[0].mxu0 %v949
      %v1965 = vpop.f32.mrb[0].mxu0
      %v1966 = vadd.f32 %v1741, %v1965
      %v1967 = vpop.f32.mrb[0].mxu0
      %1968 = vmatprep.mubr.f32.mxu0 %v982
      %1969 = vmatmul.mubr.f32.gmra.mrb[0].mxu0 %v950
      %v1970 = vpop.f32.mrb[0].mxu0
      %v1971 = vadd.f32 %v1746, %v1970
      %v1972 = vpop.f32.mrb[0].mxu0
      %1973 = vmatprep.mubr.f32.mxu0 %v983
      %1974 = vmatmul.mubr.f32.gmra.mrb[0].mxu0 %v951
      %v1975 = vpop.f32.mrb[0].mxu0
      %v1976 = vadd.f32 %v1751, %v1975
      %v1977 = vpop.f32.mrb[0].mxu0
      %1978 = vmatprep.mubr.f32.mxu0 %v984
      %1979 = vmatmul.mubr.f32.gmra.mrb[0].mxu0 %v952
      %v1980 = vpop.f32.mrb[0].mxu0
      %v1981 = vadd.f32 %v1756, %v1980
      %v1982 = vpop.f32.mrb[0].mxu0
      %1983 = vmatprep.mubr.f32.mxu0 %v985
      %1984 = vmatmul.mubr.f32.gmra.mrb[0].mxu0 %v953
      %v1985 = vpop.f32.mrb[0].mxu0
      %v1986 = vadd.f32 %v1761, %v1985
      %v1987 = vpop.f32.mrb[0].mxu0
      %1988 = vmatprep.mubr.f32.mxu0 %v986
      %1989 = vmatmul.mubr.f32.gmra.mrb[0].mxu0 %v954
      %v1990 = vpop.f32.mrb[0].mxu0
      %v1991 = vadd.f32 %v1766, %v1990
      %v1992 = vpop.f32.mrb[0].mxu0
      %1993 = vmatprep.mubr.f32.mxu0 %v987
      %1994 = vmatmul.mubr.f32.gmra.mrb[0].mxu0 %v955
      %v1995 = vpop.f32.mrb[0].mxu0
      %v1996 = vadd.f32 %v1771, %v1995
      %v1997 = vpop.f32.mrb[0].mxu0
      %1998 = vmatprep.mubr.f32.mxu0 %v988
      %1999 = vmatmul.mubr.f32.gmra.mrb[0].mxu0 %v956
      %v2000 = vpop.f32.mrb[0].mxu0
      %v2001 = vadd.f32 %v1776, %v2000
      %v2002 = vpop.f32.mrb[0].mxu0
      %2003 = vmatprep.mubr.f32.mxu0 %v989
      %2004 = vmatmul.mubr.f32.gmra.mrb[0].mxu0 %v957
      %v2005 = vpop.f32.mrb[0].mxu0
      %v2006 = vadd.f32 %v1781, %v2005
      %v2007 = vpop.f32.mrb[0].mxu0
      %2008 = vmatprep.mubr.f32.mxu0 %v990
      %2009 = vmatmul.mubr.f32.gmra.mrb[0].mxu0 %v958
      %v2010 = vpop.f32.mrb[0].mxu0
      %v2011 = vadd.f32 %v1786, %v2010
      %v2012 = vpop.f32.mrb[0].mxu0
      %2013 = vmatprep.mubr.f32.mxu0 %v991
      %2014 = vmatmul.mubr.f32.gmra.mrb[0].mxu0 %v959
      %v2015 = vpop.f32.mrb[0].mxu0
      %v2016 = vadd.f32 %v1791, %v2015
      %v2017 = vpop.f32.mrb[0].mxu0
      %2018 = vmatprep.mubr.f32.mxu0 %v992
      %2019 = vmatmul.mubr.f32.gmra.mrb[0].mxu0 %v960
      %v2020 = vpop.f32.mrb[0].mxu0
      %v2021 = vadd.f32 %v1796, %v2020
      %v2022 = vpop.f32.mrb[0].mxu0
      %2023 = vmatprep.mubr.f32.mxu0 %v993
      %2024 = vmatmul.mubr.f32.gmra.mrb[0].mxu0 %v961
      %v2025 = vpop.f32.mrb[0].mxu0
      %v2026 = vadd.f32 %v1801, %v2025
      %v2027 = vpop.f32.mrb[0].mxu0
      %2028 = vmatprep.mubr.f32.mxu0 %v994
      %2029 = vmatmul.mubr.f32.gmra.mrb[0].mxu0 %v962
      %v2030 = vpop.f32.mrb[0].mxu0
      %v2031 = vadd.f32 %v1806, %v2030
      %v2032 = vpop.f32.mrb[0].mxu0
      %2033 = vmatprep.mubr.f32.mxu0 %v995
      %2034 = vmatmul.mubr.f32.gmra.mrb[0].mxu0 %v963
      %v2035 = vpop.f32.mrb[0].mxu0
      %v2036 = vadd.f32 %v1811, %v2035
      %v2037 = vpop.f32.mrb[0].mxu0
      %2038 = vmatprep.mubr.f32.mxu0 %v996
      %2039 = vmatmul.mubr.f32.gmra.mrb[0].mxu0 %v964
      %v2040 = vpop.f32.mrb[0].mxu0
      %v2041 = vadd.f32 %v1816, %v2040
      %v2042 = vpop.f32.mrb[0].mxu0
      %2043 = vmatprep.mubr.f32.mxu0 %v997
      %2044 = vmatmul.mubr.f32.gmra.mrb[0].mxu0 %v965
      %v2045 = vpop.f32.mrb[0].mxu0
      %v2046 = vadd.f32 %v1821, %v2045
      %v2047 = vpop.f32.mrb[0].mxu0
      %2048 = vmatprep.mubr.f32.mxu0 %v998
      %2049 = vmatmul.mubr.f32.gmra.mrb[0].mxu0 %v966
      %v2050 = vpop.f32.mrb[0].mxu0
      %v2051 = vadd.f32 %v1826, %v2050
      %v2052 = vpop.f32.mrb[0].mxu0
      %2053 = vmatprep.mubr.f32.mxu0 %v999
      %2054 = vmatmul.mubr.f32.gmra.mrb[0].mxu0 %v967
      %v2055 = vpop.f32.mrb[0].mxu0
      %v2056 = vadd.f32 %v1831, %v2055
      %v2057 = vpop.f32.mrb[0].mxu0
      %2058 = vmatprep.mubr.f32.mxu0 %v1000
      %2059 = vmatmul.mubr.f32.gmra.mrb[0].mxu0 %v968
      %v2060 = vpop.f32.mrb[0].mxu0
      %v2061 = vadd.f32 %v1836, %v2060
      %v2062 = vpop.f32.mrb[0].mxu0
      %2063 = vmatprep.mubr.f32.mxu0 %v1001
      %2064 = vmatmul.mubr.f32.gmra.mrb[0].mxu0 %v969
      %v2065 = vpop.f32.mrb[0].mxu0
      %v2066 = vadd.f32 %v1841, %v2065
      %v2067 = vpop.f32.mrb[0].mxu0
      %2068 = vmatprep.mubr.f32.mxu0 %v1002
      %2069 = vmatmul.mubr.f32.gmra.mrb[0].mxu0 %v970
      %v2070 = vpop.f32.mrb[0].mxu0
      %v2071 = vadd.f32 %v1846, %v2070
      %v2072 = vpop.f32.mrb[0].mxu0
      %2073 = vmatprep.mubr.f32.mxu0 %v1003
      %2074 = vmatmul.mubr.f32.gmra.mrb[0].mxu0 %v971
      %v2075 = vpop.f32.mrb[0].mxu0
      %v2076 = vadd.f32 %v1851, %v2075
      %v2077 = vpop.f32.mrb[0].mxu0
      %2078 = vmatprep.mubr.f32.mxu0 %v1004
      %2079 = vmatmul.mubr.f32.gmra.mrb[0].mxu0 %v972
      %v2080 = vpop.f32.mrb[0].mxu0
      %v2081 = vadd.f32 %v1856, %v2080
      %v2082 = vpop.f32.mrb[0].mxu0
      %2083 = vmatprep.mubr.f32.mxu0 %v1005
      %2084 = vmatmul.mubr.f32.gmra.mrb[0].mxu0 %v973
      %v2085 = vpop.f32.mrb[0].mxu0
      %v2086 = vadd.f32 %v1861, %v2085
      %v2087 = vpop.f32.mrb[0].mxu0
      %2088 = vdwg.mxu0
      %2089 = vmatprep.subr.mxu0 0.0
      %2090 = vmatpush1.msra.mxu0 %v1166
      %2091 = vmatprep.subr.mxu0 0.0
      %2092 = vmatpush1.msra.mxu0 %v1167
      %2093 = vmatprep.subr.mxu0 0.0
      %2094 = vmatpush1.msra.mxu0 %v1168
      %2095 = vmatprep.subr.mxu0 0.0
      %2096 = vmatpush1.msra.mxu0 %v1169
      %2097 = vmatprep.subr.mxu0 0.0
      %2098 = vmatpush1.msra.mxu0 %v1170
      %2099 = vmatprep.subr.mxu0 0.0
      %2100 = vmatpush1.msra.mxu0 %v1171
      %2101 = vmatprep.subr.mxu0 0.0
      %2102 = vmatpush1.msra.mxu0 %v1172
      %2103 = vmatprep.subr.mxu0 0.0
      %2104 = vmatpush1.msra.mxu0 %v1173
      %2105 = vmatprep.subr.mxu0 0.0
      %2106 = vmatpush1.msra.mxu0 %v1174
      %2107 = vmatprep.subr.mxu0 0.0
      %2108 = vmatpush1.msra.mxu0 %v1175
      %2109 = vmatprep.subr.mxu0 0.0
      %2110 = vmatpush1.msra.mxu0 %v1176
      %2111 = vmatprep.subr.mxu0 0.0
      %2112 = vmatpush1.msra.mxu0 %v1177
      %2113 = vmatprep.subr.mxu0 0.0
      %2114 = vmatpush1.msra.mxu0 %v1178
      %2115 = vmatprep.subr.mxu0 0.0
      %2116 = vmatpush1.msra.mxu0 %v1179
      %2117 = vmatprep.subr.mxu0 0.0
      %2118 = vmatpush1.msra.mxu0 %v1180
      %2119 = vmatprep.subr.mxu0 0.0
      %2120 = vmatpush1.msra.mxu0 %v1181
      %2121 = vmatprep.subr.mxu0 0.0
      %2122 = vmatpush1.msra.mxu0 0.0
      %2123 = vmatprep.subr.mxu0 0.0
      %2124 = vmatpush1.msra.mxu0 0.0
      %2125 = vmatprep.subr.mxu0 0.0
      %2126 = vmatpush1.msra.mxu0 0.0
      %2127 = vmatprep.subr.mxu0 0.0
      %2128 = vmatpush1.msra.mxu0 0.0
      %2129 = vmatprep.subr.mxu0 0.0
      %2130 = vmatpush1.msra.mxu0 0.0
      %2131 = vmatprep.subr.mxu0 0.0
      %2132 = vmatpush1.msra.mxu0 0.0
      %2133 = vmatprep.subr.mxu0 0.0
      %2134 = vmatpush1.msra.mxu0 0.0
      %2135 = vmatprep.subr.mxu0 0.0
      %2136 = vmatpush1.msra.mxu0 0.0
      %2137 = vmatprep.subr.mxu0 0.0
      %2138 = vmatpush1.msra.mxu0 0.0
      %2139 = vmatprep.subr.mxu0 0.0
      %2140 = vmatpush1.msra.mxu0 0.0
      %2141 = vmatprep.subr.mxu0 0.0
      %2142 = vmatpush1.msra.mxu0 0.0
      %2143 = vmatprep.subr.mxu0 0.0
      %2144 = vmatpush1.msra.mxu0 0.0
      %2145 = vmatprep.subr.mxu0 0.0
      %2146 = vmatpush1.msra.mxu0 0.0
      %2147 = vmatprep.subr.mxu0 0.0
      %2148 = vmatpush1.msra.mxu0 0.0
      %2149 = vmatprep.subr.mxu0 0.0
      %2150 = vmatpush1.msra.mxu0 0.0
      %2151 = vmatprep.subr.mxu0 0.0
      %2152 = vmatpush1.msra.mxu0 0.0
      %2153 = vmatprep.mubr.f32.mxu0 0.0
      %2154 = vmatmul.mubr.f32.gmra.mrb[0].mxu0 %v1006
      %v2155 = vpop.f32.mrb[0].mxu0
      %v2156 = vadd.f32 %v1931, %v2155
      %v2157 = vpop.f32.mrb[0].mxu0
      %2158 = vmatprep.mubr.f32.mxu0 0.0
      %2159 = vmatmul.mubr.f32.gmra.mrb[0].mxu0 %v1007
      %v2160 = vpop.f32.mrb[0].mxu0
      %v2161 = vadd.f32 %v1936, %v2160
      %v2162 = vpop.f32.mrb[0].mxu0
      %2163 = vmatprep.mubr.f32.mxu0 0.0
      %2164 = vmatmul.mubr.f32.gmra.mrb[0].mxu0 %v1008
      %v2165 = vpop.f32.mrb[0].mxu0
      %v2166 = vadd.f32 %v1941, %v2165
      %v2167 = vpop.f32.mrb[0].mxu0
      %2168 = vmatprep.mubr.f32.mxu0 0.0
      %2169 = vmatmul.mubr.f32.gmra.mrb[0].mxu0 %v1009
      %v2170 = vpop.f32.mrb[0].mxu0
      %v2171 = vadd.f32 %v1946, %v2170
      %v2172 = vpop.f32.mrb[0].mxu0
      %2173 = vmatprep.mubr.f32.mxu0 0.0
      %2174 = vmatmul.mubr.f32.gmra.mrb[0].mxu0 %v1010
      %v2175 = vpop.f32.mrb[0].mxu0
      %v2176 = vadd.f32 %v1951, %v2175
      %v2177 = vpop.f32.mrb[0].mxu0
      %2178 = vmatprep.mubr.f32.mxu0 0.0
      %2179 = vmatmul.mubr.f32.gmra.mrb[0].mxu0 %v1011
      %v2180 = vpop.f32.mrb[0].mxu0
      %v2181 = vadd.f32 %v1956, %v2180
      %v2182 = vpop.f32.mrb[0].mxu0
      %2183 = vmatprep.mubr.f32.mxu0 0.0
      %2184 = vmatmul.mubr.f32.gmra.mrb[0].mxu0 %v1012
      %v2185 = vpop.f32.mrb[0].mxu0
      %v2186 = vadd.f32 %v1961, %v2185
      %v2187 = vpop.f32.mrb[0].mxu0
      %2188 = vmatprep.mubr.f32.mxu0 0.0
      %2189 = vmatmul.mubr.f32.gmra.mrb[0].mxu0 %v1013
      %v2190 = vpop.f32.mrb[0].mxu0
      %v2191 = vadd.f32 %v1966, %v2190
      %v2192 = vpop.f32.mrb[0].mxu0
      %2193 = vmatprep.mubr.f32.mxu0 0.0
      %2194 = vmatmul.mubr.f32.gmra.mrb[0].mxu0 %v1014
      %v2195 = vpop.f32.mrb[0].mxu0
      %v2196 = vadd.f32 %v1971, %v2195
      %v2197 = vpop.f32.mrb[0].mxu0
      %2198 = vmatprep.mubr.f32.mxu0 0.0
      %2199 = vmatmul.mubr.f32.gmra.mrb[0].mxu0 %v1015
      %v2200 = vpop.f32.mrb[0].mxu0
      %v2201 = vadd.f32 %v1976, %v2200
      %v2202 = vpop.f32.mrb[0].mxu0
      %2203 = vmatprep.mubr.f32.mxu0 0.0
      %2204 = vmatmul.mubr.f32.gmra.mrb[0].mxu0 %v1016
      %v2205 = vpop.f32.mrb[0].mxu0
      %v2206 = vadd.f32 %v1981, %v2205
      %v2207 = vpop.f32.mrb[0].mxu0
      %2208 = vmatprep.mubr.f32.mxu0 0.0
      %2209 = vmatmul.mubr.f32.gmra.mrb[0].mxu0 %v1017
      %v2210 = vpop.f32.mrb[0].mxu0
      %v2211 = vadd.f32 %v1986, %v2210
      %v2212 = vpop.f32.mrb[0].mxu0
      %2213 = vmatprep.mubr.f32.mxu0 0.0
      %2214 = vmatmul.mubr.f32.gmra.mrb[0].mxu0 %v1018
      %v2215 = vpop.f32.mrb[0].mxu0
      %v2216 = vadd.f32 %v1991, %v2215
      %v2217 = vpop.f32.mrb[0].mxu0
      %2218 = vmatprep.mubr.f32.mxu0 0.0
      %2219 = vmatmul.mubr.f32.gmra.mrb[0].mxu0 %v1019
      %v2220 = vpop.f32.mrb[0].mxu0
      %v2221 = vadd.f32 %v1996, %v2220
      %v2222 = vpop.f32.mrb[0].mxu0
      %2223 = vmatprep.mubr.f32.mxu0 0.0
      %2224 = vmatmul.mubr.f32.gmra.mrb[0].mxu0 %v1020
      %v2225 = vpop.f32.mrb[0].mxu0
      %v2226 = vadd.f32 %v2001, %v2225
      %v2227 = vpop.f32.mrb[0].mxu0
      %2228 = vmatprep.mubr.f32.mxu0 0.0
      %2229 = vmatmul.mubr.f32.gmra.mrb[0].mxu0 %v1021
      %v2230 = vpop.f32.mrb[0].mxu0
      %v2231 = vadd.f32 %v2006, %v2230
      %v2232 = vpop.f32.mrb[0].mxu0
      %2233 = vmatprep.mubr.f32.mxu0 0.0
      %2234 = vmatmul.mubr.f32.gmra.mrb[0].mxu0 %v1022
      %v2235 = vpop.f32.mrb[0].mxu0
      %v2236 = vadd.f32 %v2011, %v2235
      %v2237 = vpop.f32.mrb[0].mxu0
      %2238 = vmatprep.mubr.f32.mxu0 0.0
      %2239 = vmatmul.mubr.f32.gmra.mrb[0].mxu0 %v1023
      %v2240 = vpop.f32.mrb[0].mxu0
      %v2241 = vadd.f32 %v2016, %v2240
      %v2242 = vpop.f32.mrb[0].mxu0
      %2243 = vmatprep.mubr.f32.mxu0 0.0
      %2244 = vmatmul.mubr.f32.gmra.mrb[0].mxu0 %v1024
      %v2245 = vpop.f32.mrb[0].mxu0
      %v2246 = vadd.f32 %v2021, %v2245
      %v2247 = vpop.f32.mrb[0].mxu0
      %2248 = vmatprep.mubr.f32.mxu0 0.0
      %2249 = vmatmul.mubr.f32.gmra.mrb[0].mxu0 %v1025
      %v2250 = vpop.f32.mrb[0].mxu0
      %v2251 = vadd.f32 %v2026, %v2250
      %v2252 = vpop.f32.mrb[0].mxu0
      %2253 = vmatprep.mubr.f32.mxu0 0.0
      %2254 = vmatmul.mubr.f32.gmra.mrb[0].mxu0 %v1026
      %v2255 = vpop.f32.mrb[0].mxu0
      %v2256 = vadd.f32 %v2031, %v2255
      %v2257 = vpop.f32.mrb[0].mxu0
      %2258 = vmatprep.mubr.f32.mxu0 0.0
      %2259 = vmatmul.mubr.f32.gmra.mrb[0].mxu0 %v1027
      %v2260 = vpop.f32.mrb[0].mxu0
      %v2261 = vadd.f32 %v2036, %v2260
      %v2262 = vpop.f32.mrb[0].mxu0
      %2263 = vmatprep.mubr.f32.mxu0 0.0
      %2264 = vmatmul.mubr.f32.gmra.mrb[0].mxu0 %v1028
      %v2265 = vpop.f32.mrb[0].mxu0
      %v2266 = vadd.f32 %v2041, %v2265
      %v2267 = vpop.f32.mrb[0].mxu0
      %2268 = vmatprep.mubr.f32.mxu0 0.0
      %2269 = vmatmul.mubr.f32.gmra.mrb[0].mxu0 %v1029
      %v2270 = vpop.f32.mrb[0].mxu0
      %v2271 = vadd.f32 %v2046, %v2270
      %v2272 = vpop.f32.mrb[0].mxu0
      %2273 = vmatprep.mubr.f32.mxu0 0.0
      %2274 = vmatmul.mubr.f32.gmra.mrb[0].mxu0 %v1030
      %v2275 = vpop.f32.mrb[0].mxu0
      %v2276 = vadd.f32 %v2051, %v2275
      %v2277 = vpop.f32.mrb[0].mxu0
      %2278 = vmatprep.mubr.f32.mxu0 0.0
      %2279 = vmatmul.mubr.f32.gmra.mrb[0].mxu0 %v1031
      %v2280 = vpop.f32.mrb[0].mxu0
      %v2281 = vadd.f32 %v2056, %v2280
      %v2282 = vpop.f32.mrb[0].mxu0
      %2283 = vmatprep.mubr.f32.mxu0 0.0
      %2284 = vmatmul.mubr.f32.gmra.mrb[0].mxu0 %v1032
      %v2285 = vpop.f32.mrb[0].mxu0
      %v2286 = vadd.f32 %v2061, %v2285
      %v2287 = vpop.f32.mrb[0].mxu0
      %2288 = vmatprep.mubr.f32.mxu0 0.0
      %2289 = vmatmul.mubr.f32.gmra.mrb[0].mxu0 %v1033
      %v2290 = vpop.f32.mrb[0].mxu0
      %v2291 = vadd.f32 %v2066, %v2290
      %v2292 = vpop.f32.mrb[0].mxu0
      %2293 = vmatprep.mubr.f32.mxu0 0.0
      %2294 = vmatmul.mubr.f32.gmra.mrb[0].mxu0 %v1034
      %v2295 = vpop.f32.mrb[0].mxu0
      %v2296 = vadd.f32 %v2071, %v2295
      %v2297 = vpop.f32.mrb[0].mxu0
      %2298 = vmatprep.mubr.f32.mxu0 0.0
      %2299 = vmatmul.mubr.f32.gmra.mrb[0].mxu0 %v1035
      %v2300 = vpop.f32.mrb[0].mxu0
      %v2301 = vadd.f32 %v2076, %v2300
      %v2302 = vpop.f32.mrb[0].mxu0
      %2303 = vmatprep.mubr.f32.mxu0 0.0
      %2304 = vmatmul.mubr.f32.gmra.mrb[0].mxu0 %v1036
      %v2305 = vpop.f32.mrb[0].mxu0
      %v2306 = vadd.f32 %v2081, %v2305
      %v2307 = vpop.f32.mrb[0].mxu0
      %2308 = vmatprep.mubr.f32.mxu0 0.0
      %2309 = vmatmul.mubr.f32.gmra.mrb[0].mxu0 %v1037
      %v2310 = vpop.f32.mrb[0].mxu0
      %v2311 = vadd.f32 %v2086, %v2310
      %v2312 = vpop.f32.mrb[0].mxu0
      %2313 = vdwg.mxu0
      %v2314 = vmax.f32 %v2156, 0.0
      %v2315 = vmax.f32 %v2161, 0.0
      %v2316 = vmax.f32 %v2166, 0.0
      %v2317 = vmax.f32 %v2171, 0.0
      %v2318 = vmax.f32 %v2176, 0.0
      %v2319 = vmax.f32 %v2181, 0.0
      %v2320 = vmax.f32 %v2186, 0.0
      %v2321 = vmax.f32 %v2191, 0.0
      %v2322 = vmax.f32 %v2196, 0.0
      %v2323 = vmax.f32 %v2201, 0.0
      %v2324 = vmax.f32 %v2206, 0.0
      %v2325 = vmax.f32 %v2211, 0.0
      %v2326 = vmax.f32 %v2216, 0.0
      %v2327 = vmax.f32 %v2221, 0.0
      %v2328 = vmax.f32 %v2226, 0.0
      %v2329 = vmax.f32 %v2231, 0.0
      %v2330 = vmax.f32 %v2236, 0.0
      %v2331 = vmax.f32 %v2241, 0.0
      %v2332 = vmax.f32 %v2246, 0.0
      %v2333 = vmax.f32 %v2251, 0.0
      %v2334 = vmax.f32 %v2256, 0.0
      %v2335 = vmax.f32 %v2261, 0.0
      %v2336 = vmax.f32 %v2266, 0.0
      %v2337 = vmax.f32 %v2271, 0.0
      %v2338 = vmax.f32 %v2276, 0.0
      %v2339 = vmax.f32 %v2281, 0.0
      %v2340 = vmax.f32 %v2286, 0.0
      %v2341 = vmax.f32 %v2291, 0.0
      %v2342 = vmax.f32 %v2296, 0.0
      %v2343 = vmax.f32 %v2301, 0.0
      %v2344 = vmax.f32 %v2306, 0.0
      %v2345 = vmax.f32 %v2311, 0.0
      %2346 = vst [vmem:[%s716 + $0x1] sm:$0xff] %v2314
      %2347 = vst [vmem:[%s716 + $0x9] sm:$0xff] %v2315
      %2348 = vst [vmem:[%s716 + $0x19] sm:$0xff] %v2316
      %2349 = vst [vmem:[%s716 + $0x21] sm:$0xff] %v2317
      %2350 = vst [vmem:[%s716 + $0x31] sm:$0xff] %v2318
      %2351 = vst [vmem:[%s716 + $0x39] sm:$0xff] %v2319
      %2352 = vst [vmem:[%s716 + $0x49] sm:$0xff] %v2320
      %2353 = vst [vmem:[%s716 + $0x51] sm:$0xff] %v2321
      %2354 = vst [vmem:[%s716 + $0x61] sm:$0xff] %v2322
      %2355 = vst [vmem:[%s716 + $0x69] sm:$0xff] %v2323
      %2356 = vst [vmem:[%s716 + $0x79] sm:$0xff] %v2324
      %2357 = vst [vmem:[%s716 + $0x81] sm:$0xff] %v2325
      %2358 = vst [vmem:[%s716 + $0x91] sm:$0xff] %v2326
      %2359 = vst [vmem:[%s716 + $0x99] sm:$0xff] %v2327
      %2360 = vst [vmem:[%s716 + $0xa9] sm:$0xff] %v2328
      %2361 = vst [vmem:[%s716 + $0xb1] sm:$0xff] %v2329
      %2362 = vst [vmem:[%s716 + $0xc1] sm:$0xff] %v2330
      %2363 = vst [vmem:[%s716 + $0xc9] sm:$0xff] %v2331
      %2364 = vst [vmem:[%s716 + $0xd9] sm:$0xff] %v2332
      %2365 = vst [vmem:[%s716 + $0xe1] sm:$0xff] %v2333
      %2366 = vst [vmem:[%s716 + $0xf1] sm:$0xff] %v2334
      %2367 = vst [vmem:[%s716 + $0xf9] sm:$0xff] %v2335
      %2368 = vst [vmem:[%s716 + $0x109] sm:$0xff] %v2336
      %2369 = vst [vmem:[%s716 + $0x111] sm:$0xff] %v2337
      %2370 = vst [vmem:[%s716 + $0x121] sm:$0xff] %v2338
      %2371 = vst [vmem:[%s716 + $0x129] sm:$0xff] %v2339
      %2372 = vst [vmem:[%s716 + $0x139] sm:$0xff] %v2340
      %2373 = vst [vmem:[%s716 + $0x141] sm:$0xff] %v2341
      %2374 = vst [vmem:[%s716 + $0x151] sm:$0xff] %v2342
      %2375 = vst [vmem:[%s716 + $0x159] sm:$0xff] %v2343
      %2376 = vst [vmem:[%s716 + $0x169] sm:$0xff] %v2344
      %2377 = vst [vmem:[%s716 + $0x171] sm:$0xff] %v2345
      %v2378 = vld [vmem:[#allocation2] sm:$0xff]
      %v2379 = vld [vmem:[#allocation2 + $0x8] sm:$0xff]
      %v2380 = vld [vmem:[#allocation2 + $0x18] sm:$0xff]
      %v2381 = vld [vmem:[#allocation2 + $0x20] sm:$0xff]
      %v2382 = vld [vmem:[#allocation2 + $0x30] sm:$0xff]
      %v2383 = vld [vmem:[#allocation2 + $0x38] sm:$0xff]
      %v2384 = vld [vmem:[#allocation2 + $0x48] sm:$0xff]
      %v2385 = vld [vmem:[#allocation2 + $0x50] sm:$0xff]
      %v2386 = vld [vmem:[#allocation2 + $0x60] sm:$0xff]
      %v2387 = vld [vmem:[#allocation2 + $0x68] sm:$0xff]
      %v2388 = vld [vmem:[#allocation2 + $0x78] sm:$0xff]
      %v2389 = vld [vmem:[#allocation2 + $0x80] sm:$0xff]
      %v2390 = vld [vmem:[#allocation2 + $0x90] sm:$0xff]
      %v2391 = vld [vmem:[#allocation2 + $0x98] sm:$0xff]
      %v2392 = vld [vmem:[#allocation2 + $0xa8] sm:$0xff]
      %v2393 = vld [vmem:[#allocation2 + $0xb0] sm:$0xff]
      %v2394 = vld [vmem:[#allocation2 + $0xc0] sm:$0xff]
      %v2395 = vld [vmem:[#allocation2 + $0xc8] sm:$0xff]
      %v2396 = vld [vmem:[#allocation2 + $0xd8] sm:$0xff]
      %v2397 = vld [vmem:[#allocation2 + $0xe0] sm:$0xff]
      %v2398 = vld [vmem:[#allocation2 + $0xf0] sm:$0xff]
      %v2399 = vld [vmem:[#allocation2 + $0xf8] sm:$0xff]
      %v2400 = vld [vmem:[#allocation2 + $0x108] sm:$0xff]
      %v2401 = vld [vmem:[#allocation2 + $0x110] sm:$0xff]
      %v2402 = vld [vmem:[#allocation2 + $0x120] sm:$0xff]
      %v2403 = vld [vmem:[#allocation2 + $0x128] sm:$0xff]
      %v2404 = vld [vmem:[#allocation2 + $0x138] sm:$0xff]
      %v2405 = vld [vmem:[#allocation2 + $0x140] sm:$0xff]
      %v2406 = vld [vmem:[#allocation2 + $0x150] sm:$0xff]
      %v2407 = vld [vmem:[#allocation2 + $0x158] sm:$0xff]
      %v2408 = vld [vmem:[#allocation2 + $0x168] sm:$0xff]
      %v2409 = vld [vmem:[#allocation2 + $0x170] sm:$0xff]
      %v2410 = vld [vmem:[#allocation2 + $0x1] sm:$0xff]
      %v2411 = vld [vmem:[#allocation2 + $0x9] sm:$0xff]
      %v2412 = vld [vmem:[#allocation2 + $0x19] sm:$0xff]
      %v2413 = vld [vmem:[#allocation2 + $0x21] sm:$0xff]
      %v2414 = vld [vmem:[#allocation2 + $0x31] sm:$0xff]
      %v2415 = vld [vmem:[#allocation2 + $0x39] sm:$0xff]
      %v2416 = vld [vmem:[#allocation2 + $0x49] sm:$0xff]
      %v2417 = vld [vmem:[#allocation2 + $0x51] sm:$0xff]
      %v2418 = vld [vmem:[#allocation2 + $0x61] sm:$0xff]
      %v2419 = vld [vmem:[#allocation2 + $0x69] sm:$0xff]
      %v2420 = vld [vmem:[#allocation2 + $0x79] sm:$0xff]
      %v2421 = vld [vmem:[#allocation2 + $0x81] sm:$0xff]
      %v2422 = vld [vmem:[#allocation2 + $0x91] sm:$0xff]
      %v2423 = vld [vmem:[#allocation2 + $0x99] sm:$0xff]
      %v2424 = vld [vmem:[#allocation2 + $0xa9] sm:$0xff]
      %v2425 = vld [vmem:[#allocation2 + $0xb1] sm:$0xff]
      %v2426 = vld [vmem:[#allocation2 + $0xc1] sm:$0xff]
      %v2427 = vld [vmem:[#allocation2 + $0xc9] sm:$0xff]
      %v2428 = vld [vmem:[#allocation2 + $0xd9] sm:$0xff]
      %v2429 = vld [vmem:[#allocation2 + $0xe1] sm:$0xff]
      %v2430 = vld [vmem:[#allocation2 + $0xf1] sm:$0xff]
      %v2431 = vld [vmem:[#allocation2 + $0xf9] sm:$0xff]
      %v2432 = vld [vmem:[#allocation2 + $0x109] sm:$0xff]
      %v2433 = vld [vmem:[#allocation2 + $0x111] sm:$0xff]
      %v2434 = vld [vmem:[#allocation2 + $0x121] sm:$0xff]
      %v2435 = vld [vmem:[#allocation2 + $0x129] sm:$0xff]
      %v2436 = vld [vmem:[#allocation2 + $0x139] sm:$0xff]
      %v2437 = vld [vmem:[#allocation2 + $0x141] sm:$0xff]
      %v2438 = vld [vmem:[#allocation2 + $0x151] sm:$0xff]
      %v2439 = vld [vmem:[#allocation2 + $0x159] sm:$0xff]
      %v2440 = vld [vmem:[#allocation2 + $0x169] sm:$0xff]
      %v2441 = vld [vmem:[#allocation2 + $0x171] sm:$0xff]
      %v2442 = vld [vmem:[#allocation2 + $0x2] sm:$0xff]
      %v2443 = vld [vmem:[#allocation2 + $0xa] sm:$0xff]
      %v2444 = vld [vmem:[#allocation2 + $0x1a] sm:$0xff]
      %v2445 = vld [vmem:[#allocation2 + $0x22] sm:$0xff]
      %v2446 = vld [vmem:[#allocation2 + $0x32] sm:$0xff]
      %v2447 = vld [vmem:[#allocation2 + $0x3a] sm:$0xff]
      %v2448 = vld [vmem:[#allocation2 + $0x4a] sm:$0xff]
      %v2449 = vld [vmem:[#allocation2 + $0x52] sm:$0xff]
      %v2450 = vld [vmem:[#allocation2 + $0x62] sm:$0xff]
      %v2451 = vld [vmem:[#allocation2 + $0x6a] sm:$0xff]
      %v2452 = vld [vmem:[#allocation2 + $0x7a] sm:$0xff]
      %v2453 = vld [vmem:[#allocation2 + $0x82] sm:$0xff]
      %v2454 = vld [vmem:[#allocation2 + $0x92] sm:$0xff]
      %v2455 = vld [vmem:[#allocation2 + $0x9a] sm:$0xff]
      %v2456 = vld [vmem:[#allocation2 + $0xaa] sm:$0xff]
      %v2457 = vld [vmem:[#allocation2 + $0xb2] sm:$0xff]
      %v2458 = vld [vmem:[#allocation2 + $0xc2] sm:$0xff]
      %v2459 = vld [vmem:[#allocation2 + $0xca] sm:$0xff]
      %v2460 = vld [vmem:[#allocation2 + $0xda] sm:$0xff]
      %v2461 = vld [vmem:[#allocation2 + $0xe2] sm:$0xff]
      %v2462 = vld [vmem:[#allocation2 + $0xf2] sm:$0xff]
      %v2463 = vld [vmem:[#allocation2 + $0xfa] sm:$0xff]
      %v2464 = vld [vmem:[#allocation2 + $0x10a] sm:$0xff]
      %v2465 = vld [vmem:[#allocation2 + $0x112] sm:$0xff]
      %v2466 = vld [vmem:[#allocation2 + $0x122] sm:$0xff]
      %v2467 = vld [vmem:[#allocation2 + $0x12a] sm:$0xff]
      %v2468 = vld [vmem:[#allocation2 + $0x13a] sm:$0xff]
      %v2469 = vld [vmem:[#allocation2 + $0x142] sm:$0xff]
      %v2470 = vld [vmem:[#allocation2 + $0x152] sm:$0xff]
      %v2471 = vld [vmem:[#allocation2 + $0x15a] sm:$0xff]
      %v2472 = vld [vmem:[#allocation2 + $0x16a] sm:$0xff]
      %v2473 = vld [vmem:[#allocation2 + $0x172] sm:$0xff]
      %v2474 = vld [vmem:[%s716] sm:$0xff]
      %v2475 = vld [vmem:[%s716 + $0x8] sm:$0xff]
      %v2476 = vld [vmem:[%s716 + $0x18] sm:$0xff]
      %v2477 = vld [vmem:[%s716 + $0x20] sm:$0xff]
      %v2478 = vld [vmem:[%s716 + $0x30] sm:$0xff]
      %v2479 = vld [vmem:[%s716 + $0x38] sm:$0xff]
      %v2480 = vld [vmem:[%s716 + $0x48] sm:$0xff]
      %v2481 = vld [vmem:[%s716 + $0x50] sm:$0xff]
      %v2482 = vld [vmem:[%s716 + $0x60] sm:$0xff]
      %v2483 = vld [vmem:[%s716 + $0x68] sm:$0xff]
      %v2484 = vld [vmem:[%s716 + $0x78] sm:$0xff]
      %v2485 = vld [vmem:[%s716 + $0x80] sm:$0xff]
      %v2486 = vld [vmem:[%s716 + $0x90] sm:$0xff]
      %v2487 = vld [vmem:[%s716 + $0x98] sm:$0xff]
      %v2488 = vld [vmem:[%s716 + $0xa8] sm:$0xff]
      %v2489 = vld [vmem:[%s716 + $0xb0] sm:$0xff]
      %v2490 = vld [vmem:[%s716 + $0xc0] sm:$0xff]
      %v2491 = vld [vmem:[%s716 + $0xc8] sm:$0xff]
      %v2492 = vld [vmem:[%s716 + $0xd8] sm:$0xff]
      %v2493 = vld [vmem:[%s716 + $0xe0] sm:$0xff]
      %v2494 = vld [vmem:[%s716 + $0xf0] sm:$0xff]
      %v2495 = vld [vmem:[%s716 + $0xf8] sm:$0xff]
      %v2496 = vld [vmem:[%s716 + $0x108] sm:$0xff]
      %v2497 = vld [vmem:[%s716 + $0x110] sm:$0xff]
      %v2498 = vld [vmem:[%s716 + $0x120] sm:$0xff]
      %v2499 = vld [vmem:[%s716 + $0x128] sm:$0xff]
      %v2500 = vld [vmem:[%s716 + $0x138] sm:$0xff]
      %v2501 = vld [vmem:[%s716 + $0x140] sm:$0xff]
      %v2502 = vld [vmem:[%s716 + $0x150] sm:$0xff]
      %v2503 = vld [vmem:[%s716 + $0x158] sm:$0xff]
      %v2504 = vld [vmem:[%s716 + $0x168] sm:$0xff]
      %v2505 = vld [vmem:[%s716 + $0x170] sm:$0xff]
      %v2506 = vld [vmem:[%s716 + $0x1] sm:$0xff]
      %v2507 = vld [vmem:[%s716 + $0x9] sm:$0xff]
      %v2508 = vld [vmem:[%s716 + $0x19] sm:$0xff]
      %v2509 = vld [vmem:[%s716 + $0x21] sm:$0xff]
      %v2510 = vld [vmem:[%s716 + $0x31] sm:$0xff]
      %v2511 = vld [vmem:[%s716 + $0x39] sm:$0xff]
      %v2512 = vld [vmem:[%s716 + $0x49] sm:$0xff]
      %v2513 = vld [vmem:[%s716 + $0x51] sm:$0xff]
      %v2514 = vld [vmem:[%s716 + $0x61] sm:$0xff]
      %v2515 = vld [vmem:[%s716 + $0x69] sm:$0xff]
      %v2516 = vld [vmem:[%s716 + $0x79] sm:$0xff]
      %v2517 = vld [vmem:[%s716 + $0x81] sm:$0xff]
      %v2518 = vld [vmem:[%s716 + $0x91] sm:$0xff]
      %v2519 = vld [vmem:[%s716 + $0x99] sm:$0xff]
      %v2520 = vld [vmem:[%s716 + $0xa9] sm:$0xff]
      %v2521 = vld [vmem:[%s716 + $0xb1] sm:$0xff]
      %v2522 = vld [vmem:[%s716 + $0xc1] sm:$0xff]
      %v2523 = vld [vmem:[%s716 + $0xc9] sm:$0xff]
      %v2524 = vld [vmem:[%s716 + $0xd9] sm:$0xff]
      %v2525 = vld [vmem:[%s716 + $0xe1] sm:$0xff]
      %v2526 = vld [vmem:[%s716 + $0xf1] sm:$0xff]
      %v2527 = vld [vmem:[%s716 + $0xf9] sm:$0xff]
      %v2528 = vld [vmem:[%s716 + $0x109] sm:$0xff]
      %v2529 = vld [vmem:[%s716 + $0x111] sm:$0xff]
      %v2530 = vld [vmem:[%s716 + $0x121] sm:$0xff]
      %v2531 = vld [vmem:[%s716 + $0x129] sm:$0xff]
      %v2532 = vld [vmem:[%s716 + $0x139] sm:$0xff]
      %v2533 = vld [vmem:[%s716 + $0x141] sm:$0xff]
      %v2534 = vld [vmem:[%s716 + $0x151] sm:$0xff]
      %v2535 = vld [vmem:[%s716 + $0x159] sm:$0xff]
      %v2536 = vld [vmem:[%s716 + $0x169] sm:$0xff]
      %v2537 = vld [vmem:[%s716 + $0x171] sm:$0xff]
      %v2538 = vld [vmem:[%s716 + $0x2] sm:$0xff]
      %v2539 = vld [vmem:[%s716 + $0xa] sm:$0xff]
      %v2540 = vld [vmem:[%s716 + $0x1a] sm:$0xff]
      %v2541 = vld [vmem:[%s716 + $0x22] sm:$0xff]
      %v2542 = vld [vmem:[%s716 + $0x32] sm:$0xff]
      %v2543 = vld [vmem:[%s716 + $0x3a] sm:$0xff]
      %v2544 = vld [vmem:[%s716 + $0x4a] sm:$0xff]
      %v2545 = vld [vmem:[%s716 + $0x52] sm:$0xff]
      %v2546 = vld [vmem:[%s716 + $0x62] sm:$0xff]
      %v2547 = vld [vmem:[%s716 + $0x6a] sm:$0xff]
      %v2548 = vld [vmem:[%s716 + $0x7a] sm:$0xff]
      %v2549 = vld [vmem:[%s716 + $0x82] sm:$0xff]
      %v2550 = vld [vmem:[%s716 + $0x92] sm:$0xff]
      %v2551 = vld [vmem:[%s716 + $0x9a] sm:$0xff]
      %v2552 = vld [vmem:[%s716 + $0xaa] sm:$0xff]
      %v2553 = vld [vmem:[%s716 + $0xb2] sm:$0xff]
      %v2554 = vld [vmem:[%s716 + $0xc2] sm:$0xff]
      %v2555 = vld [vmem:[%s716 + $0xca] sm:$0xff]
      %v2556 = vld [vmem:[%s716 + $0xda] sm:$0xff]
      %v2557 = vld [vmem:[%s716 + $0xe2] sm:$0xff]
      %v2558 = vld [vmem:[%s716 + $0xf2] sm:$0xff]
      %v2559 = vld [vmem:[%s716 + $0xfa] sm:$0xff]
      %v2560 = vld [vmem:[%s716 + $0x10a] sm:$0xff]
      %v2561 = vld [vmem:[%s716 + $0x112] sm:$0xff]
      %v2562 = vld [vmem:[%s716 + $0x122] sm:$0xff]
      %v2563 = vld [vmem:[%s716 + $0x12a] sm:$0xff]
      %v2564 = vld [vmem:[%s716 + $0x13a] sm:$0xff]
      %v2565 = vld [vmem:[%s716 + $0x142] sm:$0xff]
      %v2566 = vld [vmem:[%s716 + $0x152] sm:$0xff]
      %v2567 = vld [vmem:[%s716 + $0x15a] sm:$0xff]
      %v2568 = vld [vmem:[%s716 + $0x16a] sm:$0xff]
      %v2569 = vld [vmem:[%s716 + $0x172] sm:$0xff]
      %v2570 = vld [vmem:[%s941] sm:$0xff]
      %v2571 = vld [vmem:[%s941 + $0x8] sm:$0xff]
      %v2572 = vld [vmem:[%s941 + $0x18] sm:$0xff]
      %v2573 = vld [vmem:[%s941 + $0x20] sm:$0xff]
      %v2574 = vld [vmem:[%s941 + $0x30] sm:$0xff]
      %v2575 = vld [vmem:[%s941 + $0x38] sm:$0xff]
      %v2576 = vld [vmem:[%s941 + $0x48] sm:$0xff]
      %v2577 = vld [vmem:[%s941 + $0x50] sm:$0xff]
      %v2578 = vld [vmem:[%s941 + $0x60] sm:$0xff]
      %v2579 = vld [vmem:[%s941 + $0x68] sm:$0xff]
      %v2580 = vld [vmem:[%s941 + $0x78] sm:$0xff]
      %v2581 = vld [vmem:[%s941 + $0x80] sm:$0xff]
      %v2582 = vld [vmem:[%s941 + $0x90] sm:$0xff]
      %v2583 = vld [vmem:[%s941 + $0x98] sm:$0xff]
      %v2584 = vld [vmem:[%s941 + $0xa8] sm:$0xff]
      %v2585 = vld [vmem:[%s941 + $0xb0] sm:$0xff]
      %v2586 = vld [vmem:[%s941 + $0xc0] sm:$0xff]
      %v2587 = vld [vmem:[%s941 + $0xc8] sm:$0xff]
      %v2588 = vld [vmem:[%s941 + $0xd8] sm:$0xff]
      %v2589 = vld [vmem:[%s941 + $0xe0] sm:$0xff]
      %v2590 = vld [vmem:[%s941 + $0xf0] sm:$0xff]
      %v2591 = vld [vmem:[%s941 + $0xf8] sm:$0xff]
      %v2592 = vld [vmem:[%s941 + $0x108] sm:$0xff]
      %v2593 = vld [vmem:[%s941 + $0x110] sm:$0xff]
      %v2594 = vld [vmem:[%s941 + $0x120] sm:$0xff]
      %v2595 = vld [vmem:[%s941 + $0x128] sm:$0xff]
      %v2596 = vld [vmem:[%s941 + $0x138] sm:$0xff]
      %v2597 = vld [vmem:[%s941 + $0x140] sm:$0xff]
      %v2598 = vld [vmem:[%s941 + $0x150] sm:$0xff]
      %v2599 = vld [vmem:[%s941 + $0x158] sm:$0xff]
      %v2600 = vld [vmem:[%s941 + $0x168] sm:$0xff]
      %v2601 = vld [vmem:[%s941 + $0x170] sm:$0xff]
      %v2602 = vld [vmem:[%s941 + $0x1] sm:$0xff]
      %v2603 = vld [vmem:[%s941 + $0x9] sm:$0xff]
      %v2604 = vld [vmem:[%s941 + $0x19] sm:$0xff]
      %v2605 = vld [vmem:[%s941 + $0x21] sm:$0xff]
      %v2606 = vld [vmem:[%s941 + $0x31] sm:$0xff]
      %v2607 = vld [vmem:[%s941 + $0x39] sm:$0xff]
      %v2608 = vld [vmem:[%s941 + $0x49] sm:$0xff]
      %v2609 = vld [vmem:[%s941 + $0x51] sm:$0xff]
      %v2610 = vld [vmem:[%s941 + $0x61] sm:$0xff]
      %v2611 = vld [vmem:[%s941 + $0x69] sm:$0xff]
      %v2612 = vld [vmem:[%s941 + $0x79] sm:$0xff]
      %v2613 = vld [vmem:[%s941 + $0x81] sm:$0xff]
      %v2614 = vld [vmem:[%s941 + $0x91] sm:$0xff]
      %v2615 = vld [vmem:[%s941 + $0x99] sm:$0xff]
      %v2616 = vld [vmem:[%s941 + $0xa9] sm:$0xff]
      %v2617 = vld [vmem:[%s941 + $0xb1] sm:$0xff]
      %v2618 = vld [vmem:[%s941 + $0xc1] sm:$0xff]
      %v2619 = vld [vmem:[%s941 + $0xc9] sm:$0xff]
      %v2620 = vld [vmem:[%s941 + $0xd9] sm:$0xff]
      %v2621 = vld [vmem:[%s941 + $0xe1] sm:$0xff]
      %v2622 = vld [vmem:[%s941 + $0xf1] sm:$0xff]
      %v2623 = vld [vmem:[%s941 + $0xf9] sm:$0xff]
      %v2624 = vld [vmem:[%s941 + $0x109] sm:$0xff]
      %v2625 = vld [vmem:[%s941 + $0x111] sm:$0xff]
      %v2626 = vld [vmem:[%s941 + $0x121] sm:$0xff]
      %v2627 = vld [vmem:[%s941 + $0x129] sm:$0xff]
      %v2628 = vld [vmem:[%s941 + $0x139] sm:$0xff]
      %v2629 = vld [vmem:[%s941 + $0x141] sm:$0xff]
      %v2630 = vld [vmem:[%s941 + $0x151] sm:$0xff]
      %v2631 = vld [vmem:[%s941 + $0x159] sm:$0xff]
      %v2632 = vld [vmem:[%s941 + $0x169] sm:$0xff]
      %v2633 = vld [vmem:[%s941 + $0x171] sm:$0xff]
      %v2634 = vld [vmem:[%s941 + $0x2] sm:$0xff]
      %v2635 = vld [vmem:[%s941 + $0xa] sm:$0xff]
      %v2636 = vld [vmem:[%s941 + $0x1a] sm:$0xff]
      %v2637 = vld [vmem:[%s941 + $0x22] sm:$0xff]
      %v2638 = vld [vmem:[%s941 + $0x32] sm:$0xff]
      %v2639 = vld [vmem:[%s941 + $0x3a] sm:$0xff]
      %v2640 = vld [vmem:[%s941 + $0x4a] sm:$0xff]
      %v2641 = vld [vmem:[%s941 + $0x52] sm:$0xff]
      %v2642 = vld [vmem:[%s941 + $0x62] sm:$0xff]
      %v2643 = vld [vmem:[%s941 + $0x6a] sm:$0xff]
      %v2644 = vld [vmem:[%s941 + $0x7a] sm:$0xff]
      %v2645 = vld [vmem:[%s941 + $0x82] sm:$0xff]
      %v2646 = vld [vmem:[%s941 + $0x92] sm:$0xff]
      %v2647 = vld [vmem:[%s941 + $0x9a] sm:$0xff]
      %v2648 = vld [vmem:[%s941 + $0xaa] sm:$0xff]
      %v2649 = vld [vmem:[%s941 + $0xb2] sm:$0xff]
      %v2650 = vld [vmem:[%s941 + $0xc2] sm:$0xff]
      %v2651 = vld [vmem:[%s941 + $0xca] sm:$0xff]
      %v2652 = vld [vmem:[%s941 + $0xda] sm:$0xff]
      %v2653 = vld [vmem:[%s941 + $0xe2] sm:$0xff]
      %v2654 = vld [vmem:[%s941 + $0xf2] sm:$0xff]
      %v2655 = vld [vmem:[%s941 + $0xfa] sm:$0xff]
      %v2656 = vld [vmem:[%s941 + $0x10a] sm:$0xff]
      %v2657 = vld [vmem:[%s941 + $0x112] sm:$0xff]
      %v2658 = vld [vmem:[%s941 + $0x122] sm:$0xff]
      %v2659 = vld [vmem:[%s941 + $0x12a] sm:$0xff]
      %v2660 = vld [vmem:[%s941 + $0x13a] sm:$0xff]
      %v2661 = vld [vmem:[%s941 + $0x142] sm:$0xff]
      %v2662 = vld [vmem:[%s941 + $0x152] sm:$0xff]
      %v2663 = vld [vmem:[%s941 + $0x15a] sm:$0xff]
      %v2664 = vld [vmem:[%s941 + $0x16a] sm:$0xff]
      %v2665 = vld [vmem:[%s941 + $0x172] sm:$0xff]
      %v2666 = vld [vmem:[%s5] sm:$0xff]
      %v2667 = vld [vmem:[%s5 + $0x8] sm:$0xff]
      %v2668 = vld [vmem:[%s5 + $0x10] sm:$0xff]
      %v2669 = vld [vmem:[%s5 + $0x18] sm:$0xff]
      %v2670 = vld [vmem:[%s5 + $0x20] sm:$0xff]
      %v2671 = vld [vmem:[%s5 + $0x28] sm:$0xff]
      %v2672 = vld [vmem:[%s5 + $0x30] sm:$0xff]
      %v2673 = vld [vmem:[%s5 + $0x38] sm:$0xff]
      %v2674 = vld [vmem:[%s5 + $0x40] sm:$0xff]
      %v2675 = vld [vmem:[%s5 + $0x48] sm:$0xff]
      %v2676 = vld [vmem:[%s5 + $0x50] sm:$0xff]
      %v2677 = vld [vmem:[%s5 + $0x58] sm:$0xff]
      %v2678 = vld [vmem:[%s5 + $0x60] sm:$0xff]
      %v2679 = vld [vmem:[%s5 + $0x68] sm:$0xff]
      %v2680 = vld [vmem:[%s5 + $0x70] sm:$0xff]
      %v2681 = vld [vmem:[%s5 + $0x78] sm:$0xff]
      %v2682 = vld [vmem:[%s5 + $0x80] sm:$0xff]
      %v2683 = vld [vmem:[%s5 + $0x88] sm:$0xff]
      %v2684 = vld [vmem:[%s5 + $0x90] sm:$0xff]
      %v2685 = vld [vmem:[%s5 + $0x98] sm:$0xff]
      %v2686 = vld [vmem:[%s5 + $0xa0] sm:$0xff]
      %v2687 = vld [vmem:[%s5 + $0xa8] sm:$0xff]
      %v2688 = vld [vmem:[%s5 + $0xb0] sm:$0xff]
      %v2689 = vld [vmem:[%s5 + $0xb8] sm:$0xff]
      %v2690 = vld [vmem:[%s5 + $0xc0] sm:$0xff]
      %v2691 = vld [vmem:[%s5 + $0xc8] sm:$0xff]
      %v2692 = vld [vmem:[%s5 + $0xd0] sm:$0xff]
      %v2693 = vld [vmem:[%s5 + $0xd8] sm:$0xff]
      %v2694 = vld [vmem:[%s5 + $0xe0] sm:$0xff]
      %v2695 = vld [vmem:[%s5 + $0xe8] sm:$0xff]
      %v2696 = vld [vmem:[%s5 + $0xf0] sm:$0xff]
      %v2697 = vld [vmem:[%s5 + $0xf8] sm:$0xff]
      %v2698 = vld [vmem:[%s5 + $0x100] sm:$0xff]
      %v2699 = vld [vmem:[%s5 + $0x108] sm:$0xff]
      %v2700 = vld [vmem:[%s5 + $0x110] sm:$0xff]
      %v2701 = vld [vmem:[%s5 + $0x118] sm:$0xff]
      %v2702 = vld [vmem:[%s5 + $0x120] sm:$0xff]
      %v2703 = vld [vmem:[%s5 + $0x128] sm:$0xff]
      %v2704 = vld [vmem:[%s5 + $0x130] sm:$0xff]
      %v2705 = vld [vmem:[%s5 + $0x138] sm:$0xff]
      %v2706 = vld [vmem:[%s5 + $0x140] sm:$0xff]
      %v2707 = vld [vmem:[%s5 + $0x148] sm:$0xff]
      %v2708 = vld [vmem:[%s5 + $0x150] sm:$0xff]
      %v2709 = vld [vmem:[%s5 + $0x158] sm:$0xff]
      %v2710 = vld [vmem:[%s5 + $0x160] sm:$0xff]
      %v2711 = vld [vmem:[%s5 + $0x168] sm:$0xff]
      %v2712 = vld [vmem:[%s5 + $0x170] sm:$0xff]
      %v2713 = vld [vmem:[%s5 + $0x178] sm:$0xff]
      %v2714 = vld [vmem:[%s5 + $0x180] sm:$0xff]
      %v2715 = vld [vmem:[%s5 + $0x188] sm:$0xff]
      %v2716 = vld [vmem:[%s5 + $0x190] sm:$0xff]
      %v2717 = vld [vmem:[%s5 + $0x198] sm:$0xff]
      %v2718 = vld [vmem:[%s5 + $0x1a0] sm:$0xff]
      %v2719 = vld [vmem:[%s5 + $0x1a8] sm:$0xff]
      %v2720 = vld [vmem:[%s5 + $0x1b0] sm:$0xff]
      %v2721 = vld [vmem:[%s5 + $0x1b8] sm:$0xff]
      %v2722 = vld [vmem:[%s5 + $0x1c0] sm:$0xff]
      %v2723 = vld [vmem:[%s5 + $0x1c8] sm:$0xff]
      %v2724 = vld [vmem:[%s5 + $0x1d0] sm:$0xff]
      %v2725 = vld [vmem:[%s5 + $0x1d8] sm:$0xff]
      %v2726 = vld [vmem:[%s5 + $0x1e0] sm:$0xff]
      %v2727 = vld [vmem:[%s5 + $0x1e8] sm:$0xff]
      %v2728 = vld [vmem:[%s5 + $0x1f0] sm:$0xff]
      %v2729 = vld [vmem:[%s5 + $0x1f8] sm:$0xff]
      %v2730 = vld [vmem:[%s5 + $0x200] sm:$0xff]
      %v2731 = vld [vmem:[%s5 + $0x208] sm:$0xff]
      %v2732 = vld [vmem:[%s5 + $0x210] sm:$0xff]
      %v2733 = vld [vmem:[%s5 + $0x218] sm:$0xff]
      %v2734 = vld [vmem:[%s5 + $0x220] sm:$0xff]
      %v2735 = vld [vmem:[%s5 + $0x228] sm:$0xff]
      %v2736 = vld [vmem:[%s5 + $0x230] sm:$0xff]
      %v2737 = vld [vmem:[%s5 + $0x238] sm:$0xff]
      %v2738 = vld [vmem:[%s5 + $0x240] sm:$0xff]
      %v2739 = vld [vmem:[%s5 + $0x248] sm:$0xff]
      %v2740 = vld [vmem:[%s5 + $0x250] sm:$0xff]
      %v2741 = vld [vmem:[%s5 + $0x258] sm:$0xff]
      %v2742 = vld [vmem:[%s5 + $0x260] sm:$0xff]
      %v2743 = vld [vmem:[%s5 + $0x268] sm:$0xff]
      %v2744 = vld [vmem:[%s5 + $0x270] sm:$0xff]
      %v2745 = vld [vmem:[%s5 + $0x278] sm:$0xff]
      %v2746 = vld [vmem:[%s5 + $0x280] sm:$0xff]
      %v2747 = vld [vmem:[%s5 + $0x288] sm:$0xff]
      %v2748 = vld [vmem:[%s5 + $0x290] sm:$0xff]
      %v2749 = vld [vmem:[%s5 + $0x298] sm:$0xff]
      %v2750 = vld [vmem:[%s5 + $0x2a0] sm:$0xff]
      %v2751 = vld [vmem:[%s5 + $0x2a8] sm:$0xff]
      %v2752 = vld [vmem:[%s5 + $0x2b0] sm:$0xff]
      %v2753 = vld [vmem:[%s5 + $0x2b8] sm:$0xff]
      %v2754 = vld [vmem:[%s5 + $0x2c0] sm:$0xff]
      %v2755 = vld [vmem:[%s5 + $0x2c8] sm:$0xff]
      %v2756 = vld [vmem:[%s5 + $0x2d0] sm:$0xff]
      %v2757 = vld [vmem:[%s5 + $0x2d8] sm:$0xff]
      %v2758 = vld [vmem:[%s5 + $0x2e0] sm:$0xff]
      %v2759 = vld [vmem:[%s5 + $0x2e8] sm:$0xff]
      %v2760 = vld [vmem:[%s5 + $0x2f0] sm:$0xff]
      %v2761 = vld [vmem:[%s5 + $0x2f8] sm:$0xff]
      %v2762 = vld [vmem:[%s5 + $0x300] sm:$0xff]
      %v2763 = vld [vmem:[%s5 + $0x308] sm:$0xff]
      %v2764 = vld [vmem:[%s5 + $0x310] sm:$0xff]
      %v2765 = vld [vmem:[%s5 + $0x318] sm:$0xff]
      %v2766 = vld [vmem:[%s5 + $0x320] sm:$0xff]
      %v2767 = vld [vmem:[%s5 + $0x328] sm:$0xff]
      %v2768 = vld [vmem:[%s5 + $0x330] sm:$0xff]
      %v2769 = vld [vmem:[%s5 + $0x338] sm:$0xff]
      %v2770 = vld [vmem:[%s5 + $0x340] sm:$0xff]
      %v2771 = vld [vmem:[%s5 + $0x348] sm:$0xff]
      %v2772 = vld [vmem:[%s5 + $0x350] sm:$0xff]
      %v2773 = vld [vmem:[%s5 + $0x358] sm:$0xff]
      %v2774 = vld [vmem:[%s5 + $0x360] sm:$0xff]
      %v2775 = vld [vmem:[%s5 + $0x368] sm:$0xff]
      %v2776 = vld [vmem:[%s5 + $0x370] sm:$0xff]
      %v2777 = vld [vmem:[%s5 + $0x378] sm:$0xff]
      %v2778 = vld [vmem:[%s5 + $0x380] sm:$0xff]
      %v2779 = vld [vmem:[%s5 + $0x388] sm:$0xff]
      %v2780 = vld [vmem:[%s5 + $0x390] sm:$0xff]
      %v2781 = vld [vmem:[%s5 + $0x398] sm:$0xff]
      %v2782 = vld [vmem:[%s5 + $0x3a0] sm:$0xff]
      %v2783 = vld [vmem:[%s5 + $0x3a8] sm:$0xff]
      %v2784 = vld [vmem:[%s5 + $0x3b0] sm:$0xff]
      %v2785 = vld [vmem:[%s5 + $0x3b8] sm:$0xff]
      %v2786 = vld [vmem:[%s5 + $0x3c0] sm:$0xff]
      %v2787 = vld [vmem:[%s5 + $0x3c8] sm:$0xff]
      %v2788 = vld [vmem:[%s5 + $0x3d0] sm:$0xff]
      %v2789 = vld [vmem:[%s5 + $0x3d8] sm:$0xff]
      %v2790 = vld [vmem:[%s5 + $0x3e0] sm:$0xff]
      %v2791 = vld [vmem:[%s5 + $0x3e8] sm:$0xff]
      %v2792 = vld [vmem:[%s5 + $0x3f0] sm:$0xff]
      %v2793 = vld [vmem:[%s5 + $0x3f8] sm:$0xff]
      %v2794 = vld [vmem:[%s5 + $0x400] sm:$0xff]
      %v2795 = vld [vmem:[%s5 + $0x408] sm:$0xff]
      %v2796 = vld [vmem:[%s5 + $0x410] sm:$0xff]
      %v2797 = vld [vmem:[%s5 + $0x418] sm:$0xff]
      %v2798 = vld [vmem:[%s5 + $0x420] sm:$0xff]
      %v2799 = vld [vmem:[%s5 + $0x428] sm:$0xff]
      %v2800 = vld [vmem:[%s5 + $0x430] sm:$0xff]
      %v2801 = vld [vmem:[%s5 + $0x438] sm:$0xff]
      %v2802 = vld [vmem:[%s5 + $0x440] sm:$0xff]
      %v2803 = vld [vmem:[%s5 + $0x448] sm:$0xff]
      %v2804 = vld [vmem:[%s5 + $0x450] sm:$0xff]
      %v2805 = vld [vmem:[%s5 + $0x458] sm:$0xff]
      %v2806 = vld [vmem:[%s5 + $0x460] sm:$0xff]
      %v2807 = vld [vmem:[%s5 + $0x468] sm:$0xff]
      %v2808 = vld [vmem:[%s5 + $0x470] sm:$0xff]
      %v2809 = vld [vmem:[%s5 + $0x478] sm:$0xff]
      %v2810 = vld [vmem:[%s6] sm:$0x1]
      %v2812 = vlaneseq
      %v2813 = vshrl.u32 %v2812, 7
      %v2814 = vsub.s32 0, %v2813
      %v2815 = vrot.slane %v2810, %v2814
      %2817 = vmatprep.subr.mxu0 0.0
      %2818 = vmatpush1.msra.mxu0 %v2666
      %2819 = vmatprep.subr.mxu0 0.0
      %2820 = vmatpush1.msra.mxu0 %v2667
      %2821 = vmatprep.subr.mxu0 0.0
      %2822 = vmatpush1.msra.mxu0 %v2668
      %2823 = vmatprep.subr.mxu0 0.0
      %2824 = vmatpush1.msra.mxu0 %v2669
      %2825 = vmatprep.subr.mxu0 0.0
      %2826 = vmatpush1.msra.mxu0 %v2670
      %2827 = vmatprep.subr.mxu0 0.0
      %2828 = vmatpush1.msra.mxu0 %v2671
      %2829 = vmatprep.subr.mxu0 0.0
      %2830 = vmatpush1.msra.mxu0 %v2672
      %2831 = vmatprep.subr.mxu0 0.0
      %2832 = vmatpush1.msra.mxu0 %v2673
      %2833 = vmatprep.subr.mxu0 0.0
      %2834 = vmatpush1.msra.mxu0 %v2674
      %2835 = vmatprep.subr.mxu0 0.0
      %2836 = vmatpush1.msra.mxu0 %v2675
      %2837 = vmatprep.subr.mxu0 0.0
      %2838 = vmatpush1.msra.mxu0 %v2676
      %2839 = vmatprep.subr.mxu0 0.0
      %2840 = vmatpush1.msra.mxu0 %v2677
      %2841 = vmatprep.subr.mxu0 0.0
      %2842 = vmatpush1.msra.mxu0 %v2678
      %2843 = vmatprep.subr.mxu0 0.0
      %2844 = vmatpush1.msra.mxu0 %v2679
      %2845 = vmatprep.subr.mxu0 0.0
      %2846 = vmatpush1.msra.mxu0 %v2680
      %2847 = vmatprep.subr.mxu0 0.0
      %2848 = vmatpush1.msra.mxu0 %v2681
      %2849 = vmatprep.subr.mxu0 0.0
      %2850 = vmatpush1.msra.mxu0 %v2682
      %2851 = vmatprep.subr.mxu0 0.0
      %2852 = vmatpush1.msra.mxu0 %v2683
      %2853 = vmatprep.subr.mxu0 0.0
      %2854 = vmatpush1.msra.mxu0 %v2684
      %2855 = vmatprep.subr.mxu0 0.0
      %2856 = vmatpush1.msra.mxu0 %v2685
      %2857 = vmatprep.subr.mxu0 0.0
      %2858 = vmatpush1.msra.mxu0 %v2686
      %2859 = vmatprep.subr.mxu0 0.0
      %2860 = vmatpush1.msra.mxu0 %v2687
      %2861 = vmatprep.subr.mxu0 0.0
      %2862 = vmatpush1.msra.mxu0 %v2688
      %2863 = vmatprep.subr.mxu0 0.0
      %2864 = vmatpush1.msra.mxu0 %v2689
      %2865 = vmatprep.subr.mxu0 0.0
      %2866 = vmatpush1.msra.mxu0 %v2690
      %2867 = vmatprep.subr.mxu0 0.0
      %2868 = vmatpush1.msra.mxu0 %v2691
      %2869 = vmatprep.subr.mxu0 0.0
      %2870 = vmatpush1.msra.mxu0 %v2692
      %2871 = vmatprep.subr.mxu0 0.0
      %2872 = vmatpush1.msra.mxu0 %v2693
      %2873 = vmatprep.subr.mxu0 0.0
      %2874 = vmatpush1.msra.mxu0 %v2694
      %2875 = vmatprep.subr.mxu0 0.0
      %2876 = vmatpush1.msra.mxu0 %v2695
      %2877 = vmatprep.subr.mxu0 0.0
      %2878 = vmatpush1.msra.mxu0 %v2696
      %2879 = vmatprep.subr.mxu0 0.0
      %2880 = vmatpush1.msra.mxu0 %v2697
      %2881 = vmatprep.mubr.f32.mxu0 %v2410
      %2882 = vmatmul.mubr.f32.gmra.mrb[0].mxu0 %v2378
      %v2883 = vpop.f32.mrb[0].mxu0
      %v2884 = vadd.f32 %v2815, %v2883
      %v2885 = vpop.f32.mrb[0].mxu0
      %2886 = vmatprep.mubr.f32.mxu0 %v2411
      %2887 = vmatmul.mubr.f32.gmra.mrb[0].mxu0 %v2379
      %v2888 = vpop.f32.mrb[0].mxu0
      %v2889 = vadd.f32 %v2815, %v2888
      %v2890 = vpop.f32.mrb[0].mxu0
      %2891 = vmatprep.mubr.f32.mxu0 %v2412
      %2892 = vmatmul.mubr.f32.gmra.mrb[0].mxu0 %v2380
      %v2893 = vpop.f32.mrb[0].mxu0
      %v2894 = vadd.f32 %v2815, %v2893
      %v2895 = vpop.f32.mrb[0].mxu0
      %2896 = vmatprep.mubr.f32.mxu0 %v2413
      %2897 = vmatmul.mubr.f32.gmra.mrb[0].mxu0 %v2381
      %v2898 = vpop.f32.mrb[0].mxu0
      %v2899 = vadd.f32 %v2815, %v2898
      %v2900 = vpop.f32.mrb[0].mxu0
      %2901 = vmatprep.mubr.f32.mxu0 %v2414
      %2902 = vmatmul.mubr.f32.gmra.mrb[0].mxu0 %v2382
      %v2903 = vpop.f32.mrb[0].mxu0
      %v2904 = vadd.f32 %v2815, %v2903
      %v2905 = vpop.f32.mrb[0].mxu0
      %2906 = vmatprep.mubr.f32.mxu0 %v2415
      %2907 = vmatmul.mubr.f32.gmra.mrb[0].mxu0 %v2383
      %v2908 = vpop.f32.mrb[0].mxu0
      %v2909 = vadd.f32 %v2815, %v2908
      %v2910 = vpop.f32.mrb[0].mxu0
      %2911 = vmatprep.mubr.f32.mxu0 %v2416
      %2912 = vmatmul.mubr.f32.gmra.mrb[0].mxu0 %v2384
      %v2913 = vpop.f32.mrb[0].mxu0
      %v2914 = vadd.f32 %v2815, %v2913
      %v2915 = vpop.f32.mrb[0].mxu0
      %2916 = vmatprep.mubr.f32.mxu0 %v2417
      %2917 = vmatmul.mubr.f32.gmra.mrb[0].mxu0 %v2385
      %v2918 = vpop.f32.mrb[0].mxu0
      %v2919 = vadd.f32 %v2815, %v2918
      %v2920 = vpop.f32.mrb[0].mxu0
      %2921 = vmatprep.mubr.f32.mxu0 %v2418
      %2922 = vmatmul.mubr.f32.gmra.mrb[0].mxu0 %v2386
      %v2923 = vpop.f32.mrb[0].mxu0
      %v2924 = vadd.f32 %v2815, %v2923
      %v2925 = vpop.f32.mrb[0].mxu0
      %2926 = vmatprep.mubr.f32.mxu0 %v2419
      %2927 = vmatmul.mubr.f32.gmra.mrb[0].mxu0 %v2387
      %v2928 = vpop.f32.mrb[0].mxu0
      %v2929 = vadd.f32 %v2815, %v2928
      %v2930 = vpop.f32.mrb[0].mxu0
      %2931 = vmatprep.mubr.f32.mxu0 %v2420
      %2932 = vmatmul.mubr.f32.gmra.mrb[0].mxu0 %v2388
      %v2933 = vpop.f32.mrb[0].mxu0
      %v2934 = vadd.f32 %v2815, %v2933
      %v2935 = vpop.f32.mrb[0].mxu0
      %2936 = vmatprep.mubr.f32.mxu0 %v2421
      %2937 = vmatmul.mubr.f32.gmra.mrb[0].mxu0 %v2389
      %v2938 = vpop.f32.mrb[0].mxu0
      %v2939 = vadd.f32 %v2815, %v2938
      %v2940 = vpop.f32.mrb[0].mxu0
      %2941 = vmatprep.mubr.f32.mxu0 %v2422
      %2942 = vmatmul.mubr.f32.gmra.mrb[0].mxu0 %v2390
      %v2943 = vpop.f32.mrb[0].mxu0
      %v2944 = vadd.f32 %v2815, %v2943
      %v2945 = vpop.f32.mrb[0].mxu0
      %2946 = vmatprep.mubr.f32.mxu0 %v2423
      %2947 = vmatmul.mubr.f32.gmra.mrb[0].mxu0 %v2391
      %v2948 = vpop.f32.mrb[0].mxu0
      %v2949 = vadd.f32 %v2815, %v2948
      %v2950 = vpop.f32.mrb[0].mxu0
      %2951 = vmatprep.mubr.f32.mxu0 %v2424
      %2952 = vmatmul.mubr.f32.gmra.mrb[0].mxu0 %v2392
      %v2953 = vpop.f32.mrb[0].mxu0
      %v2954 = vadd.f32 %v2815, %v2953
      %v2955 = vpop.f32.mrb[0].mxu0
      %2956 = vmatprep.mubr.f32.mxu0 %v2425
      %2957 = vmatmul.mubr.f32.gmra.mrb[0].mxu0 %v2393
      %v2958 = vpop.f32.mrb[0].mxu0
      %v2959 = vadd.f32 %v2815, %v2958
      %v2960 = vpop.f32.mrb[0].mxu0
      %2961 = vmatprep.mubr.f32.mxu0 %v2426
      %2962 = vmatmul.mubr.f32.gmra.mrb[0].mxu0 %v2394
      %v2963 = vpop.f32.mrb[0].mxu0
      %v2964 = vadd.f32 %v2815, %v2963
      %v2965 = vpop.f32.mrb[0].mxu0
      %2966 = vmatprep.mubr.f32.mxu0 %v2427
      %2967 = vmatmul.mubr.f32.gmra.mrb[0].mxu0 %v2395
      %v2968 = vpop.f32.mrb[0].mxu0
      %v2969 = vadd.f32 %v2815, %v2968
      %v2970 = vpop.f32.mrb[0].mxu0
      %2971 = vmatprep.mubr.f32.mxu0 %v2428
      %2972 = vmatmul.mubr.f32.gmra.mrb[0].mxu0 %v2396
      %v2973 = vpop.f32.mrb[0].mxu0
      %v2974 = vadd.f32 %v2815, %v2973
      %v2975 = vpop.f32.mrb[0].mxu0
      %2976 = vmatprep.mubr.f32.mxu0 %v2429
      %2977 = vmatmul.mubr.f32.gmra.mrb[0].mxu0 %v2397
      %v2978 = vpop.f32.mrb[0].mxu0
      %v2979 = vadd.f32 %v2815, %v2978
      %v2980 = vpop.f32.mrb[0].mxu0
      %2981 = vmatprep.mubr.f32.mxu0 %v2430
      %2982 = vmatmul.mubr.f32.gmra.mrb[0].mxu0 %v2398
      %v2983 = vpop.f32.mrb[0].mxu0
      %v2984 = vadd.f32 %v2815, %v2983
      %v2985 = vpop.f32.mrb[0].mxu0
      %2986 = vmatprep.mubr.f32.mxu0 %v2431
      %2987 = vmatmul.mubr.f32.gmra.mrb[0].mxu0 %v2399
      %v2988 = vpop.f32.mrb[0].mxu0
      %v2989 = vadd.f32 %v2815, %v2988
      %v2990 = vpop.f32.mrb[0].mxu0
      %2991 = vmatprep.mubr.f32.mxu0 %v2432
      %2992 = vmatmul.mubr.f32.gmra.mrb[0].mxu0 %v2400
      %v2993 = vpop.f32.mrb[0].mxu0
      %v2994 = vadd.f32 %v2815, %v2993
      %v2995 = vpop.f32.mrb[0].mxu0
      %2996 = vmatprep.mubr.f32.mxu0 %v2433
      %2997 = vmatmul.mubr.f32.gmra.mrb[0].mxu0 %v2401
      %v2998 = vpop.f32.mrb[0].mxu0
      %v2999 = vadd.f32 %v2815, %v2998
      %v3000 = vpop.f32.mrb[0].mxu0
      %3001 = vmatprep.mubr.f32.mxu0 %v2434
      %3002 = vmatmul.mubr.f32.gmra.mrb[0].mxu0 %v2402
      %v3003 = vpop.f32.mrb[0].mxu0
      %v3004 = vadd.f32 %v2815, %v3003
      %v3005 = vpop.f32.mrb[0].mxu0
      %3006 = vmatprep.mubr.f32.mxu0 %v2435
      %3007 = vmatmul.mubr.f32.gmra.mrb[0].mxu0 %v2403
      %v3008 = vpop.f32.mrb[0].mxu0
      %v3009 = vadd.f32 %v2815, %v3008
      %v3010 = vpop.f32.mrb[0].mxu0
      %3011 = vmatprep.mubr.f32.mxu0 %v2436
      %3012 = vmatmul.mubr.f32.gmra.mrb[0].mxu0 %v2404
      %v3013 = vpop.f32.mrb[0].mxu0
      %v3014 = vadd.f32 %v2815, %v3013
      %v3015 = vpop.f32.mrb[0].mxu0
      %3016 = vmatprep.mubr.f32.mxu0 %v2437
      %3017 = vmatmul.mubr.f32.gmra.mrb[0].mxu0 %v2405
      %v3018 = vpop.f32.mrb[0].mxu0
      %v3019 = vadd.f32 %v2815, %v3018
      %v3020 = vpop.f32.mrb[0].mxu0
      %3021 = vmatprep.mubr.f32.mxu0 %v2438
      %3022 = vmatmul.mubr.f32.gmra.mrb[0].mxu0 %v2406
      %v3023 = vpop.f32.mrb[0].mxu0
      %v3024 = vadd.f32 %v2815, %v3023
      %v3025 = vpop.f32.mrb[0].mxu0
      %3026 = vmatprep.mubr.f32.mxu0 %v2439
      %3027 = vmatmul.mubr.f32.gmra.mrb[0].mxu0 %v2407
      %v3028 = vpop.f32.mrb[0].mxu0
      %v3029 = vadd.f32 %v2815, %v3028
      %v3030 = vpop.f32.mrb[0].mxu0
      %3031 = vmatprep.mubr.f32.mxu0 %v2440
      %3032 = vmatmul.mubr.f32.gmra.mrb[0].mxu0 %v2408
      %v3033 = vpop.f32.mrb[0].mxu0
      %v3034 = vadd.f32 %v2815, %v3033
      %v3035 = vpop.f32.mrb[0].mxu0
      %3036 = vmatprep.mubr.f32.mxu0 %v2441
      %3037 = vmatmul.mubr.f32.gmra.mrb[0].mxu0 %v2409
      %v3038 = vpop.f32.mrb[0].mxu0
      %v3039 = vadd.f32 %v2815, %v3038
      %v3040 = vpop.f32.mrb[0].mxu0
      %3041 = vdwg.mxu0
      %3042 = vmatprep.subr.mxu0 0.0
      %3043 = vmatpush1.msra.mxu0 %v2698
      %3044 = vmatprep.subr.mxu0 0.0
      %3045 = vmatpush1.msra.mxu0 %v2699
      %3046 = vmatprep.subr.mxu0 0.0
      %3047 = vmatpush1.msra.mxu0 %v2700
      %3048 = vmatprep.subr.mxu0 0.0
      %3049 = vmatpush1.msra.mxu0 %v2701
      %3050 = vmatprep.subr.mxu0 0.0
      %3051 = vmatpush1.msra.mxu0 %v2702
      %3052 = vmatprep.subr.mxu0 0.0
      %3053 = vmatpush1.msra.mxu0 %v2703
      %3054 = vmatprep.subr.mxu0 0.0
      %3055 = vmatpush1.msra.mxu0 %v2704
      %3056 = vmatprep.subr.mxu0 0.0
      %3057 = vmatpush1.msra.mxu0 %v2705
      %3058 = vmatprep.subr.mxu0 0.0
      %3059 = vmatpush1.msra.mxu0 %v2706
      %3060 = vmatprep.subr.mxu0 0.0
      %3061 = vmatpush1.msra.mxu0 %v2707
      %3062 = vmatprep.subr.mxu0 0.0
      %3063 = vmatpush1.msra.mxu0 %v2708
      %3064 = vmatprep.subr.mxu0 0.0
      %3065 = vmatpush1.msra.mxu0 %v2709
      %3066 = vmatprep.subr.mxu0 0.0
      %3067 = vmatpush1.msra.mxu0 %v2710
      %3068 = vmatprep.subr.mxu0 0.0
      %3069 = vmatpush1.msra.mxu0 %v2711
      %3070 = vmatprep.subr.mxu0 0.0
      %3071 = vmatpush1.msra.mxu0 %v2712
      %3072 = vmatprep.subr.mxu0 0.0
      %3073 = vmatpush1.msra.mxu0 %v2713
      %3074 = vmatprep.subr.mxu0 0.0
      %3075 = vmatpush1.msra.mxu0 %v2714
      %3076 = vmatprep.subr.mxu0 0.0
      %3077 = vmatpush1.msra.mxu0 %v2715
      %3078 = vmatprep.subr.mxu0 0.0
      %3079 = vmatpush1.msra.mxu0 %v2716
      %3080 = vmatprep.subr.mxu0 0.0
      %3081 = vmatpush1.msra.mxu0 %v2717
      %3082 = vmatprep.subr.mxu0 0.0
      %3083 = vmatpush1.msra.mxu0 %v2718
      %3084 = vmatprep.subr.mxu0 0.0
      %3085 = vmatpush1.msra.mxu0 %v2719
      %3086 = vmatprep.subr.mxu0 0.0
      %3087 = vmatpush1.msra.mxu0 %v2720
      %3088 = vmatprep.subr.mxu0 0.0
      %3089 = vmatpush1.msra.mxu0 %v2721
      %3090 = vmatprep.subr.mxu0 0.0
      %3091 = vmatpush1.msra.mxu0 %v2722
      %3092 = vmatprep.subr.mxu0 0.0
      %3093 = vmatpush1.msra.mxu0 %v2723
      %3094 = vmatprep.subr.mxu0 0.0
      %3095 = vmatpush1.msra.mxu0 %v2724
      %3096 = vmatprep.subr.mxu0 0.0
      %3097 = vmatpush1.msra.mxu0 %v2725
      %3098 = vmatprep.subr.mxu0 0.0
      %3099 = vmatpush1.msra.mxu0 %v2726
      %3100 = vmatprep.subr.mxu0 0.0
      %3101 = vmatpush1.msra.mxu0 %v2727
      %3102 = vmatprep.subr.mxu0 0.0
      %3103 = vmatpush1.msra.mxu0 %v2728
      %3104 = vmatprep.subr.mxu0 0.0
      %3105 = vmatpush1.msra.mxu0 %v2729
      %3106 = vmatprep.mubr.f32.mxu0 %v2474
      %3107 = vmatmul.mubr.f32.gmra.mrb[0].mxu0 %v2442
      %v3108 = vpop.f32.mrb[0].mxu0
      %v3109 = vadd.f32 %v2884, %v3108
      %v3110 = vpop.f32.mrb[0].mxu0
      %3111 = vmatprep.mubr.f32.mxu0 %v2475
      %3112 = vmatmul.mubr.f32.gmra.mrb[0].mxu0 %v2443
      %v3113 = vpop.f32.mrb[0].mxu0
      %v3114 = vadd.f32 %v2889, %v3113
      %v3115 = vpop.f32.mrb[0].mxu0
      %3116 = vmatprep.mubr.f32.mxu0 %v2476
      %3117 = vmatmul.mubr.f32.gmra.mrb[0].mxu0 %v2444
      %v3118 = vpop.f32.mrb[0].mxu0
      %v3119 = vadd.f32 %v2894, %v3118
      %v3120 = vpop.f32.mrb[0].mxu0
      %3121 = vmatprep.mubr.f32.mxu0 %v2477
      %3122 = vmatmul.mubr.f32.gmra.mrb[0].mxu0 %v2445
      %v3123 = vpop.f32.mrb[0].mxu0
      %v3124 = vadd.f32 %v2899, %v3123
      %v3125 = vpop.f32.mrb[0].mxu0
      %3126 = vmatprep.mubr.f32.mxu0 %v2478
      %3127 = vmatmul.mubr.f32.gmra.mrb[0].mxu0 %v2446
      %v3128 = vpop.f32.mrb[0].mxu0
      %v3129 = vadd.f32 %v2904, %v3128
      %v3130 = vpop.f32.mrb[0].mxu0
      %3131 = vmatprep.mubr.f32.mxu0 %v2479
      %3132 = vmatmul.mubr.f32.gmra.mrb[0].mxu0 %v2447
      %v3133 = vpop.f32.mrb[0].mxu0
      %v3134 = vadd.f32 %v2909, %v3133
      %v3135 = vpop.f32.mrb[0].mxu0
      %3136 = vmatprep.mubr.f32.mxu0 %v2480
      %3137 = vmatmul.mubr.f32.gmra.mrb[0].mxu0 %v2448
      %v3138 = vpop.f32.mrb[0].mxu0
      %v3139 = vadd.f32 %v2914, %v3138
      %v3140 = vpop.f32.mrb[0].mxu0
      %3141 = vmatprep.mubr.f32.mxu0 %v2481
      %3142 = vmatmul.mubr.f32.gmra.mrb[0].mxu0 %v2449
      %v3143 = vpop.f32.mrb[0].mxu0
      %v3144 = vadd.f32 %v2919, %v3143
      %v3145 = vpop.f32.mrb[0].mxu0
      %3146 = vmatprep.mubr.f32.mxu0 %v2482
      %3147 = vmatmul.mubr.f32.gmra.mrb[0].mxu0 %v2450
      %v3148 = vpop.f32.mrb[0].mxu0
      %v3149 = vadd.f32 %v2924, %v3148
      %v3150 = vpop.f32.mrb[0].mxu0
      %3151 = vmatprep.mubr.f32.mxu0 %v2483
      %3152 = vmatmul.mubr.f32.gmra.mrb[0].mxu0 %v2451
      %v3153 = vpop.f32.mrb[0].mxu0
      %v3154 = vadd.f32 %v2929, %v3153
      %v3155 = vpop.f32.mrb[0].mxu0
      %3156 = vmatprep.mubr.f32.mxu0 %v2484
      %3157 = vmatmul.mubr.f32.gmra.mrb[0].mxu0 %v2452
      %v3158 = vpop.f32.mrb[0].mxu0
      %v3159 = vadd.f32 %v2934, %v3158
      %v3160 = vpop.f32.mrb[0].mxu0
      %3161 = vmatprep.mubr.f32.mxu0 %v2485
      %3162 = vmatmul.mubr.f32.gmra.mrb[0].mxu0 %v2453
      %v3163 = vpop.f32.mrb[0].mxu0
      %v3164 = vadd.f32 %v2939, %v3163
      %v3165 = vpop.f32.mrb[0].mxu0
      %3166 = vmatprep.mubr.f32.mxu0 %v2486
      %3167 = vmatmul.mubr.f32.gmra.mrb[0].mxu0 %v2454
      %v3168 = vpop.f32.mrb[0].mxu0
      %v3169 = vadd.f32 %v2944, %v3168
      %v3170 = vpop.f32.mrb[0].mxu0
      %3171 = vmatprep.mubr.f32.mxu0 %v2487
      %3172 = vmatmul.mubr.f32.gmra.mrb[0].mxu0 %v2455
      %v3173 = vpop.f32.mrb[0].mxu0
      %v3174 = vadd.f32 %v2949, %v3173
      %v3175 = vpop.f32.mrb[0].mxu0
      %3176 = vmatprep.mubr.f32.mxu0 %v2488
      %3177 = vmatmul.mubr.f32.gmra.mrb[0].mxu0 %v2456
      %v3178 = vpop.f32.mrb[0].mxu0
      %v3179 = vadd.f32 %v2954, %v3178
      %v3180 = vpop.f32.mrb[0].mxu0
      %3181 = vmatprep.mubr.f32.mxu0 %v2489
      %3182 = vmatmul.mubr.f32.gmra.mrb[0].mxu0 %v2457
      %v3183 = vpop.f32.mrb[0].mxu0
      %v3184 = vadd.f32 %v2959, %v3183
      %v3185 = vpop.f32.mrb[0].mxu0
      %3186 = vmatprep.mubr.f32.mxu0 %v2490
      %3187 = vmatmul.mubr.f32.gmra.mrb[0].mxu0 %v2458
      %v3188 = vpop.f32.mrb[0].mxu0
      %v3189 = vadd.f32 %v2964, %v3188
      %v3190 = vpop.f32.mrb[0].mxu0
      %3191 = vmatprep.mubr.f32.mxu0 %v2491
      %3192 = vmatmul.mubr.f32.gmra.mrb[0].mxu0 %v2459
      %v3193 = vpop.f32.mrb[0].mxu0
      %v3194 = vadd.f32 %v2969, %v3193
      %v3195 = vpop.f32.mrb[0].mxu0
      %3196 = vmatprep.mubr.f32.mxu0 %v2492
      %3197 = vmatmul.mubr.f32.gmra.mrb[0].mxu0 %v2460
      %v3198 = vpop.f32.mrb[0].mxu0
      %v3199 = vadd.f32 %v2974, %v3198
      %v3200 = vpop.f32.mrb[0].mxu0
      %3201 = vmatprep.mubr.f32.mxu0 %v2493
      %3202 = vmatmul.mubr.f32.gmra.mrb[0].mxu0 %v2461
      %v3203 = vpop.f32.mrb[0].mxu0
      %v3204 = vadd.f32 %v2979, %v3203
      %v3205 = vpop.f32.mrb[0].mxu0
      %3206 = vmatprep.mubr.f32.mxu0 %v2494
      %3207 = vmatmul.mubr.f32.gmra.mrb[0].mxu0 %v2462
      %v3208 = vpop.f32.mrb[0].mxu0
      %v3209 = vadd.f32 %v2984, %v3208
      %v3210 = vpop.f32.mrb[0].mxu0
      %3211 = vmatprep.mubr.f32.mxu0 %v2495
      %3212 = vmatmul.mubr.f32.gmra.mrb[0].mxu0 %v2463
      %v3213 = vpop.f32.mrb[0].mxu0
      %v3214 = vadd.f32 %v2989, %v3213
      %v3215 = vpop.f32.mrb[0].mxu0
      %3216 = vmatprep.mubr.f32.mxu0 %v2496
      %3217 = vmatmul.mubr.f32.gmra.mrb[0].mxu0 %v2464
      %v3218 = vpop.f32.mrb[0].mxu0
      %v3219 = vadd.f32 %v2994, %v3218
      %v3220 = vpop.f32.mrb[0].mxu0
      %3221 = vmatprep.mubr.f32.mxu0 %v2497
      %3222 = vmatmul.mubr.f32.gmra.mrb[0].mxu0 %v2465
      %v3223 = vpop.f32.mrb[0].mxu0
      %v3224 = vadd.f32 %v2999, %v3223
      %v3225 = vpop.f32.mrb[0].mxu0
      %3226 = vmatprep.mubr.f32.mxu0 %v2498
      %3227 = vmatmul.mubr.f32.gmra.mrb[0].mxu0 %v2466
      %v3228 = vpop.f32.mrb[0].mxu0
      %v3229 = vadd.f32 %v3004, %v3228
      %v3230 = vpop.f32.mrb[0].mxu0
      %3231 = vmatprep.mubr.f32.mxu0 %v2499
      %3232 = vmatmul.mubr.f32.gmra.mrb[0].mxu0 %v2467
      %v3233 = vpop.f32.mrb[0].mxu0
      %v3234 = vadd.f32 %v3009, %v3233
      %v3235 = vpop.f32.mrb[0].mxu0
      %3236 = vmatprep.mubr.f32.mxu0 %v2500
      %3237 = vmatmul.mubr.f32.gmra.mrb[0].mxu0 %v2468
      %v3238 = vpop.f32.mrb[0].mxu0
      %v3239 = vadd.f32 %v3014, %v3238
      %v3240 = vpop.f32.mrb[0].mxu0
      %3241 = vmatprep.mubr.f32.mxu0 %v2501
      %3242 = vmatmul.mubr.f32.gmra.mrb[0].mxu0 %v2469
      %v3243 = vpop.f32.mrb[0].mxu0
      %v3244 = vadd.f32 %v3019, %v3243
      %v3245 = vpop.f32.mrb[0].mxu0
      %3246 = vmatprep.mubr.f32.mxu0 %v2502
      %3247 = vmatmul.mubr.f32.gmra.mrb[0].mxu0 %v2470
      %v3248 = vpop.f32.mrb[0].mxu0
      %v3249 = vadd.f32 %v3024, %v3248
      %v3250 = vpop.f32.mrb[0].mxu0
      %3251 = vmatprep.mubr.f32.mxu0 %v2503
      %3252 = vmatmul.mubr.f32.gmra.mrb[0].mxu0 %v2471
      %v3253 = vpop.f32.mrb[0].mxu0
      %v3254 = vadd.f32 %v3029, %v3253
      %v3255 = vpop.f32.mrb[0].mxu0
      %3256 = vmatprep.mubr.f32.mxu0 %v2504
      %3257 = vmatmul.mubr.f32.gmra.mrb[0].mxu0 %v2472
      %v3258 = vpop.f32.mrb[0].mxu0
      %v3259 = vadd.f32 %v3034, %v3258
      %v3260 = vpop.f32.mrb[0].mxu0
      %3261 = vmatprep.mubr.f32.mxu0 %v2505
      %3262 = vmatmul.mubr.f32.gmra.mrb[0].mxu0 %v2473
      %v3263 = vpop.f32.mrb[0].mxu0
      %v3264 = vadd.f32 %v3039, %v3263
      %v3265 = vpop.f32.mrb[0].mxu0
      %3266 = vdwg.mxu0
      %3267 = vmatprep.subr.mxu0 0.0
      %3268 = vmatpush1.msra.mxu0 %v2730
      %3269 = vmatprep.subr.mxu0 0.0
      %3270 = vmatpush1.msra.mxu0 %v2731
      %3271 = vmatprep.subr.mxu0 0.0
      %3272 = vmatpush1.msra.mxu0 %v2732
      %3273 = vmatprep.subr.mxu0 0.0
      %3274 = vmatpush1.msra.mxu0 %v2733
      %3275 = vmatprep.subr.mxu0 0.0
      %3276 = vmatpush1.msra.mxu0 %v2734
      %3277 = vmatprep.subr.mxu0 0.0
      %3278 = vmatpush1.msra.mxu0 %v2735
      %3279 = vmatprep.subr.mxu0 0.0
      %3280 = vmatpush1.msra.mxu0 %v2736
      %3281 = vmatprep.subr.mxu0 0.0
      %3282 = vmatpush1.msra.mxu0 %v2737
      %3283 = vmatprep.subr.mxu0 0.0
      %3284 = vmatpush1.msra.mxu0 %v2738
      %3285 = vmatprep.subr.mxu0 0.0
      %3286 = vmatpush1.msra.mxu0 %v2739
      %3287 = vmatprep.subr.mxu0 0.0
      %3288 = vmatpush1.msra.mxu0 %v2740
      %3289 = vmatprep.subr.mxu0 0.0
      %3290 = vmatpush1.msra.mxu0 %v2741
      %3291 = vmatprep.subr.mxu0 0.0
      %3292 = vmatpush1.msra.mxu0 %v2742
      %3293 = vmatprep.subr.mxu0 0.0
      %3294 = vmatpush1.msra.mxu0 %v2743
      %3295 = vmatprep.subr.mxu0 0.0
      %3296 = vmatpush1.msra.mxu0 %v2744
      %3297 = vmatprep.subr.mxu0 0.0
      %3298 = vmatpush1.msra.mxu0 %v2745
      %3299 = vmatprep.subr.mxu0 0.0
      %3300 = vmatpush1.msra.mxu0 %v2746
      %3301 = vmatprep.subr.mxu0 0.0
      %3302 = vmatpush1.msra.mxu0 %v2747
      %3303 = vmatprep.subr.mxu0 0.0
      %3304 = vmatpush1.msra.mxu0 %v2748
      %3305 = vmatprep.subr.mxu0 0.0
      %3306 = vmatpush1.msra.mxu0 %v2749
      %3307 = vmatprep.subr.mxu0 0.0
      %3308 = vmatpush1.msra.mxu0 %v2750
      %3309 = vmatprep.subr.mxu0 0.0
      %3310 = vmatpush1.msra.mxu0 %v2751
      %3311 = vmatprep.subr.mxu0 0.0
      %3312 = vmatpush1.msra.mxu0 %v2752
      %3313 = vmatprep.subr.mxu0 0.0
      %3314 = vmatpush1.msra.mxu0 %v2753
      %3315 = vmatprep.subr.mxu0 0.0
      %3316 = vmatpush1.msra.mxu0 %v2754
      %3317 = vmatprep.subr.mxu0 0.0
      %3318 = vmatpush1.msra.mxu0 %v2755
      %3319 = vmatprep.subr.mxu0 0.0
      %3320 = vmatpush1.msra.mxu0 %v2756
      %3321 = vmatprep.subr.mxu0 0.0
      %3322 = vmatpush1.msra.mxu0 %v2757
      %3323 = vmatprep.subr.mxu0 0.0
      %3324 = vmatpush1.msra.mxu0 %v2758
      %3325 = vmatprep.subr.mxu0 0.0
      %3326 = vmatpush1.msra.mxu0 %v2759
      %3327 = vmatprep.subr.mxu0 0.0
      %3328 = vmatpush1.msra.mxu0 %v2760
      %3329 = vmatprep.subr.mxu0 0.0
      %3330 = vmatpush1.msra.mxu0 %v2761
      %3331 = vmatprep.mubr.f32.mxu0 %v2538
      %3332 = vmatmul.mubr.f32.gmra.mrb[0].mxu0 %v2506
      %v3333 = vpop.f32.mrb[0].mxu0
      %v3334 = vadd.f32 %v3109, %v3333
      %v3335 = vpop.f32.mrb[0].mxu0
      %3336 = vmatprep.mubr.f32.mxu0 %v2539
      %3337 = vmatmul.mubr.f32.gmra.mrb[0].mxu0 %v2507
      %v3338 = vpop.f32.mrb[0].mxu0
      %v3339 = vadd.f32 %v3114, %v3338
      %v3340 = vpop.f32.mrb[0].mxu0
      %3341 = vmatprep.mubr.f32.mxu0 %v2540
      %3342 = vmatmul.mubr.f32.gmra.mrb[0].mxu0 %v2508
      %v3343 = vpop.f32.mrb[0].mxu0
      %v3344 = vadd.f32 %v3119, %v3343
      %v3345 = vpop.f32.mrb[0].mxu0
      %3346 = vmatprep.mubr.f32.mxu0 %v2541
      %3347 = vmatmul.mubr.f32.gmra.mrb[0].mxu0 %v2509
      %v3348 = vpop.f32.mrb[0].mxu0
      %v3349 = vadd.f32 %v3124, %v3348
      %v3350 = vpop.f32.mrb[0].mxu0
      %3351 = vmatprep.mubr.f32.mxu0 %v2542
      %3352 = vmatmul.mubr.f32.gmra.mrb[0].mxu0 %v2510
      %v3353 = vpop.f32.mrb[0].mxu0
      %v3354 = vadd.f32 %v3129, %v3353
      %v3355 = vpop.f32.mrb[0].mxu0
      %3356 = vmatprep.mubr.f32.mxu0 %v2543
      %3357 = vmatmul.mubr.f32.gmra.mrb[0].mxu0 %v2511
      %v3358 = vpop.f32.mrb[0].mxu0
      %v3359 = vadd.f32 %v3134, %v3358
      %v3360 = vpop.f32.mrb[0].mxu0
      %3361 = vmatprep.mubr.f32.mxu0 %v2544
      %3362 = vmatmul.mubr.f32.gmra.mrb[0].mxu0 %v2512
      %v3363 = vpop.f32.mrb[0].mxu0
      %v3364 = vadd.f32 %v3139, %v3363
      %v3365 = vpop.f32.mrb[0].mxu0
      %3366 = vmatprep.mubr.f32.mxu0 %v2545
      %3367 = vmatmul.mubr.f32.gmra.mrb[0].mxu0 %v2513
      %v3368 = vpop.f32.mrb[0].mxu0
      %v3369 = vadd.f32 %v3144, %v3368
      %v3370 = vpop.f32.mrb[0].mxu0
      %3371 = vmatprep.mubr.f32.mxu0 %v2546
      %3372 = vmatmul.mubr.f32.gmra.mrb[0].mxu0 %v2514
      %v3373 = vpop.f32.mrb[0].mxu0
      %v3374 = vadd.f32 %v3149, %v3373
      %v3375 = vpop.f32.mrb[0].mxu0
      %3376 = vmatprep.mubr.f32.mxu0 %v2547
      %3377 = vmatmul.mubr.f32.gmra.mrb[0].mxu0 %v2515
      %v3378 = vpop.f32.mrb[0].mxu0
      %v3379 = vadd.f32 %v3154, %v3378
      %v3380 = vpop.f32.mrb[0].mxu0
      %3381 = vmatprep.mubr.f32.mxu0 %v2548
      %3382 = vmatmul.mubr.f32.gmra.mrb[0].mxu0 %v2516
      %v3383 = vpop.f32.mrb[0].mxu0
      %v3384 = vadd.f32 %v3159, %v3383
      %v3385 = vpop.f32.mrb[0].mxu0
      %3386 = vmatprep.mubr.f32.mxu0 %v2549
      %3387 = vmatmul.mubr.f32.gmra.mrb[0].mxu0 %v2517
      %v3388 = vpop.f32.mrb[0].mxu0
      %v3389 = vadd.f32 %v3164, %v3388
      %v3390 = vpop.f32.mrb[0].mxu0
      %3391 = vmatprep.mubr.f32.mxu0 %v2550
      %3392 = vmatmul.mubr.f32.gmra.mrb[0].mxu0 %v2518
      %v3393 = vpop.f32.mrb[0].mxu0
      %v3394 = vadd.f32 %v3169, %v3393
      %v3395 = vpop.f32.mrb[0].mxu0
      %3396 = vmatprep.mubr.f32.mxu0 %v2551
      %3397 = vmatmul.mubr.f32.gmra.mrb[0].mxu0 %v2519
      %v3398 = vpop.f32.mrb[0].mxu0
      %v3399 = vadd.f32 %v3174, %v3398
      %v3400 = vpop.f32.mrb[0].mxu0
      %3401 = vmatprep.mubr.f32.mxu0 %v2552
      %3402 = vmatmul.mubr.f32.gmra.mrb[0].mxu0 %v2520
      %v3403 = vpop.f32.mrb[0].mxu0
      %v3404 = vadd.f32 %v3179, %v3403
      %v3405 = vpop.f32.mrb[0].mxu0
      %3406 = vmatprep.mubr.f32.mxu0 %v2553
      %3407 = vmatmul.mubr.f32.gmra.mrb[0].mxu0 %v2521
      %v3408 = vpop.f32.mrb[0].mxu0
      %v3409 = vadd.f32 %v3184, %v3408
      %v3410 = vpop.f32.mrb[0].mxu0
      %3411 = vmatprep.mubr.f32.mxu0 %v2554
      %3412 = vmatmul.mubr.f32.gmra.mrb[0].mxu0 %v2522
      %v3413 = vpop.f32.mrb[0].mxu0
      %v3414 = vadd.f32 %v3189, %v3413
      %v3415 = vpop.f32.mrb[0].mxu0
      %3416 = vmatprep.mubr.f32.mxu0 %v2555
      %3417 = vmatmul.mubr.f32.gmra.mrb[0].mxu0 %v2523
      %v3418 = vpop.f32.mrb[0].mxu0
      %v3419 = vadd.f32 %v3194, %v3418
      %v3420 = vpop.f32.mrb[0].mxu0
      %3421 = vmatprep.mubr.f32.mxu0 %v2556
      %3422 = vmatmul.mubr.f32.gmra.mrb[0].mxu0 %v2524
      %v3423 = vpop.f32.mrb[0].mxu0
      %v3424 = vadd.f32 %v3199, %v3423
      %v3425 = vpop.f32.mrb[0].mxu0
      %3426 = vmatprep.mubr.f32.mxu0 %v2557
      %3427 = vmatmul.mubr.f32.gmra.mrb[0].mxu0 %v2525
      %v3428 = vpop.f32.mrb[0].mxu0
      %v3429 = vadd.f32 %v3204, %v3428
      %v3430 = vpop.f32.mrb[0].mxu0
      %3431 = vmatprep.mubr.f32.mxu0 %v2558
      %3432 = vmatmul.mubr.f32.gmra.mrb[0].mxu0 %v2526
      %v3433 = vpop.f32.mrb[0].mxu0
      %v3434 = vadd.f32 %v3209, %v3433
      %v3435 = vpop.f32.mrb[0].mxu0
      %3436 = vmatprep.mubr.f32.mxu0 %v2559
      %3437 = vmatmul.mubr.f32.gmra.mrb[0].mxu0 %v2527
      %v3438 = vpop.f32.mrb[0].mxu0
      %v3439 = vadd.f32 %v3214, %v3438
      %v3440 = vpop.f32.mrb[0].mxu0
      %3441 = vmatprep.mubr.f32.mxu0 %v2560
      %3442 = vmatmul.mubr.f32.gmra.mrb[0].mxu0 %v2528
      %v3443 = vpop.f32.mrb[0].mxu0
      %v3444 = vadd.f32 %v3219, %v3443
      %v3445 = vpop.f32.mrb[0].mxu0
      %3446 = vmatprep.mubr.f32.mxu0 %v2561
      %3447 = vmatmul.mubr.f32.gmra.mrb[0].mxu0 %v2529
      %v3448 = vpop.f32.mrb[0].mxu0
      %v3449 = vadd.f32 %v3224, %v3448
      %v3450 = vpop.f32.mrb[0].mxu0
      %3451 = vmatprep.mubr.f32.mxu0 %v2562
      %3452 = vmatmul.mubr.f32.gmra.mrb[0].mxu0 %v2530
      %v3453 = vpop.f32.mrb[0].mxu0
      %v3454 = vadd.f32 %v3229, %v3453
      %v3455 = vpop.f32.mrb[0].mxu0
      %3456 = vmatprep.mubr.f32.mxu0 %v2563
      %3457 = vmatmul.mubr.f32.gmra.mrb[0].mxu0 %v2531
      %v3458 = vpop.f32.mrb[0].mxu0
      %v3459 = vadd.f32 %v3234, %v3458
      %v3460 = vpop.f32.mrb[0].mxu0
      %3461 = vmatprep.mubr.f32.mxu0 %v2564
      %3462 = vmatmul.mubr.f32.gmra.mrb[0].mxu0 %v2532
      %v3463 = vpop.f32.mrb[0].mxu0
      %v3464 = vadd.f32 %v3239, %v3463
      %v3465 = vpop.f32.mrb[0].mxu0
      %3466 = vmatprep.mubr.f32.mxu0 %v2565
      %3467 = vmatmul.mubr.f32.gmra.mrb[0].mxu0 %v2533
      %v3468 = vpop.f32.mrb[0].mxu0
      %v3469 = vadd.f32 %v3244, %v3468
      %v3470 = vpop.f32.mrb[0].mxu0
      %3471 = vmatprep.mubr.f32.mxu0 %v2566
      %3472 = vmatmul.mubr.f32.gmra.mrb[0].mxu0 %v2534
      %v3473 = vpop.f32.mrb[0].mxu0
      %v3474 = vadd.f32 %v3249, %v3473
      %v3475 = vpop.f32.mrb[0].mxu0
      %3476 = vmatprep.mubr.f32.mxu0 %v2567
      %3477 = vmatmul.mubr.f32.gmra.mrb[0].mxu0 %v2535
      %v3478 = vpop.f32.mrb[0].mxu0
      %v3479 = vadd.f32 %v3254, %v3478
      %v3480 = vpop.f32.mrb[0].mxu0
      %3481 = vmatprep.mubr.f32.mxu0 %v2568
      %3482 = vmatmul.mubr.f32.gmra.mrb[0].mxu0 %v2536
      %v3483 = vpop.f32.mrb[0].mxu0
      %v3484 = vadd.f32 %v3259, %v3483
      %v3485 = vpop.f32.mrb[0].mxu0
      %3486 = vmatprep.mubr.f32.mxu0 %v2569
      %3487 = vmatmul.mubr.f32.gmra.mrb[0].mxu0 %v2537
      %v3488 = vpop.f32.mrb[0].mxu0
      %v3489 = vadd.f32 %v3264, %v3488
      %v3490 = vpop.f32.mrb[0].mxu0
      %3491 = vdwg.mxu0
      %3492 = vmatprep.subr.mxu0 0.0
      %3493 = vmatpush1.msra.mxu0 %v2762
      %3494 = vmatprep.subr.mxu0 0.0
      %3495 = vmatpush1.msra.mxu0 %v2763
      %3496 = vmatprep.subr.mxu0 0.0
      %3497 = vmatpush1.msra.mxu0 %v2764
      %3498 = vmatprep.subr.mxu0 0.0
      %3499 = vmatpush1.msra.mxu0 %v2765
      %3500 = vmatprep.subr.mxu0 0.0
      %3501 = vmatpush1.msra.mxu0 %v2766
      %3502 = vmatprep.subr.mxu0 0.0
      %3503 = vmatpush1.msra.mxu0 %v2767
      %3504 = vmatprep.subr.mxu0 0.0
      %3505 = vmatpush1.msra.mxu0 %v2768
      %3506 = vmatprep.subr.mxu0 0.0
      %3507 = vmatpush1.msra.mxu0 %v2769
      %3508 = vmatprep.subr.mxu0 0.0
      %3509 = vmatpush1.msra.mxu0 %v2770
      %3510 = vmatprep.subr.mxu0 0.0
      %3511 = vmatpush1.msra.mxu0 %v2771
      %3512 = vmatprep.subr.mxu0 0.0
      %3513 = vmatpush1.msra.mxu0 %v2772
      %3514 = vmatprep.subr.mxu0 0.0
      %3515 = vmatpush1.msra.mxu0 %v2773
      %3516 = vmatprep.subr.mxu0 0.0
      %3517 = vmatpush1.msra.mxu0 %v2774
      %3518 = vmatprep.subr.mxu0 0.0
      %3519 = vmatpush1.msra.mxu0 %v2775
      %3520 = vmatprep.subr.mxu0 0.0
      %3521 = vmatpush1.msra.mxu0 %v2776
      %3522 = vmatprep.subr.mxu0 0.0
      %3523 = vmatpush1.msra.mxu0 %v2777
      %3524 = vmatprep.subr.mxu0 0.0
      %3525 = vmatpush1.msra.mxu0 %v2778
      %3526 = vmatprep.subr.mxu0 0.0
      %3527 = vmatpush1.msra.mxu0 %v2779
      %3528 = vmatprep.subr.mxu0 0.0
      %3529 = vmatpush1.msra.mxu0 %v2780
      %3530 = vmatprep.subr.mxu0 0.0
      %3531 = vmatpush1.msra.mxu0 %v2781
      %3532 = vmatprep.subr.mxu0 0.0
      %3533 = vmatpush1.msra.mxu0 %v2782
      %3534 = vmatprep.subr.mxu0 0.0
      %3535 = vmatpush1.msra.mxu0 %v2783
      %3536 = vmatprep.subr.mxu0 0.0
      %3537 = vmatpush1.msra.mxu0 %v2784
      %3538 = vmatprep.subr.mxu0 0.0
      %3539 = vmatpush1.msra.mxu0 %v2785
      %3540 = vmatprep.subr.mxu0 0.0
      %3541 = vmatpush1.msra.mxu0 %v2786
      %3542 = vmatprep.subr.mxu0 0.0
      %3543 = vmatpush1.msra.mxu0 %v2787
      %3544 = vmatprep.subr.mxu0 0.0
      %3545 = vmatpush1.msra.mxu0 %v2788
      %3546 = vmatprep.subr.mxu0 0.0
      %3547 = vmatpush1.msra.mxu0 %v2789
      %3548 = vmatprep.subr.mxu0 0.0
      %3549 = vmatpush1.msra.mxu0 %v2790
      %3550 = vmatprep.subr.mxu0 0.0
      %3551 = vmatpush1.msra.mxu0 %v2791
      %3552 = vmatprep.subr.mxu0 0.0
      %3553 = vmatpush1.msra.mxu0 %v2792
      %3554 = vmatprep.subr.mxu0 0.0
      %3555 = vmatpush1.msra.mxu0 %v2793
      %3556 = vmatprep.mubr.f32.mxu0 %v2602
      %3557 = vmatmul.mubr.f32.gmra.mrb[0].mxu0 %v2570
      %v3558 = vpop.f32.mrb[0].mxu0
      %v3559 = vadd.f32 %v3334, %v3558
      %v3560 = vpop.f32.mrb[0].mxu0
      %3561 = vmatprep.mubr.f32.mxu0 %v2603
      %3562 = vmatmul.mubr.f32.gmra.mrb[0].mxu0 %v2571
      %v3563 = vpop.f32.mrb[0].mxu0
      %v3564 = vadd.f32 %v3339, %v3563
      %v3565 = vpop.f32.mrb[0].mxu0
      %3566 = vmatprep.mubr.f32.mxu0 %v2604
      %3567 = vmatmul.mubr.f32.gmra.mrb[0].mxu0 %v2572
      %v3568 = vpop.f32.mrb[0].mxu0
      %v3569 = vadd.f32 %v3344, %v3568
      %v3570 = vpop.f32.mrb[0].mxu0
      %3571 = vmatprep.mubr.f32.mxu0 %v2605
      %3572 = vmatmul.mubr.f32.gmra.mrb[0].mxu0 %v2573
      %v3573 = vpop.f32.mrb[0].mxu0
      %v3574 = vadd.f32 %v3349, %v3573
      %v3575 = vpop.f32.mrb[0].mxu0
      %3576 = vmatprep.mubr.f32.mxu0 %v2606
      %3577 = vmatmul.mubr.f32.gmra.mrb[0].mxu0 %v2574
      %v3578 = vpop.f32.mrb[0].mxu0
      %v3579 = vadd.f32 %v3354, %v3578
      %v3580 = vpop.f32.mrb[0].mxu0
      %3581 = vmatprep.mubr.f32.mxu0 %v2607
      %3582 = vmatmul.mubr.f32.gmra.mrb[0].mxu0 %v2575
      %v3583 = vpop.f32.mrb[0].mxu0
      %v3584 = vadd.f32 %v3359, %v3583
      %v3585 = vpop.f32.mrb[0].mxu0
      %3586 = vmatprep.mubr.f32.mxu0 %v2608
      %3587 = vmatmul.mubr.f32.gmra.mrb[0].mxu0 %v2576
      %v3588 = vpop.f32.mrb[0].mxu0
      %v3589 = vadd.f32 %v3364, %v3588
      %v3590 = vpop.f32.mrb[0].mxu0
      %3591 = vmatprep.mubr.f32.mxu0 %v2609
      %3592 = vmatmul.mubr.f32.gmra.mrb[0].mxu0 %v2577
      %v3593 = vpop.f32.mrb[0].mxu0
      %v3594 = vadd.f32 %v3369, %v3593
      %v3595 = vpop.f32.mrb[0].mxu0
      %3596 = vmatprep.mubr.f32.mxu0 %v2610
      %3597 = vmatmul.mubr.f32.gmra.mrb[0].mxu0 %v2578
      %v3598 = vpop.f32.mrb[0].mxu0
      %v3599 = vadd.f32 %v3374, %v3598
      %v3600 = vpop.f32.mrb[0].mxu0
      %3601 = vmatprep.mubr.f32.mxu0 %v2611
      %3602 = vmatmul.mubr.f32.gmra.mrb[0].mxu0 %v2579
      %v3603 = vpop.f32.mrb[0].mxu0
      %v3604 = vadd.f32 %v3379, %v3603
      %v3605 = vpop.f32.mrb[0].mxu0
      %3606 = vmatprep.mubr.f32.mxu0 %v2612
      %3607 = vmatmul.mubr.f32.gmra.mrb[0].mxu0 %v2580
      %v3608 = vpop.f32.mrb[0].mxu0
      %v3609 = vadd.f32 %v3384, %v3608
      %v3610 = vpop.f32.mrb[0].mxu0
      %3611 = vmatprep.mubr.f32.mxu0 %v2613
      %3612 = vmatmul.mubr.f32.gmra.mrb[0].mxu0 %v2581
      %v3613 = vpop.f32.mrb[0].mxu0
      %v3614 = vadd.f32 %v3389, %v3613
      %v3615 = vpop.f32.mrb[0].mxu0
      %3616 = vmatprep.mubr.f32.mxu0 %v2614
      %3617 = vmatmul.mubr.f32.gmra.mrb[0].mxu0 %v2582
      %v3618 = vpop.f32.mrb[0].mxu0
      %v3619 = vadd.f32 %v3394, %v3618
      %v3620 = vpop.f32.mrb[0].mxu0
      %3621 = vmatprep.mubr.f32.mxu0 %v2615
      %3622 = vmatmul.mubr.f32.gmra.mrb[0].mxu0 %v2583
      %v3623 = vpop.f32.mrb[0].mxu0
      %v3624 = vadd.f32 %v3399, %v3623
      %v3625 = vpop.f32.mrb[0].mxu0
      %3626 = vmatprep.mubr.f32.mxu0 %v2616
      %3627 = vmatmul.mubr.f32.gmra.mrb[0].mxu0 %v2584
      %v3628 = vpop.f32.mrb[0].mxu0
      %v3629 = vadd.f32 %v3404, %v3628
      %v3630 = vpop.f32.mrb[0].mxu0
      %3631 = vmatprep.mubr.f32.mxu0 %v2617
      %3632 = vmatmul.mubr.f32.gmra.mrb[0].mxu0 %v2585
      %v3633 = vpop.f32.mrb[0].mxu0
      %v3634 = vadd.f32 %v3409, %v3633
      %v3635 = vpop.f32.mrb[0].mxu0
      %3636 = vmatprep.mubr.f32.mxu0 %v2618
      %3637 = vmatmul.mubr.f32.gmra.mrb[0].mxu0 %v2586
      %v3638 = vpop.f32.mrb[0].mxu0
      %v3639 = vadd.f32 %v3414, %v3638
      %v3640 = vpop.f32.mrb[0].mxu0
      %3641 = vmatprep.mubr.f32.mxu0 %v2619
      %3642 = vmatmul.mubr.f32.gmra.mrb[0].mxu0 %v2587
      %v3643 = vpop.f32.mrb[0].mxu0
      %v3644 = vadd.f32 %v3419, %v3643
      %v3645 = vpop.f32.mrb[0].mxu0
      %3646 = vmatprep.mubr.f32.mxu0 %v2620
      %3647 = vmatmul.mubr.f32.gmra.mrb[0].mxu0 %v2588
      %v3648 = vpop.f32.mrb[0].mxu0
      %v3649 = vadd.f32 %v3424, %v3648
      %v3650 = vpop.f32.mrb[0].mxu0
      %3651 = vmatprep.mubr.f32.mxu0 %v2621
      %3652 = vmatmul.mubr.f32.gmra.mrb[0].mxu0 %v2589
      %v3653 = vpop.f32.mrb[0].mxu0
      %v3654 = vadd.f32 %v3429, %v3653
      %v3655 = vpop.f32.mrb[0].mxu0
      %3656 = vmatprep.mubr.f32.mxu0 %v2622
      %3657 = vmatmul.mubr.f32.gmra.mrb[0].mxu0 %v2590
      %v3658 = vpop.f32.mrb[0].mxu0
      %v3659 = vadd.f32 %v3434, %v3658
      %v3660 = vpop.f32.mrb[0].mxu0
      %3661 = vmatprep.mubr.f32.mxu0 %v2623
      %3662 = vmatmul.mubr.f32.gmra.mrb[0].mxu0 %v2591
      %v3663 = vpop.f32.mrb[0].mxu0
      %v3664 = vadd.f32 %v3439, %v3663
      %v3665 = vpop.f32.mrb[0].mxu0
      %3666 = vmatprep.mubr.f32.mxu0 %v2624
      %3667 = vmatmul.mubr.f32.gmra.mrb[0].mxu0 %v2592
      %v3668 = vpop.f32.mrb[0].mxu0
      %v3669 = vadd.f32 %v3444, %v3668
      %v3670 = vpop.f32.mrb[0].mxu0
      %3671 = vmatprep.mubr.f32.mxu0 %v2625
      %3672 = vmatmul.mubr.f32.gmra.mrb[0].mxu0 %v2593
      %v3673 = vpop.f32.mrb[0].mxu0
      %v3674 = vadd.f32 %v3449, %v3673
      %v3675 = vpop.f32.mrb[0].mxu0
      %3676 = vmatprep.mubr.f32.mxu0 %v2626
      %3677 = vmatmul.mubr.f32.gmra.mrb[0].mxu0 %v2594
      %v3678 = vpop.f32.mrb[0].mxu0
      %v3679 = vadd.f32 %v3454, %v3678
      %v3680 = vpop.f32.mrb[0].mxu0
      %3681 = vmatprep.mubr.f32.mxu0 %v2627
      %3682 = vmatmul.mubr.f32.gmra.mrb[0].mxu0 %v2595
      %v3683 = vpop.f32.mrb[0].mxu0
      %v3684 = vadd.f32 %v3459, %v3683
      %v3685 = vpop.f32.mrb[0].mxu0
      %3686 = vmatprep.mubr.f32.mxu0 %v2628
      %3687 = vmatmul.mubr.f32.gmra.mrb[0].mxu0 %v2596
      %v3688 = vpop.f32.mrb[0].mxu0
      %v3689 = vadd.f32 %v3464, %v3688
      %v3690 = vpop.f32.mrb[0].mxu0
      %3691 = vmatprep.mubr.f32.mxu0 %v2629
      %3692 = vmatmul.mubr.f32.gmra.mrb[0].mxu0 %v2597
      %v3693 = vpop.f32.mrb[0].mxu0
      %v3694 = vadd.f32 %v3469, %v3693
      %v3695 = vpop.f32.mrb[0].mxu0
      %3696 = vmatprep.mubr.f32.mxu0 %v2630
      %3697 = vmatmul.mubr.f32.gmra.mrb[0].mxu0 %v2598
      %v3698 = vpop.f32.mrb[0].mxu0
      %v3699 = vadd.f32 %v3474, %v3698
      %v3700 = vpop.f32.mrb[0].mxu0
      %3701 = vmatprep.mubr.f32.mxu0 %v2631
      %3702 = vmatmul.mubr.f32.gmra.mrb[0].mxu0 %v2599
      %v3703 = vpop.f32.mrb[0].mxu0
      %v3704 = vadd.f32 %v3479, %v3703
      %v3705 = vpop.f32.mrb[0].mxu0
      %3706 = vmatprep.mubr.f32.mxu0 %v2632
      %3707 = vmatmul.mubr.f32.gmra.mrb[0].mxu0 %v2600
      %v3708 = vpop.f32.mrb[0].mxu0
      %v3709 = vadd.f32 %v3484, %v3708
      %v3710 = vpop.f32.mrb[0].mxu0
      %3711 = vmatprep.mubr.f32.mxu0 %v2633
      %3712 = vmatmul.mubr.f32.gmra.mrb[0].mxu0 %v2601
      %v3713 = vpop.f32.mrb[0].mxu0
      %v3714 = vadd.f32 %v3489, %v3713
      %v3715 = vpop.f32.mrb[0].mxu0
      %3716 = vdwg.mxu0
      %3717 = vmatprep.subr.mxu0 0.0
      %3718 = vmatpush1.msra.mxu0 %v2794
      %3719 = vmatprep.subr.mxu0 0.0
      %3720 = vmatpush1.msra.mxu0 %v2795
      %3721 = vmatprep.subr.mxu0 0.0
      %3722 = vmatpush1.msra.mxu0 %v2796
      %3723 = vmatprep.subr.mxu0 0.0
      %3724 = vmatpush1.msra.mxu0 %v2797
      %3725 = vmatprep.subr.mxu0 0.0
      %3726 = vmatpush1.msra.mxu0 %v2798
      %3727 = vmatprep.subr.mxu0 0.0
      %3728 = vmatpush1.msra.mxu0 %v2799
      %3729 = vmatprep.subr.mxu0 0.0
      %3730 = vmatpush1.msra.mxu0 %v2800
      %3731 = vmatprep.subr.mxu0 0.0
      %3732 = vmatpush1.msra.mxu0 %v2801
      %3733 = vmatprep.subr.mxu0 0.0
      %3734 = vmatpush1.msra.mxu0 %v2802
      %3735 = vmatprep.subr.mxu0 0.0
      %3736 = vmatpush1.msra.mxu0 %v2803
      %3737 = vmatprep.subr.mxu0 0.0
      %3738 = vmatpush1.msra.mxu0 %v2804
      %3739 = vmatprep.subr.mxu0 0.0
      %3740 = vmatpush1.msra.mxu0 %v2805
      %3741 = vmatprep.subr.mxu0 0.0
      %3742 = vmatpush1.msra.mxu0 %v2806
      %3743 = vmatprep.subr.mxu0 0.0
      %3744 = vmatpush1.msra.mxu0 %v2807
      %3745 = vmatprep.subr.mxu0 0.0
      %3746 = vmatpush1.msra.mxu0 %v2808
      %3747 = vmatprep.subr.mxu0 0.0
      %3748 = vmatpush1.msra.mxu0 %v2809
      %3749 = vmatprep.subr.mxu0 0.0
      %3750 = vmatpush1.msra.mxu0 0.0
      %3751 = vmatprep.subr.mxu0 0.0
      %3752 = vmatpush1.msra.mxu0 0.0
      %3753 = vmatprep.subr.mxu0 0.0
      %3754 = vmatpush1.msra.mxu0 0.0
      %3755 = vmatprep.subr.mxu0 0.0
      %3756 = vmatpush1.msra.mxu0 0.0
      %3757 = vmatprep.subr.mxu0 0.0
      %3758 = vmatpush1.msra.mxu0 0.0
      %3759 = vmatprep.subr.mxu0 0.0
      %3760 = vmatpush1.msra.mxu0 0.0
      %3761 = vmatprep.subr.mxu0 0.0
      %3762 = vmatpush1.msra.mxu0 0.0
      %3763 = vmatprep.subr.mxu0 0.0
      %3764 = vmatpush1.msra.mxu0 0.0
      %3765 = vmatprep.subr.mxu0 0.0
      %3766 = vmatpush1.msra.mxu0 0.0
      %3767 = vmatprep.subr.mxu0 0.0
      %3768 = vmatpush1.msra.mxu0 0.0
      %3769 = vmatprep.subr.mxu0 0.0
      %3770 = vmatpush1.msra.mxu0 0.0
      %3771 = vmatprep.subr.mxu0 0.0
      %3772 = vmatpush1.msra.mxu0 0.0
      %3773 = vmatprep.subr.mxu0 0.0
      %3774 = vmatpush1.msra.mxu0 0.0
      %3775 = vmatprep.subr.mxu0 0.0
      %3776 = vmatpush1.msra.mxu0 0.0
      %3777 = vmatprep.subr.mxu0 0.0
      %3778 = vmatpush1.msra.mxu0 0.0
      %3779 = vmatprep.subr.mxu0 0.0
      %3780 = vmatpush1.msra.mxu0 0.0
      %3781 = vmatprep.mubr.f32.mxu0 0.0
      %3782 = vmatmul.mubr.f32.gmra.mrb[0].mxu0 %v2634
      %v3783 = vpop.f32.mrb[0].mxu0
      %v3784 = vadd.f32 %v3559, %v3783
      %v3785 = vpop.f32.mrb[0].mxu0
      %3786 = vmatprep.mubr.f32.mxu0 0.0
      %3787 = vmatmul.mubr.f32.gmra.mrb[0].mxu0 %v2635
      %v3788 = vpop.f32.mrb[0].mxu0
      %v3789 = vadd.f32 %v3564, %v3788
      %v3790 = vpop.f32.mrb[0].mxu0
      %3791 = vmatprep.mubr.f32.mxu0 0.0
      %3792 = vmatmul.mubr.f32.gmra.mrb[0].mxu0 %v2636
      %v3793 = vpop.f32.mrb[0].mxu0
      %v3794 = vadd.f32 %v3569, %v3793
      %v3795 = vpop.f32.mrb[0].mxu0
      %3796 = vmatprep.mubr.f32.mxu0 0.0
      %3797 = vmatmul.mubr.f32.gmra.mrb[0].mxu0 %v2637
      %v3798 = vpop.f32.mrb[0].mxu0
      %v3799 = vadd.f32 %v3574, %v3798
      %v3800 = vpop.f32.mrb[0].mxu0
      %3801 = vmatprep.mubr.f32.mxu0 0.0
      %3802 = vmatmul.mubr.f32.gmra.mrb[0].mxu0 %v2638
      %v3803 = vpop.f32.mrb[0].mxu0
      %v3804 = vadd.f32 %v3579, %v3803
      %v3805 = vpop.f32.mrb[0].mxu0
      %3806 = vmatprep.mubr.f32.mxu0 0.0
      %3807 = vmatmul.mubr.f32.gmra.mrb[0].mxu0 %v2639
      %v3808 = vpop.f32.mrb[0].mxu0
      %v3809 = vadd.f32 %v3584, %v3808
      %v3810 = vpop.f32.mrb[0].mxu0
      %3811 = vmatprep.mubr.f32.mxu0 0.0
      %3812 = vmatmul.mubr.f32.gmra.mrb[0].mxu0 %v2640
      %v3813 = vpop.f32.mrb[0].mxu0
      %v3814 = vadd.f32 %v3589, %v3813
      %v3815 = vpop.f32.mrb[0].mxu0
      %3816 = vmatprep.mubr.f32.mxu0 0.0
      %3817 = vmatmul.mubr.f32.gmra.mrb[0].mxu0 %v2641
      %v3818 = vpop.f32.mrb[0].mxu0
      %v3819 = vadd.f32 %v3594, %v3818
      %v3820 = vpop.f32.mrb[0].mxu0
      %3821 = vmatprep.mubr.f32.mxu0 0.0
      %3822 = vmatmul.mubr.f32.gmra.mrb[0].mxu0 %v2642
      %v3823 = vpop.f32.mrb[0].mxu0
      %v3824 = vadd.f32 %v3599, %v3823
      %v3825 = vpop.f32.mrb[0].mxu0
      %3826 = vmatprep.mubr.f32.mxu0 0.0
      %3827 = vmatmul.mubr.f32.gmra.mrb[0].mxu0 %v2643
      %v3828 = vpop.f32.mrb[0].mxu0
      %v3829 = vadd.f32 %v3604, %v3828
      %v3830 = vpop.f32.mrb[0].mxu0
      %3831 = vmatprep.mubr.f32.mxu0 0.0
      %3832 = vmatmul.mubr.f32.gmra.mrb[0].mxu0 %v2644
      %v3833 = vpop.f32.mrb[0].mxu0
      %v3834 = vadd.f32 %v3609, %v3833
      %v3835 = vpop.f32.mrb[0].mxu0
      %3836 = vmatprep.mubr.f32.mxu0 0.0
      %3837 = vmatmul.mubr.f32.gmra.mrb[0].mxu0 %v2645
      %v3838 = vpop.f32.mrb[0].mxu0
      %v3839 = vadd.f32 %v3614, %v3838
      %v3840 = vpop.f32.mrb[0].mxu0
      %3841 = vmatprep.mubr.f32.mxu0 0.0
      %3842 = vmatmul.mubr.f32.gmra.mrb[0].mxu0 %v2646
      %v3843 = vpop.f32.mrb[0].mxu0
      %v3844 = vadd.f32 %v3619, %v3843
      %v3845 = vpop.f32.mrb[0].mxu0
      %3846 = vmatprep.mubr.f32.mxu0 0.0
      %3847 = vmatmul.mubr.f32.gmra.mrb[0].mxu0 %v2647
      %v3848 = vpop.f32.mrb[0].mxu0
      %v3849 = vadd.f32 %v3624, %v3848
      %v3850 = vpop.f32.mrb[0].mxu0
      %3851 = vmatprep.mubr.f32.mxu0 0.0
      %3852 = vmatmul.mubr.f32.gmra.mrb[0].mxu0 %v2648
      %v3853 = vpop.f32.mrb[0].mxu0
      %v3854 = vadd.f32 %v3629, %v3853
      %v3855 = vpop.f32.mrb[0].mxu0
      %3856 = vmatprep.mubr.f32.mxu0 0.0
      %3857 = vmatmul.mubr.f32.gmra.mrb[0].mxu0 %v2649
      %v3858 = vpop.f32.mrb[0].mxu0
      %v3859 = vadd.f32 %v3634, %v3858
      %v3860 = vpop.f32.mrb[0].mxu0
      %3861 = vmatprep.mubr.f32.mxu0 0.0
      %3862 = vmatmul.mubr.f32.gmra.mrb[0].mxu0 %v2650
      %v3863 = vpop.f32.mrb[0].mxu0
      %v3864 = vadd.f32 %v3639, %v3863
      %v3865 = vpop.f32.mrb[0].mxu0
      %3866 = vmatprep.mubr.f32.mxu0 0.0
      %3867 = vmatmul.mubr.f32.gmra.mrb[0].mxu0 %v2651
      %v3868 = vpop.f32.mrb[0].mxu0
      %v3869 = vadd.f32 %v3644, %v3868
      %v3870 = vpop.f32.mrb[0].mxu0
      %3871 = vmatprep.mubr.f32.mxu0 0.0
      %3872 = vmatmul.mubr.f32.gmra.mrb[0].mxu0 %v2652
      %v3873 = vpop.f32.mrb[0].mxu0
      %v3874 = vadd.f32 %v3649, %v3873
      %v3875 = vpop.f32.mrb[0].mxu0
      %3876 = vmatprep.mubr.f32.mxu0 0.0
      %3877 = vmatmul.mubr.f32.gmra.mrb[0].mxu0 %v2653
      %v3878 = vpop.f32.mrb[0].mxu0
      %v3879 = vadd.f32 %v3654, %v3878
      %v3880 = vpop.f32.mrb[0].mxu0
      %3881 = vmatprep.mubr.f32.mxu0 0.0
      %3882 = vmatmul.mubr.f32.gmra.mrb[0].mxu0 %v2654
      %v3883 = vpop.f32.mrb[0].mxu0
      %v3884 = vadd.f32 %v3659, %v3883
      %v3885 = vpop.f32.mrb[0].mxu0
      %3886 = vmatprep.mubr.f32.mxu0 0.0
      %3887 = vmatmul.mubr.f32.gmra.mrb[0].mxu0 %v2655
      %v3888 = vpop.f32.mrb[0].mxu0
      %v3889 = vadd.f32 %v3664, %v3888
      %v3890 = vpop.f32.mrb[0].mxu0
      %3891 = vmatprep.mubr.f32.mxu0 0.0
      %3892 = vmatmul.mubr.f32.gmra.mrb[0].mxu0 %v2656
      %v3893 = vpop.f32.mrb[0].mxu0
      %v3894 = vadd.f32 %v3669, %v3893
      %v3895 = vpop.f32.mrb[0].mxu0
      %3896 = vmatprep.mubr.f32.mxu0 0.0
      %3897 = vmatmul.mubr.f32.gmra.mrb[0].mxu0 %v2657
      %v3898 = vpop.f32.mrb[0].mxu0
      %v3899 = vadd.f32 %v3674, %v3898
      %v3900 = vpop.f32.mrb[0].mxu0
      %3901 = vmatprep.mubr.f32.mxu0 0.0
      %3902 = vmatmul.mubr.f32.gmra.mrb[0].mxu0 %v2658
      %v3903 = vpop.f32.mrb[0].mxu0
      %v3904 = vadd.f32 %v3679, %v3903
      %v3905 = vpop.f32.mrb[0].mxu0
      %3906 = vmatprep.mubr.f32.mxu0 0.0
      %3907 = vmatmul.mubr.f32.gmra.mrb[0].mxu0 %v2659
      %v3908 = vpop.f32.mrb[0].mxu0
      %v3909 = vadd.f32 %v3684, %v3908
      %v3910 = vpop.f32.mrb[0].mxu0
      %3911 = vmatprep.mubr.f32.mxu0 0.0
      %3912 = vmatmul.mubr.f32.gmra.mrb[0].mxu0 %v2660
      %v3913 = vpop.f32.mrb[0].mxu0
      %v3914 = vadd.f32 %v3689, %v3913
      %v3915 = vpop.f32.mrb[0].mxu0
      %3916 = vmatprep.mubr.f32.mxu0 0.0
      %3917 = vmatmul.mubr.f32.gmra.mrb[0].mxu0 %v2661
      %v3918 = vpop.f32.mrb[0].mxu0
      %v3919 = vadd.f32 %v3694, %v3918
      %v3920 = vpop.f32.mrb[0].mxu0
      %3921 = vmatprep.mubr.f32.mxu0 0.0
      %3922 = vmatmul.mubr.f32.gmra.mrb[0].mxu0 %v2662
      %v3923 = vpop.f32.mrb[0].mxu0
      %v3924 = vadd.f32 %v3699, %v3923
      %v3925 = vpop.f32.mrb[0].mxu0
      %3926 = vmatprep.mubr.f32.mxu0 0.0
      %3927 = vmatmul.mubr.f32.gmra.mrb[0].mxu0 %v2663
      %v3928 = vpop.f32.mrb[0].mxu0
      %v3929 = vadd.f32 %v3704, %v3928
      %v3930 = vpop.f32.mrb[0].mxu0
      %3931 = vmatprep.mubr.f32.mxu0 0.0
      %3932 = vmatmul.mubr.f32.gmra.mrb[0].mxu0 %v2664
      %v3933 = vpop.f32.mrb[0].mxu0
      %v3934 = vadd.f32 %v3709, %v3933
      %v3935 = vpop.f32.mrb[0].mxu0
      %3936 = vmatprep.mubr.f32.mxu0 0.0
      %3937 = vmatmul.mubr.f32.gmra.mrb[0].mxu0 %v2665
      %v3938 = vpop.f32.mrb[0].mxu0
      %v3939 = vadd.f32 %v3714, %v3938
      %v3940 = vpop.f32.mrb[0].mxu0
      %3941 = vdwg.mxu0
      %v3942 = vld [vmem:[%s273] sm:$0xff]
      %v3943 = vld [vmem:[%s273 + $0x8] sm:$0xff]
      %v3944 = vld [vmem:[%s273 + $0x10] sm:$0xff]
      %v3945 = vld [vmem:[%s273 + $0x18] sm:$0xff]
      %v3946 = vld [vmem:[%s273 + $0x20] sm:$0xff]
      %v3947 = vld [vmem:[%s273 + $0x28] sm:$0xff]
      %v3948 = vld [vmem:[%s273 + $0x30] sm:$0xff]
      %v3949 = vld [vmem:[%s273 + $0x38] sm:$0xff]
      %v3950 = vld [vmem:[%s273 + $0x40] sm:$0xff]
      %v3951 = vld [vmem:[%s273 + $0x48] sm:$0xff]
      %v3952 = vld [vmem:[%s273 + $0x50] sm:$0xff]
      %v3953 = vld [vmem:[%s273 + $0x58] sm:$0xff]
      %v3954 = vld [vmem:[%s273 + $0x60] sm:$0xff]
      %v3955 = vld [vmem:[%s273 + $0x68] sm:$0xff]
      %v3956 = vld [vmem:[%s273 + $0x70] sm:$0xff]
      %v3957 = vld [vmem:[%s273 + $0x78] sm:$0xff]
      %v3958 = vld [vmem:[%s273 + $0x80] sm:$0xff]
      %v3959 = vld [vmem:[%s273 + $0x88] sm:$0xff]
      %v3960 = vld [vmem:[%s273 + $0x90] sm:$0xff]
      %v3961 = vld [vmem:[%s273 + $0x98] sm:$0xff]
      %v3962 = vld [vmem:[%s273 + $0xa0] sm:$0xff]
      %v3963 = vld [vmem:[%s273 + $0xa8] sm:$0xff]
      %v3964 = vld [vmem:[%s273 + $0xb0] sm:$0xff]
      %v3965 = vld [vmem:[%s273 + $0xb8] sm:$0xff]
      %v3966 = vld [vmem:[%s273 + $0xc0] sm:$0xff]
      %v3967 = vld [vmem:[%s273 + $0xc8] sm:$0xff]
      %v3968 = vld [vmem:[%s273 + $0xd0] sm:$0xff]
      %v3969 = vld [vmem:[%s273 + $0xd8] sm:$0xff]
      %v3970 = vld [vmem:[%s273 + $0xe0] sm:$0xff]
      %v3971 = vld [vmem:[%s273 + $0xe8] sm:$0xff]
      %v3972 = vld [vmem:[%s273 + $0xf0] sm:$0xff]
      %v3973 = vld [vmem:[%s273 + $0xf8] sm:$0xff]
      %v3974 = vadd.f32 %v3942, %v3784
      %v3975 = vadd.f32 %v3943, %v3789
      %v3976 = vadd.f32 %v3944, %v3794
      %v3977 = vadd.f32 %v3945, %v3799
      %v3978 = vadd.f32 %v3946, %v3804
      %v3979 = vadd.f32 %v3947, %v3809
      %v3980 = vadd.f32 %v3948, %v3814
      %v3981 = vadd.f32 %v3949, %v3819
      %v3982 = vadd.f32 %v3950, %v3824
      %v3983 = vadd.f32 %v3951, %v3829
      %v3984 = vadd.f32 %v3952, %v3834
      %v3985 = vadd.f32 %v3953, %v3839
      %v3986 = vadd.f32 %v3954, %v3844
      %v3987 = vadd.f32 %v3955, %v3849
      %v3988 = vadd.f32 %v3956, %v3854
      %v3989 = vadd.f32 %v3957, %v3859
      %v3990 = vadd.f32 %v3958, %v3864
      %v3991 = vadd.f32 %v3959, %v3869
      %v3992 = vadd.f32 %v3960, %v3874
      %v3993 = vadd.f32 %v3961, %v3879
      %v3994 = vadd.f32 %v3962, %v3884
      %v3995 = vadd.f32 %v3963, %v3889
      %v3996 = vadd.f32 %v3964, %v3894
      %v3997 = vadd.f32 %v3965, %v3899
      %v3998 = vadd.f32 %v3966, %v3904
      %v3999 = vadd.f32 %v3967, %v3909
      %v4000 = vadd.f32 %v3968, %v3914
      %v4001 = vadd.f32 %v3969, %v3919
      %v4002 = vadd.f32 %v3970, %v3924
      %v4003 = vadd.f32 %v3971, %v3929
      %v4004 = vadd.f32 %v3972, %v3934
      %v4005 = vadd.f32 %v3973, %v3939
      %4006 = vst.msk [vmem:[%s278] sm:$0xff] %vm319, %v3974
      %4007 = vst.msk [vmem:[%s278 + $0x8] sm:$0xff] %vm319, %v3975
      %4008 = vst.msk [vmem:[%s278 + $0x10] sm:$0xff] %vm319, %v3976
      %4009 = vst.msk [vmem:[%s278 + $0x18] sm:$0xff] %vm319, %v3977
      %4010 = vst.msk [vmem:[%s278 + $0x20] sm:$0xff] %vm319, %v3978
      %4011 = vst.msk [vmem:[%s278 + $0x28] sm:$0xff] %vm319, %v3979
      %4012 = vst.msk [vmem:[%s278 + $0x30] sm:$0xff] %vm319, %v3980
      %4013 = vst.msk [vmem:[%s278 + $0x38] sm:$0xff] %vm319, %v3981
      %4014 = vst.msk [vmem:[%s278 + $0x40] sm:$0xff] %vm319, %v3982
      %4015 = vst.msk [vmem:[%s278 + $0x48] sm:$0xff] %vm319, %v3983
      %4016 = vst.msk [vmem:[%s278 + $0x50] sm:$0xff] %vm319, %v3984
      %4017 = vst.msk [vmem:[%s278 + $0x58] sm:$0xff] %vm319, %v3985
      %4018 = vst.msk [vmem:[%s278 + $0x60] sm:$0xff] %vm319, %v3986
      %4019 = vst.msk [vmem:[%s278 + $0x68] sm:$0xff] %vm319, %v3987
      %4020 = vst.msk [vmem:[%s278 + $0x70] sm:$0xff] %vm319, %v3988
      %4021 = vst.msk [vmem:[%s278 + $0x78] sm:$0xff] %vm319, %v3989
      %4022 = vst.msk [vmem:[%s278 + $0x80] sm:$0xff] %vm319, %v3990
      %4023 = vst.msk [vmem:[%s278 + $0x88] sm:$0xff] %vm319, %v3991
      %4024 = vst.msk [vmem:[%s278 + $0x90] sm:$0xff] %vm319, %v3992
      %4025 = vst.msk [vmem:[%s278 + $0x98] sm:$0xff] %vm319, %v3993
      %4026 = vst.msk [vmem:[%s278 + $0xa0] sm:$0xff] %vm319, %v3994
      %4027 = vst.msk [vmem:[%s278 + $0xa8] sm:$0xff] %vm319, %v3995
      %4028 = vst.msk [vmem:[%s278 + $0xb0] sm:$0xff] %vm319, %v3996
      %4029 = vst.msk [vmem:[%s278 + $0xb8] sm:$0xff] %vm319, %v3997
      %4030 = vst.msk [vmem:[%s278 + $0xc0] sm:$0xff] %vm319, %v3998
      %4031 = vst.msk [vmem:[%s278 + $0xc8] sm:$0xff] %vm319, %v3999
      %4032 = vst.msk [vmem:[%s278 + $0xd0] sm:$0xff] %vm319, %v4000
      %4033 = vst.msk [vmem:[%s278 + $0xd8] sm:$0xff] %vm319, %v4001
      %4034 = vst.msk [vmem:[%s278 + $0xe0] sm:$0xff] %vm319, %v4002
      %4035 = vst.msk [vmem:[%s278 + $0xe8] sm:$0xff] %vm319, %v4003
      %4036 = vst.msk [vmem:[%s278 + $0xf0] sm:$0xff] %vm319, %v4004
      %4037 = vst.msk [vmem:[%s278 + $0xf8] sm:$0xff] %vm319, %v4005
      %p4038 = scmp.lt.s32.totalorder %s18, 1
      %s4039 = scalar_select %p4038, %s18, 1
      %s4040 = smul.addr %s4039, 32
      %s4041 = smul.addr %s4040, 8
      %s4042 = scalar_lea.vmem %s7, %s4041
      // Predicated region
      $region49: #{tpu_custom_call.1} parent=47 // pred_check
        %p4043 = pneg %p188
      $region50: #{tpu_custom_call.1} parent=47 // pred_check_branch
        %4045 = sbr.rel (%p4043) target = $region52
      $region51: #{tpu_custom_call.1} parent=47 // pred_region
        _
      $region52: #{tpu_custom_call.1} parent=47 // pred_fallthru
        _
    $region48: #{tpu_custom_call.1} parent=5 // pred_fallthru
      _
    %p4046 = scmp.le.s32.totalorder 2, %s13
    // Predicated region
    $region53: #{tpu_custom_call.1} parent=5 // pred_check
      %p4047 = pneg %p4046
    $region54: #{tpu_custom_call.1} parent=5 // pred_check_branch
      %4049 = sbr.rel (%p4047) target = $region56
    $region55: #{tpu_custom_call.1} parent=5 // pred_region
      %s4050 = ssub.s32 %s13, 2
      // Predicated region
      $region57: #{tpu_custom_call.1} parent=55 // pred_check
        %p4051 = pneg %p194
      $region58: #{tpu_custom_call.1} parent=55 // pred_check_branch
        %4053 = sbr.rel (%p4051) target = $region60
      $region59: #{tpu_custom_call.1} parent=55 // pred_region
        %p4054 = scmp.lt.s32.totalorder %s19, 1
        %s4055 = scalar_select %p4054, %s19, 1
        %s4056 = smul.addr %s4055, 32
        %s4057 = smul.addr %s4056, 8
        %s4058 = scalar_lea.vmem %s7, %s4057
      $region60: #{tpu_custom_call.1} parent=55 // pred_fallthru
        _
    $region56: #{tpu_custom_call.1} parent=5 // pred_fallthru
      _
  $region6: #{tpu_custom_call.1} parent=0 // loop_footer
    %s17 = sadd.s32 1, %s13
  $region7: #{tpu_custom_call.1} parent=0 // loop_footer_branch
    %12 = sbr.rel target = $region3
  $region8: #{tpu_custom_call.1} parent=0 // loop_exit
    _

</llo_original>
